<compile_context>
chip_gen: v5e
topology: v5e:2x2
jax: 0.10.0
libtpu: 0.0.40
codegen_flags: <defaults>
</compile_context>

<pallas_src>
import jax
import jax.numpy as jnp
from jax.experimental import pallas as pl
from jax.experimental.pallas import tpu as pltpu

K = 3  # Conv2d kernel size in ConvBlock


def convblock_kernel(x_ref, w_ref, b_ref, o_ref, xpad_ref):
    # x_ref    : (N, H, W, Cin)            bf16 NHWC input (whole batch)
    # w_ref    : (K*K*Cin, Cout)           bf16 im2col-folded conv weights
    # b_ref    : (1, Cout)                 f32 bias
    # o_ref    : (N, Hp2*Wp2*Cout)         f32 lane-dense output slab
    # xpad_ref : (N, H+2, W+2, Cin)        bf16 scratch: zero-haloed input
    N, H, W, Cin = x_ref.shape
    Cout = b_ref.shape[-1]
    Hp2, Wp2 = H // 2, W // 2
    zdt = xpad_ref.dtype

    # Zero only the 1-pixel halo ring; the interior is fully overwritten below.
    xpad_ref[:, pl.ds(0, 1), :, :] = jnp.zeros((N, 1, W + 2, Cin), zdt)
    xpad_ref[:, pl.ds(H + 1, 1), :, :] = jnp.zeros((N, 1, W + 2, Cin), zdt)
    xpad_ref[:, :, pl.ds(0, 1), :] = jnp.zeros((N, H + 2, 1, Cin), zdt)
    xpad_ref[:, :, pl.ds(W + 1, 1), :] = jnp.zeros((N, H + 2, 1, Cin), zdt)
    xpad_ref[:, pl.ds(1, H), pl.ds(1, W), :] = x_ref[...]

    # im2col: 9 shifted taps concatenated along the channel/lane axis, then a
    # single (N*H*W, 9*Cin) @ (9*Cin, Cout) MXU dot with f32 accumulation.
    taps = [xpad_ref[:, pl.ds(dy, H), pl.ds(dx, W), :]
            for dy in range(K) for dx in range(K)]
    patches = jnp.concatenate(taps, axis=-1).reshape(N * H * W, K * K * Cin)  # bf16
    y = jnp.dot(patches, w_ref[...], preferred_element_type=jnp.float32)      # (N*H*W, Cout)

    # Bias + ReLU fused in registers (f32).
    y = jnp.maximum(y + b_ref[...], 0.0)

    # MaxPool2d(2) entirely in registers: split H and W into (half, 2) and max
    # the static slices (no scratch, no strided sublane reads).
    y = y.reshape(N, Hp2, 2, Wp2, 2, Cout)           # (n, hp, hr, wp, wr, c)
    y = jnp.maximum(y[:, :, 0], y[:, :, 1])          # H-pool -> (N, Hp2, Wp2, 2, Cout)
    y = jnp.maximum(y[:, :, :, 0], y[:, :, :, 1])    # W-pool -> (N, Hp2, Wp2, Cout)

    # Lane-dense store: fold (Hp2, Wp2, Cout) into the lane axis with lane-axis
    # concatenates so the single output store is an unmasked, 512-lane vst.
    rows = jnp.concatenate([y[:, :, j, :] for j in range(Wp2)], axis=-1)   # (N, Hp2, Wp2*Cout)
    flat = jnp.concatenate([rows[:, i, :] for i in range(Hp2)], axis=-1)   # (N, Hp2*Wp2*Cout)
    o_ref[...] = flat.astype(o_ref.dtype)


def conv_block_forward(x_nchw, w_oihw, b, *, padding=1, pool_size=2):
    """ConvBlock forward: Conv2d(3x3, padding=1) -> ReLU -> MaxPool2d(2), NCHW I/O."""
    N, Cin, H, W = x_nchw.shape
    Cout, Cin_w, Kh, Kw = w_oihw.shape
    assert (Kh, Kw) == (K, K) and Cin_w == Cin
    assert padding == 1 and pool_size == 2, "kernel implements the ConvBlock defaults"
    Ho = H + 2 * padding - (K - 1)
    Wo = W + 2 * padding - (K - 1)
    assert Ho % pool_size == 0 and Wo % pool_size == 0, \
        "odd conv output: MaxPool2d floor would silently drop rows/cols"
    Hp2, Wp2 = Ho // pool_size, Wo // pool_size

    # Layout glue: NCHW -> NHWC, bf16 inputs/weights (f32 accumulate in-kernel;
    # differs from PyTorch f32 conv at ~1e-2 level), conv weight folded to
    # im2col layout (K*K*Cin, Cout).
    x = jnp.transpose(x_nchw, (0, 2, 3, 1)).astype(jnp.bfloat16)
    w = jnp.transpose(w_oihw, (2, 3, 1, 0)).reshape(K * K * Cin, Cout).astype(jnp.bfloat16)
    b2 = b.reshape(1, Cout).astype(jnp.float32)

    out_flat = pl.pallas_call(
        convblock_kernel,
        out_shape=jax.ShapeDtypeStruct((N, Hp2 * Wp2 * Cout), jnp.float32),
        grid=(1,),   # whole batch in one step: avoids per-step overhead at N=2
        in_specs=[
            pl.BlockSpec((N, H, W, Cin), lambda i: (0, 0, 0, 0)),
            pl.BlockSpec((K * K * Cin, Cout), lambda i: (0, 0)),
            pl.BlockSpec((1, Cout), lambda i: (0, 0)),
        ],
        out_specs=pl.BlockSpec((N, Hp2 * Wp2 * Cout), lambda i: (0, 0)),
        scratch_shapes=[
            pltpu.VMEM((N, H + 2, W + 2, Cin), jnp.bfloat16),  # zero-haloed input
        ],
        compiler_params=pltpu.CompilerParams(
            dimension_semantics=("arbitrary",),
            vmem_limit_bytes=32 * 1024 * 1024,
        ),
    )(x, w, b2)

    # Back to PyTorch NCHW (free layout plumbing outside the kernel).
    out_nhwc = out_flat.reshape(N, Hp2, Wp2, Cout)
    return jnp.transpose(out_nhwc, (0, 3, 1, 2))


def reference_forward(x_nchw, w_oihw, b, *, padding=1, pool_size=2):
    y = jax.lax.conv_general_dilated(
        x_nchw, w_oihw, window_strides=(1, 1),
        padding=((padding, padding), (padding, padding)),
        dimension_numbers=("NCHW", "OIHW", "NCHW"),
    )
    y = y + b.reshape(1, -1, 1, 1)
    y = jnp.maximum(y, 0.0)
    y = jax.lax.reduce_window(
        y, -jnp.inf, jax.lax.max,
        window_dimensions=(1, 1, pool_size, pool_size),
        window_strides=(1, 1, pool_size, pool_size),
        padding="VALID",
    )
    return y


if __name__ == "__main__":
    # ConvBlock(indim=4, outdim=8, pool=True, pool_size=2, padding=1, relu=True)
    N, Cin, H, W = 2, 4, 16, 16
    Cout = 8

    key = jax.random.PRNGKey(0)
    kx, kw, kb = jax.random.split(key, 3)

    x = jax.random.normal(kx, (N, Cin, H, W), dtype=jnp.float32)

    # Deterministic Conv2d-style init (uniform +- 1/sqrt(fan_in)).
    fan_in = Cin * K * K
    bound = 1.0 / (fan_in ** 0.5)
    weight = jax.random.uniform(kw, (Cout, Cin, K, K), jnp.float32, -bound, bound)
    bias = jax.random.uniform(kb, (Cout,), jnp.float32, -bound, bound)

    out = conv_block_forward(x, weight, bias)
    out = jax.block_until_ready(out)

    ref = reference_forward(x, weight, bias)
    assert out.shape == (N, Cout, H // 2, W // 2), out.shape
    assert bool(jnp.allclose(out, ref, atol=5e-2, rtol=5e-2)), "mismatch vs reference"

    print("KERNEL_OK")
</pallas_src>

<mosaic_0001>
module attributes {stable_mosaic.version = 11 : i64} {
  func.func @convblock_kernel(%arg0: i32, %arg1: memref<2x16x16x4xbf16, #tpu.memory_space<vmem>>, %arg2: memref<36x8xbf16, #tpu.memory_space<vmem>>, %arg3: memref<1x8xf32, #tpu.memory_space<vmem>>, %arg4: memref<2x512xf32, #tpu.memory_space<vmem>>, %arg5: memref<2x18x18x4xbf16, #tpu.memory_space<vmem>>) attributes {dimension_semantics = [#tpu.dimension_semantics<arbitrary>], iteration_bounds = array<i64: 1>, scalar_prefetch = 0 : i64, scratch_operands = 1 : i64, tpu.core_type = #tpu.core_type<tc>, window_params = [{pipeline_mode = #tpu.pipeline_mode<synchronous>, transform_indices = @transform_0, window_bounds = array<i64: 2, 16, 16, 4>}, {pipeline_mode = #tpu.pipeline_mode<synchronous>, transform_indices = @transform_1, window_bounds = array<i64: 36, 8>}, {pipeline_mode = #tpu.pipeline_mode<synchronous>, transform_indices = @transform_2, window_bounds = array<i64: 1, 8>}, {pipeline_mode = #tpu.pipeline_mode<synchronous>, transform_indices = @transform_3, window_bounds = array<i64: 2, 512>}]} {
    %cst = arith.constant 0.000000e+00 : bf16
    %0 = vector.broadcast %cst : bf16 to vector<2x1x18x4xbf16>
    %c0 = arith.constant 0 : index
    %c0_0 = arith.constant 0 : index
    %c0_1 = arith.constant 0 : index
    %c0_2 = arith.constant 0 : index
    %1 = vector.load %arg5[%c0, %c0_0, %c0_1, %c0_2] : memref<2x18x18x4xbf16, #tpu.memory_space<vmem>>, vector<2x1x18x4xbf16>
    tpu.vector_store %arg5[%c0, %c0_0, %c0_1, %c0_2], %0 {strides = array<i32>} : memref<2x18x18x4xbf16, #tpu.memory_space<vmem>>, vector<2x1x18x4xbf16>,
    %cst_3 = arith.constant 0.000000e+00 : bf16
    %2 = vector.broadcast %cst_3 : bf16 to vector<2x1x18x4xbf16>
    %c0_4 = arith.constant 0 : index
    %c17 = arith.constant 17 : index
    %c0_5 = arith.constant 0 : index
    %c0_6 = arith.constant 0 : index
    %3 = vector.load %arg5[%c0_4, %c17, %c0_5, %c0_6] : memref<2x18x18x4xbf16, #tpu.memory_space<vmem>>, vector<2x1x18x4xbf16>
    tpu.vector_store %arg5[%c0_4, %c17, %c0_5, %c0_6], %2 {strides = array<i32>} : memref<2x18x18x4xbf16, #tpu.memory_space<vmem>>, vector<2x1x18x4xbf16>,
    %cst_7 = arith.constant 0.000000e+00 : bf16
    %4 = vector.broadcast %cst_7 : bf16 to vector<2x18x1x4xbf16>
    %c0_8 = arith.constant 0 : index
    %c0_9 = arith.constant 0 : index
    %c0_10 = arith.constant 0 : index
    %c0_11 = arith.constant 0 : index
    %5 = vector.load %arg5[%c0_8, %c0_9, %c0_10, %c0_11] : memref<2x18x18x4xbf16, #tpu.memory_space<vmem>>, vector<2x18x1x4xbf16>
    tpu.vector_store %arg5[%c0_8, %c0_9, %c0_10, %c0_11], %4 {strides = array<i32>} : memref<2x18x18x4xbf16, #tpu.memory_space<vmem>>, vector<2x18x1x4xbf16>,
    %cst_12 = arith.constant 0.000000e+00 : bf16
    %6 = vector.broadcast %cst_12 : bf16 to vector<2x18x1x4xbf16>
    %c0_13 = arith.constant 0 : index
    %c0_14 = arith.constant 0 : index
    %c17_15 = arith.constant 17 : index
    %c0_16 = arith.constant 0 : index
    %7 = vector.load %arg5[%c0_13, %c0_14, %c17_15, %c0_16] : memref<2x18x18x4xbf16, #tpu.memory_space<vmem>>, vector<2x18x1x4xbf16>
    tpu.vector_store %arg5[%c0_13, %c0_14, %c17_15, %c0_16], %6 {strides = array<i32>} : memref<2x18x18x4xbf16, #tpu.memory_space<vmem>>, vector<2x18x1x4xbf16>,
    %c0_17 = arith.constant 0 : index
    %c0_18 = arith.constant 0 : index
    %c0_19 = arith.constant 0 : index
    %c0_20 = arith.constant 0 : index
    %8 = vector.load %arg1[%c0_17, %c0_18, %c0_19, %c0_20] : memref<2x16x16x4xbf16, #tpu.memory_space<vmem>>, vector<2x16x16x4xbf16>
    %c0_21 = arith.constant 0 : index
    %c1 = arith.constant 1 : index
    %c1_22 = arith.constant 1 : index
    %c0_23 = arith.constant 0 : index
    %9 = vector.load %arg5[%c0_21, %c1, %c1_22, %c0_23] : memref<2x18x18x4xbf16, #tpu.memory_space<vmem>>, vector<2x16x16x4xbf16>
    tpu.vector_store %arg5[%c0_21, %c1, %c1_22, %c0_23], %8 {strides = array<i32>} : memref<2x18x18x4xbf16, #tpu.memory_space<vmem>>, vector<2x16x16x4xbf16>,
    %c0_24 = arith.constant 0 : index
    %c0_25 = arith.constant 0 : index
    %c0_26 = arith.constant 0 : index
    %c0_27 = arith.constant 0 : index
    %10 = vector.load %arg5[%c0_24, %c0_25, %c0_26, %c0_27] : memref<2x18x18x4xbf16, #tpu.memory_space<vmem>>, vector<2x16x16x4xbf16>
    %c0_28 = arith.constant 0 : index
    %c0_29 = arith.constant 0 : index
    %c1_30 = arith.constant 1 : index
    %c0_31 = arith.constant 0 : index
    %11 = vector.load %arg5[%c0_28, %c0_29, %c1_30, %c0_31] : memref<2x18x18x4xbf16, #tpu.memory_space<vmem>>, vector<2x16x16x4xbf16>
    %c0_32 = arith.constant 0 : index
    %c0_33 = arith.constant 0 : index
    %c2 = arith.constant 2 : index
    %c0_34 = arith.constant 0 : index
    %12 = vector.load %arg5[%c0_32, %c0_33, %c2, %c0_34] : memref<2x18x18x4xbf16, #tpu.memory_space<vmem>>, vector<2x16x16x4xbf16>
    %c0_35 = arith.constant 0 : index
    %c1_36 = arith.constant 1 : index
    %c0_37 = arith.constant 0 : index
    %c0_38 = arith.constant 0 : index
    %13 = vector.load %arg5[%c0_35, %c1_36, %c0_37, %c0_38] : memref<2x18x18x4xbf16, #tpu.memory_space<vmem>>, vector<2x16x16x4xbf16>
    %c0_39 = arith.constant 0 : index
    %c1_40 = arith.constant 1 : index
    %c1_41 = arith.constant 1 : index
    %c0_42 = arith.constant 0 : index
    %14 = vector.load %arg5[%c0_39, %c1_40, %c1_41, %c0_42] : memref<2x18x18x4xbf16, #tpu.memory_space<vmem>>, vector<2x16x16x4xbf16>
    %c0_43 = arith.constant 0 : index
    %c1_44 = arith.constant 1 : index
    %c2_45 = arith.constant 2 : index
    %c0_46 = arith.constant 0 : index
    %15 = vector.load %arg5[%c0_43, %c1_44, %c2_45, %c0_46] : memref<2x18x18x4xbf16, #tpu.memory_space<vmem>>, vector<2x16x16x4xbf16>
    %c0_47 = arith.constant 0 : index
    %c2_48 = arith.constant 2 : index
    %c0_49 = arith.constant 0 : index
    %c0_50 = arith.constant 0 : index
    %16 = vector.load %arg5[%c0_47, %c2_48, %c0_49, %c0_50] : memref<2x18x18x4xbf16, #tpu.memory_space<vmem>>, vector<2x16x16x4xbf16>
    %c0_51 = arith.constant 0 : index
    %c2_52 = arith.constant 2 : index
    %c1_53 = arith.constant 1 : index
    %c0_54 = arith.constant 0 : index
    %17 = vector.load %arg5[%c0_51, %c2_52, %c1_53, %c0_54] : memref<2x18x18x4xbf16, #tpu.memory_space<vmem>>, vector<2x16x16x4xbf16>
    %c0_55 = arith.constant 0 : index
    %c2_56 = arith.constant 2 : index
    %c2_57 = arith.constant 2 : index
    %c0_58 = arith.constant 0 : index
    %18 = vector.load %arg5[%c0_55, %c2_56, %c2_57, %c0_58] : memref<2x18x18x4xbf16, #tpu.memory_space<vmem>>, vector<2x16x16x4xbf16>
    %19 = tpu.concatenate %10, %11, %12, %13, %14, %15, %16, %17, %18 in 3 : vector<2x16x16x4xbf16>, vector<2x16x16x4xbf16>, vector<2x16x16x4xbf16>, vector<2x16x16x4xbf16>, vector<2x16x16x4xbf16>, vector<2x16x16x4xbf16>, vector<2x16x16x4xbf16>, vector<2x16x16x4xbf16>, vector<2x16x16x4xbf16> -> vector<2x16x16x36xbf16>
    %20 = vector.shape_cast %19 : vector<2x16x16x36xbf16> to vector<512x36xbf16>
    %c0_59 = arith.constant 0 : index
    %c0_60 = arith.constant 0 : index
    %21 = vector.load %arg2[%c0_59, %c0_60] : memref<36x8xbf16, #tpu.memory_space<vmem>>, vector<36x8xbf16>
    %cst_61 = arith.constant dense<0.000000e+00> : vector<512x8xf32>
    %22 = tpu.matmul %20, %21, %cst_61 {dimension_numbers = #tpu.dot_dimension_numbers<[1], [0], [0], [1], [0, 0, 1, 1], [], []>} : vector<512x36xbf16>, vector<36x8xbf16>, vector<512x8xf32> -> vector<512x8xf32>
    %c0_62 = arith.constant 0 : index
    %c0_63 = arith.constant 0 : index
    %23 = vector.load %arg3[%c0_62, %c0_63] : memref<1x8xf32, #tpu.memory_space<vmem>>, vector<1x8xf32>
    %24 = vector.broadcast %23 : vector<1x8xf32> to vector<512x8xf32>
    %25 = arith.addf %22, %24 : vector<512x8xf32>
    %cst_64 = arith.constant 0.000000e+00 : f32
    %26 = vector.broadcast %cst_64 : f32 to vector<512x8xf32>
    %27 = arith.maximumf %25, %26 : vector<512x8xf32>
    %28 = vector.shape_cast %27 : vector<512x8xf32> to vector<2x8x2x8x2x8xf32>
    %29 = vector.extract_strided_slice %28 {offsets = [0, 0, 0, 0, 0, 0], sizes = [2, 8, 1, 8, 2, 8], strides = [1, 1, 1, 1, 1, 1]} : vector<2x8x2x8x2x8xf32> to vector<2x8x1x8x2x8xf32>
    %30 = vector.shape_cast %29 : vector<2x8x1x8x2x8xf32> to vector<2x8x8x2x8xf32>
    %31 = vector.extract_strided_slice %28 {offsets = [0, 0, 1, 0, 0, 0], sizes = [2, 8, 1, 8, 2, 8], strides = [1, 1, 1, 1, 1, 1]} : vector<2x8x2x8x2x8xf32> to vector<2x8x1x8x2x8xf32>
    %32 = vector.shape_cast %31 : vector<2x8x1x8x2x8xf32> to vector<2x8x8x2x8xf32>
    %33 = arith.maximumf %30, %32 : vector<2x8x8x2x8xf32>
    %34 = vector.extract_strided_slice %33 {offsets = [0, 0, 0, 0, 0], sizes = [2, 8, 8, 1, 8], strides = [1, 1, 1, 1, 1]} : vector<2x8x8x2x8xf32> to vector<2x8x8x1x8xf32>
    %35 = vector.shape_cast %34 : vector<2x8x8x1x8xf32> to vector<2x8x8x8xf32>
    %36 = vector.extract_strided_slice %33 {offsets = [0, 0, 0, 1, 0], sizes = [2, 8, 8, 1, 8], strides = [1, 1, 1, 1, 1]} : vector<2x8x8x2x8xf32> to vector<2x8x8x1x8xf32>
    %37 = vector.shape_cast %36 : vector<2x8x8x1x8xf32> to vector<2x8x8x8xf32>
    %38 = arith.maximumf %35, %37 : vector<2x8x8x8xf32>
    %39 = vector.extract_strided_slice %38 {offsets = [0, 0, 0, 0], sizes = [2, 8, 1, 8], strides = [1, 1, 1, 1]} : vector<2x8x8x8xf32> to vector<2x8x1x8xf32>
    %40 = vector.shape_cast %39 : vector<2x8x1x8xf32> to vector<2x8x8xf32>
    %41 = vector.extract_strided_slice %38 {offsets = [0, 0, 1, 0], sizes = [2, 8, 1, 8], strides = [1, 1, 1, 1]} : vector<2x8x8x8xf32> to vector<2x8x1x8xf32>
    %42 = vector.shape_cast %41 : vector<2x8x1x8xf32> to vector<2x8x8xf32>
    %43 = vector.extract_strided_slice %38 {offsets = [0, 0, 2, 0], sizes = [2, 8, 1, 8], strides = [1, 1, 1, 1]} : vector<2x8x8x8xf32> to vector<2x8x1x8xf32>
    %44 = vector.shape_cast %43 : vector<2x8x1x8xf32> to vector<2x8x8xf32>
    %45 = vector.extract_strided_slice %38 {offsets = [0, 0, 3, 0], sizes = [2, 8, 1, 8], strides = [1, 1, 1, 1]} : vector<2x8x8x8xf32> to vector<2x8x1x8xf32>
    %46 = vector.shape_cast %45 : vector<2x8x1x8xf32> to vector<2x8x8xf32>
    %47 = vector.extract_strided_slice %38 {offsets = [0, 0, 4, 0], sizes = [2, 8, 1, 8], strides = [1, 1, 1, 1]} : vector<2x8x8x8xf32> to vector<2x8x1x8xf32>
    %48 = vector.shape_cast %47 : vector<2x8x1x8xf32> to vector<2x8x8xf32>
    %49 = vector.extract_strided_slice %38 {offsets = [0, 0, 5, 0], sizes = [2, 8, 1, 8], strides = [1, 1, 1, 1]} : vector<2x8x8x8xf32> to vector<2x8x1x8xf32>
    %50 = vector.shape_cast %49 : vector<2x8x1x8xf32> to vector<2x8x8xf32>
    %51 = vector.extract_strided_slice %38 {offsets = [0, 0, 6, 0], sizes = [2, 8, 1, 8], strides = [1, 1, 1, 1]} : vector<2x8x8x8xf32> to vector<2x8x1x8xf32>
    %52 = vector.shape_cast %51 : vector<2x8x1x8xf32> to vector<2x8x8xf32>
    %53 = vector.extract_strided_slice %38 {offsets = [0, 0, 7, 0], sizes = [2, 8, 1, 8], strides = [1, 1, 1, 1]} : vector<2x8x8x8xf32> to vector<2x8x1x8xf32>
    %54 = vector.shape_cast %53 : vector<2x8x1x8xf32> to vector<2x8x8xf32>
    %55 = tpu.concatenate %40, %42, %44, %46, %48, %50, %52, %54 in 2 : vector<2x8x8xf32>, vector<2x8x8xf32>, vector<2x8x8xf32>, vector<2x8x8xf32>, vector<2x8x8xf32>, vector<2x8x8xf32>, vector<2x8x8xf32>, vector<2x8x8xf32> -> vector<2x8x64xf32>
    %56 = vector.extract_strided_slice %55 {offsets = [0, 0, 0], sizes = [2, 1, 64], strides = [1, 1, 1]} : vector<2x8x64xf32> to vector<2x1x64xf32>
    %57 = vector.shape_cast %56 : vector<2x1x64xf32> to vector<2x64xf32>
    %58 = vector.extract_strided_slice %55 {offsets = [0, 1, 0], sizes = [2, 1, 64], strides = [1, 1, 1]} : vector<2x8x64xf32> to vector<2x1x64xf32>
    %59 = vector.shape_cast %58 : vector<2x1x64xf32> to vector<2x64xf32>
    %60 = vector.extract_strided_slice %55 {offsets = [0, 2, 0], sizes = [2, 1, 64], strides = [1, 1, 1]} : vector<2x8x64xf32> to vector<2x1x64xf32>
    %61 = vector.shape_cast %60 : vector<2x1x64xf32> to vector<2x64xf32>
    %62 = vector.extract_strided_slice %55 {offsets = [0, 3, 0], sizes = [2, 1, 64], strides = [1, 1, 1]} : vector<2x8x64xf32> to vector<2x1x64xf32>
    %63 = vector.shape_cast %62 : vector<2x1x64xf32> to vector<2x64xf32>
    %64 = vector.extract_strided_slice %55 {offsets = [0, 4, 0], sizes = [2, 1, 64], strides = [1, 1, 1]} : vector<2x8x64xf32> to vector<2x1x64xf32>
    %65 = vector.shape_cast %64 : vector<2x1x64xf32> to vector<2x64xf32>
    %66 = vector.extract_strided_slice %55 {offsets = [0, 5, 0], sizes = [2, 1, 64], strides = [1, 1, 1]} : vector<2x8x64xf32> to vector<2x1x64xf32>
    %67 = vector.shape_cast %66 : vector<2x1x64xf32> to vector<2x64xf32>
    %68 = vector.extract_strided_slice %55 {offsets = [0, 6, 0], sizes = [2, 1, 64], strides = [1, 1, 1]} : vector<2x8x64xf32> to vector<2x1x64xf32>
    %69 = vector.shape_cast %68 : vector<2x1x64xf32> to vector<2x64xf32>
    %70 = vector.extract_strided_slice %55 {offsets = [0, 7, 0], sizes = [2, 1, 64], strides = [1, 1, 1]} : vector<2x8x64xf32> to vector<2x1x64xf32>
    %71 = vector.shape_cast %70 : vector<2x1x64xf32> to vector<2x64xf32>
    %72 = tpu.concatenate %57, %59, %61, %63, %65, %67, %69, %71 in 1 : vector<2x64xf32>, vector<2x64xf32>, vector<2x64xf32>, vector<2x64xf32>, vector<2x64xf32>, vector<2x64xf32>, vector<2x64xf32>, vector<2x64xf32> -> vector<2x512xf32>
    %c0_65 = arith.constant 0 : index
    %c0_66 = arith.constant 0 : index
    %73 = vector.load %arg4[%c0_65, %c0_66] : memref<2x512xf32, #tpu.memory_space<vmem>>, vector<2x512xf32>
    tpu.vector_store %arg4[%c0_65, %c0_66], %72 {strides = array<i32>} : memref<2x512xf32, #tpu.memory_space<vmem>>, vector<2x512xf32>,
    return
  }
  func.func @transform_0(%arg0: i32) -> (i32, i32, i32, i32) {
    %c0_i32 = arith.constant 0 : i32
    %c0_i32_0 = arith.constant 0 : i32
    %c0_i32_1 = arith.constant 0 : i32
    %c0_i32_2 = arith.constant 0 : i32
    %c0_i32_3 = arith.constant 0 : i32
    return %c0_i32, %c0_i32_0, %c0_i32_1, %c0_i32_2 : i32, i32, i32, i32
  }
  func.func @transform_1(%arg0: i32) -> (i32, i32) {
    %c0_i32 = arith.constant 0 : i32
    %c0_i32_0 = arith.constant 0 : i32
    %c0_i32_1 = arith.constant 0 : i32
    return %c0_i32, %c0_i32_0 : i32, i32
  }
  func.func @transform_2(%arg0: i32) -> (i32, i32) {
    %c0_i32 = arith.constant 0 : i32
    %c0_i32_0 = arith.constant 0 : i32
    %c0_i32_1 = arith.constant 0 : i32
    return %c0_i32, %c0_i32_0 : i32, i32
  }
  func.func @transform_3(%arg0: i32) -> (i32, i32) {
    %c0_i32 = arith.constant 0 : i32
    %c0_i32_0 = arith.constant 0 : i32
    %c0_i32_1 = arith.constant 0 : i32
    return %c0_i32, %c0_i32_0 : i32, i32
  }
}

</mosaic_0001>

<llo_original>
// kernel: tpu_custom_call.1
$region0: #{tpu_custom_call.1}
  #allocation0 [shape = 'u32[]', space=smem, size = 0x4, offset = 0x4, fixed_abs, tag = 'smem constant byte address 0x4 - core index']
  #allocation1 [shape = 'u32[72,128]{1,0:T(1,128)}', space=vmem, size = 0x9000, scoped, tag = 'internal scratch']
  #allocation2 [shape = 'bf16[2,18,18,4]{3,2,1,0:T(8,128)(2,1)}', space=vmem, size = 0x36000, scoped, tag = 'scratch operand']
  %s0 = inlined_call_operand.vmem [shape: bf16[2,16,16,4], index: 0, kind: input, shape index: {}]
  %s1 = inlined_call_operand.vmem [shape: bf16[36,8], index: 1, kind: input, shape index: {}]
  %s2 = inlined_call_operand.vmem [shape: f32[1,8], index: 2, kind: input, shape index: {}]
  %s3 = inlined_call_operand.hbm [shape: f32[2,512], index: 3, kind: output, shape index: {}]
  %s4 = sld [smem:[#allocation0]]
  $region22: #{tpu_custom_call.1} parent=0
    _
  %s6 = ssub.s32 1, %s4
  %s7 = scalar_select 0, %s6, %s4
  $region1: #{tpu_custom_call.1} parent=0
    #allocation3 [shape = 'u8[4096]{0}', space=vmem, size = 0x1000, scoped, tag = 'output window, operand 0, single buffered']
    #allocation4 [shape = 's32[1]{0}', space=sflag, size = 0x4, scoped, tag = 'scoped memory for tpu_custom_call.1']
    %8 = vsyncpa [#allocation4], 0
    // Predicated region
    $region2: #{tpu_custom_call.1} parent=1 // pred_check
      _
    $region3: #{tpu_custom_call.1} parent=1 // pred_check_branch
      %10 = sbr.rel (0) target = $region5
    $region4: #{tpu_custom_call.1} parent=1 // pred_region
      _
    $region5: #{tpu_custom_call.1} parent=1 // pred_fallthru
      _
    // Predicated region
    $region6: #{tpu_custom_call.1} parent=1 // pred_check
      _
    $region7: #{tpu_custom_call.1} parent=1 // pred_check_branch
      %12 = sbr.rel (0) target = $region9
    $region8: #{tpu_custom_call.1} parent=1 // pred_region
      _
    $region9: #{tpu_custom_call.1} parent=1 // pred_fallthru
      _
    // Predicated region
    $region10: #{tpu_custom_call.1} parent=1 // pred_check
      _
    $region11: #{tpu_custom_call.1} parent=1 // pred_check_branch
      %14 = sbr.rel (0) target = $region13
    $region12: #{tpu_custom_call.1} parent=1 // pred_region
      _
    $region13: #{tpu_custom_call.1} parent=1 // pred_fallthru
      _
    %vm16 = vcmask 27648
    %17 = vst.msk [vmem:[#allocation2] sm:$0xf] %vm16, 0
    %18 = vst.msk [vmem:[#allocation2 + $0x4] sm:$0xf] %vm16, 0
    %vm19 = vcmask 24576
    %20 = vst.msk [vmem:[#allocation2 + $0x8] sm:$0x1] %vm19, 0
    %21 = vst.msk [vmem:[#allocation2 + $0xd8] sm:$0xf] %vm16, 0
    %22 = vst.msk [vmem:[#allocation2 + $0xdc] sm:$0xf] %vm16, 0
    %23 = vst.msk [vmem:[#allocation2 + $0xe0] sm:$0x1] %vm19, 0
    %s24 = scalar_lea.vmem [#allocation2], 204
    %25 = vst.msk [vmem:[%s24] sm:$0xf] %vm16, 0
    %26 = vst.msk [vmem:[%s24 + $0x4] sm:$0xf] %vm16, 0
    %27 = vst.msk [vmem:[%s24 + $0x8] sm:$0x1] %vm19, 0
    %28 = vst.msk [vmem:[%s24 + $0xd8] sm:$0xf] %vm16, 0
    %29 = vst.msk [vmem:[%s24 + $0xdc] sm:$0xf] %vm16, 0
    %30 = vst.msk [vmem:[%s24 + $0xe0] sm:$0x1] %vm19, 0
    %vm31 = vcmask 24576
    %vm32 = vsmask.f32 256
    %vm33 = vmand %vm31, %vm32
    %v34 = vld [vmem:[#allocation2] sm:$0x1]
    %v35 = vsel %vm33, 0, %v34
    %36 = vst [vmem:[#allocation2] sm:$0x1] %v35
    %v37 = vld [vmem:[#allocation2 + $0xc] sm:$0x1]
    %v38 = vsel %vm33, 0, %v37
    %39 = vst [vmem:[#allocation2 + $0xc] sm:$0x1] %v38
    %v40 = vld [vmem:[#allocation2 + $0x18] sm:$0x1]
    %v41 = vsel %vm33, 0, %v40
    %42 = vst [vmem:[#allocation2 + $0x18] sm:$0x1] %v41
    %v43 = vld [vmem:[#allocation2 + $0x24] sm:$0x1]
    %v44 = vsel %vm33, 0, %v43
    %45 = vst [vmem:[#allocation2 + $0x24] sm:$0x1] %v44
    %v46 = vld [vmem:[#allocation2 + $0x30] sm:$0x1]
    %v47 = vsel %vm33, 0, %v46
    %48 = vst [vmem:[#allocation2 + $0x30] sm:$0x1] %v47
    %v49 = vld [vmem:[#allocation2 + $0x3c] sm:$0x1]
    %v50 = vsel %vm33, 0, %v49
    %51 = vst [vmem:[#allocation2 + $0x3c] sm:$0x1] %v50
    %v52 = vld [vmem:[#allocation2 + $0x48] sm:$0x1]
    %v53 = vsel %vm33, 0, %v52
    %54 = vst [vmem:[#allocation2 + $0x48] sm:$0x1] %v53
    %v55 = vld [vmem:[#allocation2 + $0x54] sm:$0x1]
    %v56 = vsel %vm33, 0, %v55
    %57 = vst [vmem:[#allocation2 + $0x54] sm:$0x1] %v56
    %v58 = vld [vmem:[#allocation2 + $0x60] sm:$0x1]
    %v59 = vsel %vm33, 0, %v58
    %60 = vst [vmem:[#allocation2 + $0x60] sm:$0x1] %v59
    %v61 = vld [vmem:[#allocation2 + $0x6c] sm:$0x1]
    %v62 = vsel %vm33, 0, %v61
    %63 = vst [vmem:[#allocation2 + $0x6c] sm:$0x1] %v62
    %v64 = vld [vmem:[#allocation2 + $0x78] sm:$0x1]
    %v65 = vsel %vm33, 0, %v64
    %66 = vst [vmem:[#allocation2 + $0x78] sm:$0x1] %v65
    %v67 = vld [vmem:[#allocation2 + $0x84] sm:$0x1]
    %v68 = vsel %vm33, 0, %v67
    %69 = vst [vmem:[#allocation2 + $0x84] sm:$0x1] %v68
    %v70 = vld [vmem:[#allocation2 + $0x90] sm:$0x1]
    %v71 = vsel %vm33, 0, %v70
    %72 = vst [vmem:[#allocation2 + $0x90] sm:$0x1] %v71
    %v73 = vld [vmem:[#allocation2 + $0x9c] sm:$0x1]
    %v74 = vsel %vm33, 0, %v73
    %75 = vst [vmem:[#allocation2 + $0x9c] sm:$0x1] %v74
    %v76 = vld [vmem:[#allocation2 + $0xa8] sm:$0x1]
    %v77 = vsel %vm33, 0, %v76
    %78 = vst [vmem:[#allocation2 + $0xa8] sm:$0x1] %v77
    %v79 = vld [vmem:[#allocation2 + $0xb4] sm:$0x1]
    %v80 = vsel %vm33, 0, %v79
    %81 = vst [vmem:[#allocation2 + $0xb4] sm:$0x1] %v80
    %v82 = vld [vmem:[#allocation2 + $0xc0] sm:$0x1]
    %v83 = vsel %vm33, 0, %v82
    %84 = vst [vmem:[#allocation2 + $0xc0] sm:$0x1] %v83
    %v85 = vld [vmem:[#allocation2 + $0xcc] sm:$0x1]
    %v86 = vsel %vm33, 0, %v85
    %87 = vst [vmem:[#allocation2 + $0xcc] sm:$0x1] %v86
    %v88 = vld [vmem:[#allocation2 + $0xd8] sm:$0x1]
    %v89 = vsel %vm33, 0, %v88
    %90 = vst [vmem:[#allocation2 + $0xd8] sm:$0x1] %v89
    %v91 = vld [vmem:[#allocation2 + $0xe4] sm:$0x1]
    %v92 = vsel %vm33, 0, %v91
    %93 = vst [vmem:[#allocation2 + $0xe4] sm:$0x1] %v92
    %v94 = vld [vmem:[#allocation2 + $0xf0] sm:$0x1]
    %v95 = vsel %vm33, 0, %v94
    %96 = vst [vmem:[#allocation2 + $0xf0] sm:$0x1] %v95
    %v97 = vld [vmem:[#allocation2 + $0xfc] sm:$0x1]
    %v98 = vsel %vm33, 0, %v97
    %99 = vst [vmem:[#allocation2 + $0xfc] sm:$0x1] %v98
    %v100 = vld [vmem:[#allocation2 + $0x108] sm:$0x1]
    %v101 = vsel %vm33, 0, %v100
    %102 = vst [vmem:[#allocation2 + $0x108] sm:$0x1] %v101
    %v103 = vld [vmem:[#allocation2 + $0x114] sm:$0x1]
    %v104 = vsel %vm33, 0, %v103
    %105 = vst [vmem:[#allocation2 + $0x114] sm:$0x1] %v104
    %v106 = vld [vmem:[#allocation2 + $0x120] sm:$0x1]
    %v107 = vsel %vm33, 0, %v106
    %108 = vst [vmem:[#allocation2 + $0x120] sm:$0x1] %v107
    %v109 = vld [vmem:[#allocation2 + $0x12c] sm:$0x1]
    %v110 = vsel %vm33, 0, %v109
    %111 = vst [vmem:[#allocation2 + $0x12c] sm:$0x1] %v110
    %v112 = vld [vmem:[#allocation2 + $0x138] sm:$0x1]
    %v113 = vsel %vm33, 0, %v112
    %114 = vst [vmem:[#allocation2 + $0x138] sm:$0x1] %v113
    %v115 = vld [vmem:[#allocation2 + $0x144] sm:$0x1]
    %v116 = vsel %vm33, 0, %v115
    %117 = vst [vmem:[#allocation2 + $0x144] sm:$0x1] %v116
    %v118 = vld [vmem:[#allocation2 + $0x150] sm:$0x1]
    %v119 = vsel %vm33, 0, %v118
    %120 = vst [vmem:[#allocation2 + $0x150] sm:$0x1] %v119
    %v121 = vld [vmem:[#allocation2 + $0x15c] sm:$0x1]
    %v122 = vsel %vm33, 0, %v121
    %123 = vst [vmem:[#allocation2 + $0x15c] sm:$0x1] %v122
    %v124 = vld [vmem:[#allocation2 + $0x168] sm:$0x1]
    %v125 = vsel %vm33, 0, %v124
    %126 = vst [vmem:[#allocation2 + $0x168] sm:$0x1] %v125
    %v127 = vld [vmem:[#allocation2 + $0x174] sm:$0x1]
    %v128 = vsel %vm33, 0, %v127
    %129 = vst [vmem:[#allocation2 + $0x174] sm:$0x1] %v128
    %v130 = vld [vmem:[#allocation2 + $0x180] sm:$0x1]
    %v131 = vsel %vm33, 0, %v130
    %132 = vst [vmem:[#allocation2 + $0x180] sm:$0x1] %v131
    %v133 = vld [vmem:[#allocation2 + $0x18c] sm:$0x1]
    %v134 = vsel %vm33, 0, %v133
    %135 = vst [vmem:[#allocation2 + $0x18c] sm:$0x1] %v134
    %v136 = vld [vmem:[#allocation2 + $0x198] sm:$0x1]
    %v137 = vsel %vm33, 0, %v136
    %138 = vst [vmem:[#allocation2 + $0x198] sm:$0x1] %v137
    %v139 = vld [vmem:[#allocation2 + $0x1a4] sm:$0x1]
    %v140 = vsel %vm33, 0, %v139
    %141 = vst [vmem:[#allocation2 + $0x1a4] sm:$0x1] %v140
    %vm142 = vsmask.f32 7938
    %vm143 = vmand %vm31, %vm142
    %v144 = vld [vmem:[#allocation2 + $0x8] sm:$0x1]
    %v145 = vsel %vm143, 0, %v144
    %146 = vst [vmem:[#allocation2 + $0x8] sm:$0x1] %v145
    %v147 = vld [vmem:[#allocation2 + $0x14] sm:$0x1]
    %v148 = vsel %vm143, 0, %v147
    %149 = vst [vmem:[#allocation2 + $0x14] sm:$0x1] %v148
    %v150 = vld [vmem:[#allocation2 + $0x20] sm:$0x1]
    %v151 = vsel %vm143, 0, %v150
    %152 = vst [vmem:[#allocation2 + $0x20] sm:$0x1] %v151
    %v153 = vld [vmem:[#allocation2 + $0x2c] sm:$0x1]
    %v154 = vsel %vm143, 0, %v153
    %155 = vst [vmem:[#allocation2 + $0x2c] sm:$0x1] %v154
    %v156 = vld [vmem:[#allocation2 + $0x38] sm:$0x1]
    %v157 = vsel %vm143, 0, %v156
    %158 = vst [vmem:[#allocation2 + $0x38] sm:$0x1] %v157
    %v159 = vld [vmem:[#allocation2 + $0x44] sm:$0x1]
    %v160 = vsel %vm143, 0, %v159
    %161 = vst [vmem:[#allocation2 + $0x44] sm:$0x1] %v160
    %v162 = vld [vmem:[#allocation2 + $0x50] sm:$0x1]
    %v163 = vsel %vm143, 0, %v162
    %164 = vst [vmem:[#allocation2 + $0x50] sm:$0x1] %v163
    %v165 = vld [vmem:[#allocation2 + $0x5c] sm:$0x1]
    %v166 = vsel %vm143, 0, %v165
    %167 = vst [vmem:[#allocation2 + $0x5c] sm:$0x1] %v166
    %v168 = vld [vmem:[#allocation2 + $0x68] sm:$0x1]
    %v169 = vsel %vm143, 0, %v168
    %170 = vst [vmem:[#allocation2 + $0x68] sm:$0x1] %v169
    %v171 = vld [vmem:[#allocation2 + $0x74] sm:$0x1]
    %v172 = vsel %vm143, 0, %v171
    %173 = vst [vmem:[#allocation2 + $0x74] sm:$0x1] %v172
    %v174 = vld [vmem:[#allocation2 + $0x80] sm:$0x1]
    %v175 = vsel %vm143, 0, %v174
    %176 = vst [vmem:[#allocation2 + $0x80] sm:$0x1] %v175
    %v177 = vld [vmem:[#allocation2 + $0x8c] sm:$0x1]
    %v178 = vsel %vm143, 0, %v177
    %179 = vst [vmem:[#allocation2 + $0x8c] sm:$0x1] %v178
    %v180 = vld [vmem:[#allocation2 + $0x98] sm:$0x1]
    %v181 = vsel %vm143, 0, %v180
    %182 = vst [vmem:[#allocation2 + $0x98] sm:$0x1] %v181
    %v183 = vld [vmem:[#allocation2 + $0xa4] sm:$0x1]
    %v184 = vsel %vm143, 0, %v183
    %185 = vst [vmem:[#allocation2 + $0xa4] sm:$0x1] %v184
    %v186 = vld [vmem:[#allocation2 + $0xb0] sm:$0x1]
    %v187 = vsel %vm143, 0, %v186
    %188 = vst [vmem:[#allocation2 + $0xb0] sm:$0x1] %v187
    %v189 = vld [vmem:[#allocation2 + $0xbc] sm:$0x1]
    %v190 = vsel %vm143, 0, %v189
    %191 = vst [vmem:[#allocation2 + $0xbc] sm:$0x1] %v190
    %v192 = vld [vmem:[#allocation2 + $0xc8] sm:$0x1]
    %v193 = vsel %vm143, 0, %v192
    %194 = vst [vmem:[#allocation2 + $0xc8] sm:$0x1] %v193
    %v195 = vld [vmem:[#allocation2 + $0xd4] sm:$0x1]
    %v196 = vsel %vm143, 0, %v195
    %197 = vst [vmem:[#allocation2 + $0xd4] sm:$0x1] %v196
    %v198 = vld [vmem:[#allocation2 + $0xe0] sm:$0x1]
    %v199 = vsel %vm143, 0, %v198
    %200 = vst [vmem:[#allocation2 + $0xe0] sm:$0x1] %v199
    %v201 = vld [vmem:[#allocation2 + $0xec] sm:$0x1]
    %v202 = vsel %vm143, 0, %v201
    %203 = vst [vmem:[#allocation2 + $0xec] sm:$0x1] %v202
    %v204 = vld [vmem:[#allocation2 + $0xf8] sm:$0x1]
    %v205 = vsel %vm143, 0, %v204
    %206 = vst [vmem:[#allocation2 + $0xf8] sm:$0x1] %v205
    %v207 = vld [vmem:[#allocation2 + $0x104] sm:$0x1]
    %v208 = vsel %vm143, 0, %v207
    %209 = vst [vmem:[#allocation2 + $0x104] sm:$0x1] %v208
    %v210 = vld [vmem:[#allocation2 + $0x110] sm:$0x1]
    %v211 = vsel %vm143, 0, %v210
    %212 = vst [vmem:[#allocation2 + $0x110] sm:$0x1] %v211
    %v213 = vld [vmem:[#allocation2 + $0x11c] sm:$0x1]
    %v214 = vsel %vm143, 0, %v213
    %215 = vst [vmem:[#allocation2 + $0x11c] sm:$0x1] %v214
    %v216 = vld [vmem:[#allocation2 + $0x128] sm:$0x1]
    %v217 = vsel %vm143, 0, %v216
    %218 = vst [vmem:[#allocation2 + $0x128] sm:$0x1] %v217
    %v219 = vld [vmem:[#allocation2 + $0x134] sm:$0x1]
    %v220 = vsel %vm143, 0, %v219
    %221 = vst [vmem:[#allocation2 + $0x134] sm:$0x1] %v220
    %v222 = vld [vmem:[#allocation2 + $0x140] sm:$0x1]
    %v223 = vsel %vm143, 0, %v222
    %224 = vst [vmem:[#allocation2 + $0x140] sm:$0x1] %v223
    %v225 = vld [vmem:[#allocation2 + $0x14c] sm:$0x1]
    %v226 = vsel %vm143, 0, %v225
    %227 = vst [vmem:[#allocation2 + $0x14c] sm:$0x1] %v226
    %v228 = vld [vmem:[#allocation2 + $0x158] sm:$0x1]
    %v229 = vsel %vm143, 0, %v228
    %230 = vst [vmem:[#allocation2 + $0x158] sm:$0x1] %v229
    %v231 = vld [vmem:[#allocation2 + $0x164] sm:$0x1]
    %v232 = vsel %vm143, 0, %v231
    %233 = vst [vmem:[#allocation2 + $0x164] sm:$0x1] %v232
    %v234 = vld [vmem:[#allocation2 + $0x170] sm:$0x1]
    %v235 = vsel %vm143, 0, %v234
    %236 = vst [vmem:[#allocation2 + $0x170] sm:$0x1] %v235
    %v237 = vld [vmem:[#allocation2 + $0x17c] sm:$0x1]
    %v238 = vsel %vm143, 0, %v237
    %239 = vst [vmem:[#allocation2 + $0x17c] sm:$0x1] %v238
    %v240 = vld [vmem:[#allocation2 + $0x188] sm:$0x1]
    %v241 = vsel %vm143, 0, %v240
    %242 = vst [vmem:[#allocation2 + $0x188] sm:$0x1] %v241
    %v243 = vld [vmem:[#allocation2 + $0x194] sm:$0x1]
    %v244 = vsel %vm143, 0, %v243
    %245 = vst [vmem:[#allocation2 + $0x194] sm:$0x1] %v244
    %v246 = vld [vmem:[#allocation2 + $0x1a0] sm:$0x1]
    %v247 = vsel %vm143, 0, %v246
    %248 = vst [vmem:[#allocation2 + $0x1a0] sm:$0x1] %v247
    %v249 = vld [vmem:[#allocation2 + $0x1ac] sm:$0x1]
    %v250 = vsel %vm143, 0, %v249
    %251 = vst [vmem:[#allocation2 + $0x1ac] sm:$0x1] %v250
    %v252 = vld [vmem:[%s0] sm:$0xf]
    %v253 = vld [vmem:[%s0 + $0x4] sm:$0xf]
    %v254 = vld [vmem:[%s0 + $0x8] sm:$0xf]
    %v255 = vld [vmem:[%s0 + $0xc] sm:$0xf]
    %v256 = vld [vmem:[%s0 + $0x10] sm:$0xf]
    %v257 = vld [vmem:[%s0 + $0x14] sm:$0xf]
    %v258 = vld [vmem:[%s0 + $0x18] sm:$0xf]
    %v259 = vld [vmem:[%s0 + $0x1c] sm:$0xf]
    %v260 = vld [vmem:[%s0 + $0x20] sm:$0xf]
    %v261 = vld [vmem:[%s0 + $0x24] sm:$0xf]
    %v262 = vld [vmem:[%s0 + $0x28] sm:$0xf]
    %v263 = vld [vmem:[%s0 + $0x2c] sm:$0xf]
    %v264 = vld [vmem:[%s0 + $0x30] sm:$0xf]
    %v265 = vld [vmem:[%s0 + $0x34] sm:$0xf]
    %v266 = vld [vmem:[%s0 + $0x38] sm:$0xf]
    %v267 = vld [vmem:[%s0 + $0x3c] sm:$0xf]
    %v268 = vld [vmem:[%s0 + $0x40] sm:$0xf]
    %v269 = vld [vmem:[%s0 + $0x44] sm:$0xf]
    %v270 = vld [vmem:[%s0 + $0x48] sm:$0xf]
    %v271 = vld [vmem:[%s0 + $0x4c] sm:$0xf]
    %v272 = vld [vmem:[%s0 + $0x50] sm:$0xf]
    %v273 = vld [vmem:[%s0 + $0x54] sm:$0xf]
    %v274 = vld [vmem:[%s0 + $0x58] sm:$0xf]
    %v275 = vld [vmem:[%s0 + $0x5c] sm:$0xf]
    %v276 = vld [vmem:[%s0 + $0x60] sm:$0xf]
    %v277 = vld [vmem:[%s0 + $0x64] sm:$0xf]
    %v278 = vld [vmem:[%s0 + $0x68] sm:$0xf]
    %v279 = vld [vmem:[%s0 + $0x6c] sm:$0xf]
    %v280 = vld [vmem:[%s0 + $0x70] sm:$0xf]
    %v281 = vld [vmem:[%s0 + $0x74] sm:$0xf]
    %v282 = vld [vmem:[%s0 + $0x78] sm:$0xf]
    %v283 = vld [vmem:[%s0 + $0x7c] sm:$0xf]
    %v284 = vld [vmem:[%s0 + $0x80] sm:$0xf]
    %v285 = vld [vmem:[%s0 + $0x84] sm:$0xf]
    %v286 = vld [vmem:[%s0 + $0x88] sm:$0xf]
    %v287 = vld [vmem:[%s0 + $0x8c] sm:$0xf]
    %v288 = vld [vmem:[%s0 + $0x90] sm:$0xf]
    %v289 = vld [vmem:[%s0 + $0x94] sm:$0xf]
    %v290 = vld [vmem:[%s0 + $0x98] sm:$0xf]
    %v291 = vld [vmem:[%s0 + $0x9c] sm:$0xf]
    %v292 = vld [vmem:[%s0 + $0xa0] sm:$0xf]
    %v293 = vld [vmem:[%s0 + $0xa4] sm:$0xf]
    %v294 = vld [vmem:[%s0 + $0xa8] sm:$0xf]
    %v295 = vld [vmem:[%s0 + $0xac] sm:$0xf]
    %v296 = vld [vmem:[%s0 + $0xb0] sm:$0xf]
    %v297 = vld [vmem:[%s0 + $0xb4] sm:$0xf]
    %v298 = vld [vmem:[%s0 + $0xb8] sm:$0xf]
    %v299 = vld [vmem:[%s0 + $0xbc] sm:$0xf]
    %v300 = vld [vmem:[%s0 + $0xc0] sm:$0xf]
    %v301 = vld [vmem:[%s0 + $0xc4] sm:$0xf]
    %v302 = vld [vmem:[%s0 + $0xc8] sm:$0xf]
    %v303 = vld [vmem:[%s0 + $0xcc] sm:$0xf]
    %v304 = vld [vmem:[%s0 + $0xd0] sm:$0xf]
    %v305 = vld [vmem:[%s0 + $0xd4] sm:$0xf]
    %v306 = vld [vmem:[%s0 + $0xd8] sm:$0xf]
    %v307 = vld [vmem:[%s0 + $0xdc] sm:$0xf]
    %v308 = vld [vmem:[%s0 + $0xe0] sm:$0xf]
    %v309 = vld [vmem:[%s0 + $0xe4] sm:$0xf]
    %v310 = vld [vmem:[%s0 + $0xe8] sm:$0xf]
    %v311 = vld [vmem:[%s0 + $0xec] sm:$0xf]
    %v312 = vld [vmem:[%s0 + $0xf0] sm:$0xf]
    %v313 = vld [vmem:[%s0 + $0xf4] sm:$0xf]
    %v314 = vld [vmem:[%s0 + $0xf8] sm:$0xf]
    %v315 = vld [vmem:[%s0 + $0xfc] sm:$0xf]
    %vm316 = vsmask.f32 4368
    %vm317 = vmor %vm32, %vm316
    %v319 = vshrl.u32 %v252, 16
    %v321 = vrot.slane %v319, 7
    %v322 = vshll.u32 %v252, 16
    %v324 = vor.u32 %v321, %v322
    %v325 = vrot.slane %v321, 4
    %v327 = vshrl.u32 %v253, 16
    %v329 = vrot.slane %v327, 7
    %v330 = vshll.u32 %v253, 16
    %v332 = vor.u32 %v329, %v330
    %v333 = vsel %vm317, %v325, %v332
    %v334 = vrot.slane %v329, 4
    %v336 = vshrl.u32 %v254, 16
    %v338 = vrot.slane %v336, 7
    %v339 = vshll.u32 %v254, 16
    %v341 = vor.u32 %v338, %v339
    %v342 = vrot.slane %v338, 4
    %v344 = vshrl.u32 %v255, 16
    %v346 = vrot.slane %v344, 7
    %v347 = vshll.u32 %v255, 16
    %v349 = vor.u32 %v346, %v347
    %v350 = vsel %vm317, %v342, %v349
    %v351 = vrot.slane %v346, 4
    %v353 = vshrl.u32 %v256, 16
    %v355 = vrot.slane %v353, 7
    %v356 = vshll.u32 %v256, 16
    %v358 = vor.u32 %v355, %v356
    %v359 = vrot.slane %v355, 4
    %v361 = vshrl.u32 %v257, 16
    %v363 = vrot.slane %v361, 7
    %v364 = vshll.u32 %v257, 16
    %v366 = vor.u32 %v363, %v364
    %v367 = vsel %vm317, %v359, %v366
    %v368 = vrot.slane %v363, 4
    %v370 = vshrl.u32 %v258, 16
    %v372 = vrot.slane %v370, 7
    %v373 = vshll.u32 %v258, 16
    %v375 = vor.u32 %v372, %v373
    %v376 = vrot.slane %v372, 4
    %v378 = vshrl.u32 %v259, 16
    %v380 = vrot.slane %v378, 7
    %v381 = vshll.u32 %v259, 16
    %v383 = vor.u32 %v380, %v381
    %v384 = vsel %vm317, %v376, %v383
    %v385 = vrot.slane %v380, 4
    %v387 = vshrl.u32 %v260, 16
    %v389 = vrot.slane %v387, 7
    %v390 = vshll.u32 %v260, 16
    %v392 = vor.u32 %v389, %v390
    %v393 = vrot.slane %v389, 4
    %v395 = vshrl.u32 %v261, 16
    %v397 = vrot.slane %v395, 7
    %v398 = vshll.u32 %v261, 16
    %v400 = vor.u32 %v397, %v398
    %v401 = vsel %vm317, %v393, %v400
    %v402 = vrot.slane %v397, 4
    %v404 = vshrl.u32 %v262, 16
    %v406 = vrot.slane %v404, 7
    %v407 = vshll.u32 %v262, 16
    %v409 = vor.u32 %v406, %v407
    %v410 = vrot.slane %v406, 4
    %v412 = vshrl.u32 %v263, 16
    %v414 = vrot.slane %v412, 7
    %v415 = vshll.u32 %v263, 16
    %v417 = vor.u32 %v414, %v415
    %v418 = vsel %vm317, %v410, %v417
    %v419 = vrot.slane %v414, 4
    %v421 = vshrl.u32 %v264, 16
    %v423 = vrot.slane %v421, 7
    %v424 = vshll.u32 %v264, 16
    %v426 = vor.u32 %v423, %v424
    %v427 = vrot.slane %v423, 4
    %v429 = vshrl.u32 %v265, 16
    %v431 = vrot.slane %v429, 7
    %v432 = vshll.u32 %v265, 16
    %v434 = vor.u32 %v431, %v432
    %v435 = vsel %vm317, %v427, %v434
    %v436 = vrot.slane %v431, 4
    %v438 = vshrl.u32 %v266, 16
    %v440 = vrot.slane %v438, 7
    %v441 = vshll.u32 %v266, 16
    %v443 = vor.u32 %v440, %v441
    %v444 = vrot.slane %v440, 4
    %v446 = vshrl.u32 %v267, 16
    %v448 = vrot.slane %v446, 7
    %v449 = vshll.u32 %v267, 16
    %v451 = vor.u32 %v448, %v449
    %v452 = vsel %vm317, %v444, %v451
    %v453 = vrot.slane %v448, 4
    %v455 = vshrl.u32 %v268, 16
    %v457 = vrot.slane %v455, 7
    %v458 = vshll.u32 %v268, 16
    %v460 = vor.u32 %v457, %v458
    %v461 = vrot.slane %v457, 4
    %v463 = vshrl.u32 %v269, 16
    %v465 = vrot.slane %v463, 7
    %v466 = vshll.u32 %v269, 16
    %v468 = vor.u32 %v465, %v466
    %v469 = vsel %vm317, %v461, %v468
    %v470 = vrot.slane %v465, 4
    %v472 = vshrl.u32 %v270, 16
    %v474 = vrot.slane %v472, 7
    %v475 = vshll.u32 %v270, 16
    %v477 = vor.u32 %v474, %v475
    %v478 = vrot.slane %v474, 4
    %v480 = vshrl.u32 %v271, 16
    %v482 = vrot.slane %v480, 7
    %v483 = vshll.u32 %v271, 16
    %v485 = vor.u32 %v482, %v483
    %v486 = vsel %vm317, %v478, %v485
    %v487 = vrot.slane %v482, 4
    %v489 = vshrl.u32 %v272, 16
    %v491 = vrot.slane %v489, 7
    %v492 = vshll.u32 %v272, 16
    %v494 = vor.u32 %v491, %v492
    %v495 = vrot.slane %v491, 4
    %v497 = vshrl.u32 %v273, 16
    %v499 = vrot.slane %v497, 7
    %v500 = vshll.u32 %v273, 16
    %v502 = vor.u32 %v499, %v500
    %v503 = vsel %vm317, %v495, %v502
    %v504 = vrot.slane %v499, 4
    %v506 = vshrl.u32 %v274, 16
    %v508 = vrot.slane %v506, 7
    %v509 = vshll.u32 %v274, 16
    %v511 = vor.u32 %v508, %v509
    %v512 = vrot.slane %v508, 4
    %v514 = vshrl.u32 %v275, 16
    %v516 = vrot.slane %v514, 7
    %v517 = vshll.u32 %v275, 16
    %v519 = vor.u32 %v516, %v517
    %v520 = vsel %vm317, %v512, %v519
    %v521 = vrot.slane %v516, 4
    %v523 = vshrl.u32 %v276, 16
    %v525 = vrot.slane %v523, 7
    %v526 = vshll.u32 %v276, 16
    %v528 = vor.u32 %v525, %v526
    %v529 = vrot.slane %v525, 4
    %v531 = vshrl.u32 %v277, 16
    %v533 = vrot.slane %v531, 7
    %v534 = vshll.u32 %v277, 16
    %v536 = vor.u32 %v533, %v534
    %v537 = vsel %vm317, %v529, %v536
    %v538 = vrot.slane %v533, 4
    %v540 = vshrl.u32 %v278, 16
    %v542 = vrot.slane %v540, 7
    %v543 = vshll.u32 %v278, 16
    %v545 = vor.u32 %v542, %v543
    %v546 = vrot.slane %v542, 4
    %v548 = vshrl.u32 %v279, 16
    %v550 = vrot.slane %v548, 7
    %v551 = vshll.u32 %v279, 16
    %v553 = vor.u32 %v550, %v551
    %v554 = vsel %vm317, %v546, %v553
    %v555 = vrot.slane %v550, 4
    %v557 = vshrl.u32 %v280, 16
    %v559 = vrot.slane %v557, 7
    %v560 = vshll.u32 %v280, 16
    %v562 = vor.u32 %v559, %v560
    %v563 = vrot.slane %v559, 4
    %v565 = vshrl.u32 %v281, 16
    %v567 = vrot.slane %v565, 7
    %v568 = vshll.u32 %v281, 16
    %v570 = vor.u32 %v567, %v568
    %v571 = vsel %vm317, %v563, %v570
    %v572 = vrot.slane %v567, 4
    %v574 = vshrl.u32 %v282, 16
    %v576 = vrot.slane %v574, 7
    %v577 = vshll.u32 %v282, 16
    %v579 = vor.u32 %v576, %v577
    %v580 = vrot.slane %v576, 4
    %v582 = vshrl.u32 %v283, 16
    %v584 = vrot.slane %v582, 7
    %v585 = vshll.u32 %v283, 16
    %v587 = vor.u32 %v584, %v585
    %v588 = vsel %vm317, %v580, %v587
    %v589 = vrot.slane %v584, 4
    %v591 = vshrl.u32 %v284, 16
    %v593 = vrot.slane %v591, 7
    %v594 = vshll.u32 %v284, 16
    %v596 = vor.u32 %v593, %v594
    %v597 = vrot.slane %v593, 4
    %v599 = vshrl.u32 %v285, 16
    %v601 = vrot.slane %v599, 7
    %v602 = vshll.u32 %v285, 16
    %v604 = vor.u32 %v601, %v602
    %v605 = vsel %vm317, %v597, %v604
    %v606 = vrot.slane %v601, 4
    %v608 = vshrl.u32 %v286, 16
    %v610 = vrot.slane %v608, 7
    %v611 = vshll.u32 %v286, 16
    %v613 = vor.u32 %v610, %v611
    %v614 = vrot.slane %v610, 4
    %v616 = vshrl.u32 %v287, 16
    %v618 = vrot.slane %v616, 7
    %v619 = vshll.u32 %v287, 16
    %v621 = vor.u32 %v618, %v619
    %v622 = vsel %vm317, %v614, %v621
    %v623 = vrot.slane %v618, 4
    %v625 = vshrl.u32 %v288, 16
    %v627 = vrot.slane %v625, 7
    %v628 = vshll.u32 %v288, 16
    %v630 = vor.u32 %v627, %v628
    %v631 = vrot.slane %v627, 4
    %v633 = vshrl.u32 %v289, 16
    %v635 = vrot.slane %v633, 7
    %v636 = vshll.u32 %v289, 16
    %v638 = vor.u32 %v635, %v636
    %v639 = vsel %vm317, %v631, %v638
    %v640 = vrot.slane %v635, 4
    %v642 = vshrl.u32 %v290, 16
    %v644 = vrot.slane %v642, 7
    %v645 = vshll.u32 %v290, 16
    %v647 = vor.u32 %v644, %v645
    %v648 = vrot.slane %v644, 4
    %v650 = vshrl.u32 %v291, 16
    %v652 = vrot.slane %v650, 7
    %v653 = vshll.u32 %v291, 16
    %v655 = vor.u32 %v652, %v653
    %v656 = vsel %vm317, %v648, %v655
    %v657 = vrot.slane %v652, 4
    %v659 = vshrl.u32 %v292, 16
    %v661 = vrot.slane %v659, 7
    %v662 = vshll.u32 %v292, 16
    %v664 = vor.u32 %v661, %v662
    %v665 = vrot.slane %v661, 4
    %v667 = vshrl.u32 %v293, 16
    %v669 = vrot.slane %v667, 7
    %v670 = vshll.u32 %v293, 16
    %v672 = vor.u32 %v669, %v670
    %v673 = vsel %vm317, %v665, %v672
    %v674 = vrot.slane %v669, 4
    %v676 = vshrl.u32 %v294, 16
    %v678 = vrot.slane %v676, 7
    %v679 = vshll.u32 %v294, 16
    %v681 = vor.u32 %v678, %v679
    %v682 = vrot.slane %v678, 4
    %v684 = vshrl.u32 %v295, 16
    %v686 = vrot.slane %v684, 7
    %v687 = vshll.u32 %v295, 16
    %v689 = vor.u32 %v686, %v687
    %v690 = vsel %vm317, %v682, %v689
    %v691 = vrot.slane %v686, 4
    %v693 = vshrl.u32 %v296, 16
    %v695 = vrot.slane %v693, 7
    %v696 = vshll.u32 %v296, 16
    %v698 = vor.u32 %v695, %v696
    %v699 = vrot.slane %v695, 4
    %v701 = vshrl.u32 %v297, 16
    %v703 = vrot.slane %v701, 7
    %v704 = vshll.u32 %v297, 16
    %v706 = vor.u32 %v703, %v704
    %v707 = vsel %vm317, %v699, %v706
    %v708 = vrot.slane %v703, 4
    %v710 = vshrl.u32 %v298, 16
    %v712 = vrot.slane %v710, 7
    %v713 = vshll.u32 %v298, 16
    %v715 = vor.u32 %v712, %v713
    %v716 = vrot.slane %v712, 4
    %v718 = vshrl.u32 %v299, 16
    %v720 = vrot.slane %v718, 7
    %v721 = vshll.u32 %v299, 16
    %v723 = vor.u32 %v720, %v721
    %v724 = vsel %vm317, %v716, %v723
    %v725 = vrot.slane %v720, 4
    %v727 = vshrl.u32 %v300, 16
    %v729 = vrot.slane %v727, 7
    %v730 = vshll.u32 %v300, 16
    %v732 = vor.u32 %v729, %v730
    %v733 = vrot.slane %v729, 4
    %v735 = vshrl.u32 %v301, 16
    %v737 = vrot.slane %v735, 7
    %v738 = vshll.u32 %v301, 16
    %v740 = vor.u32 %v737, %v738
    %v741 = vsel %vm317, %v733, %v740
    %v742 = vrot.slane %v737, 4
    %v744 = vshrl.u32 %v302, 16
    %v746 = vrot.slane %v744, 7
    %v747 = vshll.u32 %v302, 16
    %v749 = vor.u32 %v746, %v747
    %v750 = vrot.slane %v746, 4
    %v752 = vshrl.u32 %v303, 16
    %v754 = vrot.slane %v752, 7
    %v755 = vshll.u32 %v303, 16
    %v757 = vor.u32 %v754, %v755
    %v758 = vsel %vm317, %v750, %v757
    %v759 = vrot.slane %v754, 4
    %v761 = vshrl.u32 %v304, 16
    %v763 = vrot.slane %v761, 7
    %v764 = vshll.u32 %v304, 16
    %v766 = vor.u32 %v763, %v764
    %v767 = vrot.slane %v763, 4
    %v769 = vshrl.u32 %v305, 16
    %v771 = vrot.slane %v769, 7
    %v772 = vshll.u32 %v305, 16
    %v774 = vor.u32 %v771, %v772
    %v775 = vsel %vm317, %v767, %v774
    %v776 = vrot.slane %v771, 4
    %v778 = vshrl.u32 %v306, 16
    %v780 = vrot.slane %v778, 7
    %v781 = vshll.u32 %v306, 16
    %v783 = vor.u32 %v780, %v781
    %v784 = vrot.slane %v780, 4
    %v786 = vshrl.u32 %v307, 16
    %v788 = vrot.slane %v786, 7
    %v789 = vshll.u32 %v307, 16
    %v791 = vor.u32 %v788, %v789
    %v792 = vsel %vm317, %v784, %v791
    %v793 = vrot.slane %v788, 4
    %v795 = vshrl.u32 %v308, 16
    %v797 = vrot.slane %v795, 7
    %v798 = vshll.u32 %v308, 16
    %v800 = vor.u32 %v797, %v798
    %v801 = vrot.slane %v797, 4
    %v803 = vshrl.u32 %v309, 16
    %v805 = vrot.slane %v803, 7
    %v806 = vshll.u32 %v309, 16
    %v808 = vor.u32 %v805, %v806
    %v809 = vsel %vm317, %v801, %v808
    %v810 = vrot.slane %v805, 4
    %v812 = vshrl.u32 %v310, 16
    %v814 = vrot.slane %v812, 7
    %v815 = vshll.u32 %v310, 16
    %v817 = vor.u32 %v814, %v815
    %v818 = vrot.slane %v814, 4
    %v820 = vshrl.u32 %v311, 16
    %v822 = vrot.slane %v820, 7
    %v823 = vshll.u32 %v311, 16
    %v825 = vor.u32 %v822, %v823
    %v826 = vsel %vm317, %v818, %v825
    %v827 = vrot.slane %v822, 4
    %v829 = vshrl.u32 %v312, 16
    %v831 = vrot.slane %v829, 7
    %v832 = vshll.u32 %v312, 16
    %v834 = vor.u32 %v831, %v832
    %v835 = vrot.slane %v831, 4
    %v837 = vshrl.u32 %v313, 16
    %v839 = vrot.slane %v837, 7
    %v840 = vshll.u32 %v313, 16
    %v842 = vor.u32 %v839, %v840
    %v843 = vsel %vm317, %v835, %v842
    %v844 = vrot.slane %v839, 4
    %v846 = vshrl.u32 %v314, 16
    %v848 = vrot.slane %v846, 7
    %v849 = vshll.u32 %v314, 16
    %v851 = vor.u32 %v848, %v849
    %v852 = vrot.slane %v848, 4
    %v854 = vshrl.u32 %v315, 16
    %v856 = vrot.slane %v854, 7
    %v857 = vshll.u32 %v315, 16
    %v859 = vor.u32 %v856, %v857
    %v860 = vsel %vm317, %v852, %v859
    %v861 = vrot.slane %v856, 4
    %s958 = scalar_lea.vmem [#allocation2], 12
    %vm959 = vcmask 27648
    %vm960 = vmand %vm959, %vm142
    %v961 = vld [vmem:[%s958] sm:$0xf]
    %v962 = vsel %vm960, %v324, %v961
    %963 = vst [vmem:[%s958] sm:$0xf] %v962
    %964 = vst.msk [vmem:[%s958 + $0x4] sm:$0xf] %vm16, %v333
    %v965 = vld [vmem:[%s958 + $0x8] sm:$0x1]
    %v966 = vsel %vm33, %v334, %v965
    %967 = vst [vmem:[%s958 + $0x8] sm:$0x1] %v966
    %v968 = vld [vmem:[%s958 + $0xc] sm:$0xf]
    %v969 = vsel %vm960, %v341, %v968
    %970 = vst [vmem:[%s958 + $0xc] sm:$0xf] %v969
    %971 = vst.msk [vmem:[%s958 + $0x10] sm:$0xf] %vm16, %v350
    %v972 = vld [vmem:[%s958 + $0x14] sm:$0x1]
    %v973 = vsel %vm33, %v351, %v972
    %974 = vst [vmem:[%s958 + $0x14] sm:$0x1] %v973
    %v975 = vld [vmem:[%s958 + $0x18] sm:$0xf]
    %v976 = vsel %vm960, %v358, %v975
    %977 = vst [vmem:[%s958 + $0x18] sm:$0xf] %v976
    %978 = vst.msk [vmem:[%s958 + $0x1c] sm:$0xf] %vm16, %v367
    %v979 = vld [vmem:[%s958 + $0x20] sm:$0x1]
    %v980 = vsel %vm33, %v368, %v979
    %981 = vst [vmem:[%s958 + $0x20] sm:$0x1] %v980
    %v982 = vld [vmem:[%s958 + $0x24] sm:$0xf]
    %v983 = vsel %vm960, %v375, %v982
    %984 = vst [vmem:[%s958 + $0x24] sm:$0xf] %v983
    %985 = vst.msk [vmem:[%s958 + $0x28] sm:$0xf] %vm16, %v384
    %v986 = vld [vmem:[%s958 + $0x2c] sm:$0x1]
    %v987 = vsel %vm33, %v385, %v986
    %988 = vst [vmem:[%s958 + $0x2c] sm:$0x1] %v987
    %v989 = vld [vmem:[%s958 + $0x30] sm:$0xf]
    %v990 = vsel %vm960, %v392, %v989
    %991 = vst [vmem:[%s958 + $0x30] sm:$0xf] %v990
    %992 = vst.msk [vmem:[%s958 + $0x34] sm:$0xf] %vm16, %v401
    %v993 = vld [vmem:[%s958 + $0x38] sm:$0x1]
    %v994 = vsel %vm33, %v402, %v993
    %995 = vst [vmem:[%s958 + $0x38] sm:$0x1] %v994
    %v996 = vld [vmem:[%s958 + $0x3c] sm:$0xf]
    %v997 = vsel %vm960, %v409, %v996
    %998 = vst [vmem:[%s958 + $0x3c] sm:$0xf] %v997
    %999 = vst.msk [vmem:[%s958 + $0x40] sm:$0xf] %vm16, %v418
    %v1000 = vld [vmem:[%s958 + $0x44] sm:$0x1]
    %v1001 = vsel %vm33, %v419, %v1000
    %1002 = vst [vmem:[%s958 + $0x44] sm:$0x1] %v1001
    %v1003 = vld [vmem:[%s958 + $0x48] sm:$0xf]
    %v1004 = vsel %vm960, %v426, %v1003
    %1005 = vst [vmem:[%s958 + $0x48] sm:$0xf] %v1004
    %1006 = vst.msk [vmem:[%s958 + $0x4c] sm:$0xf] %vm16, %v435
    %v1007 = vld [vmem:[%s958 + $0x50] sm:$0x1]
    %v1008 = vsel %vm33, %v436, %v1007
    %1009 = vst [vmem:[%s958 + $0x50] sm:$0x1] %v1008
    %v1010 = vld [vmem:[%s958 + $0x54] sm:$0xf]
    %v1011 = vsel %vm960, %v443, %v1010
    %1012 = vst [vmem:[%s958 + $0x54] sm:$0xf] %v1011
    %1013 = vst.msk [vmem:[%s958 + $0x58] sm:$0xf] %vm16, %v452
    %v1014 = vld [vmem:[%s958 + $0x5c] sm:$0x1]
    %v1015 = vsel %vm33, %v453, %v1014
    %1016 = vst [vmem:[%s958 + $0x5c] sm:$0x1] %v1015
    %v1017 = vld [vmem:[%s958 + $0x60] sm:$0xf]
    %v1018 = vsel %vm960, %v460, %v1017
    %1019 = vst [vmem:[%s958 + $0x60] sm:$0xf] %v1018
    %1020 = vst.msk [vmem:[%s958 + $0x64] sm:$0xf] %vm16, %v469
    %v1021 = vld [vmem:[%s958 + $0x68] sm:$0x1]
    %v1022 = vsel %vm33, %v470, %v1021
    %1023 = vst [vmem:[%s958 + $0x68] sm:$0x1] %v1022
    %v1024 = vld [vmem:[%s958 + $0x6c] sm:$0xf]
    %v1025 = vsel %vm960, %v477, %v1024
    %1026 = vst [vmem:[%s958 + $0x6c] sm:$0xf] %v1025
    %1027 = vst.msk [vmem:[%s958 + $0x70] sm:$0xf] %vm16, %v486
    %v1028 = vld [vmem:[%s958 + $0x74] sm:$0x1]
    %v1029 = vsel %vm33, %v487, %v1028
    %1030 = vst [vmem:[%s958 + $0x74] sm:$0x1] %v1029
    %v1031 = vld [vmem:[%s958 + $0x78] sm:$0xf]
    %v1032 = vsel %vm960, %v494, %v1031
    %1033 = vst [vmem:[%s958 + $0x78] sm:$0xf] %v1032
    %1034 = vst.msk [vmem:[%s958 + $0x7c] sm:$0xf] %vm16, %v503
    %v1035 = vld [vmem:[%s958 + $0x80] sm:$0x1]
    %v1036 = vsel %vm33, %v504, %v1035
    %1037 = vst [vmem:[%s958 + $0x80] sm:$0x1] %v1036
    %v1038 = vld [vmem:[%s958 + $0x84] sm:$0xf]
    %v1039 = vsel %vm960, %v511, %v1038
    %1040 = vst [vmem:[%s958 + $0x84] sm:$0xf] %v1039
    %1041 = vst.msk [vmem:[%s958 + $0x88] sm:$0xf] %vm16, %v520
    %v1042 = vld [vmem:[%s958 + $0x8c] sm:$0x1]
    %v1043 = vsel %vm33, %v521, %v1042
    %1044 = vst [vmem:[%s958 + $0x8c] sm:$0x1] %v1043
    %v1045 = vld [vmem:[%s958 + $0x90] sm:$0xf]
    %v1046 = vsel %vm960, %v528, %v1045
    %1047 = vst [vmem:[%s958 + $0x90] sm:$0xf] %v1046
    %1048 = vst.msk [vmem:[%s958 + $0x94] sm:$0xf] %vm16, %v537
    %v1049 = vld [vmem:[%s958 + $0x98] sm:$0x1]
    %v1050 = vsel %vm33, %v538, %v1049
    %1051 = vst [vmem:[%s958 + $0x98] sm:$0x1] %v1050
    %v1052 = vld [vmem:[%s958 + $0x9c] sm:$0xf]
    %v1053 = vsel %vm960, %v545, %v1052
    %1054 = vst [vmem:[%s958 + $0x9c] sm:$0xf] %v1053
    %1055 = vst.msk [vmem:[%s958 + $0xa0] sm:$0xf] %vm16, %v554
    %v1056 = vld [vmem:[%s958 + $0xa4] sm:$0x1]
    %v1057 = vsel %vm33, %v555, %v1056
    %1058 = vst [vmem:[%s958 + $0xa4] sm:$0x1] %v1057
    %v1059 = vld [vmem:[%s958 + $0xa8] sm:$0xf]
    %v1060 = vsel %vm960, %v562, %v1059
    %1061 = vst [vmem:[%s958 + $0xa8] sm:$0xf] %v1060
    %1062 = vst.msk [vmem:[%s958 + $0xac] sm:$0xf] %vm16, %v571
    %v1063 = vld [vmem:[%s958 + $0xb0] sm:$0x1]
    %v1064 = vsel %vm33, %v572, %v1063
    %1065 = vst [vmem:[%s958 + $0xb0] sm:$0x1] %v1064
    %v1066 = vld [vmem:[%s958 + $0xb4] sm:$0xf]
    %v1067 = vsel %vm960, %v579, %v1066
    %1068 = vst [vmem:[%s958 + $0xb4] sm:$0xf] %v1067
    %1069 = vst.msk [vmem:[%s958 + $0xb8] sm:$0xf] %vm16, %v588
    %v1070 = vld [vmem:[%s958 + $0xbc] sm:$0x1]
    %v1071 = vsel %vm33, %v589, %v1070
    %1072 = vst [vmem:[%s958 + $0xbc] sm:$0x1] %v1071
    %v1073 = vld [vmem:[%s958 + $0xd8] sm:$0xf]
    %v1074 = vsel %vm960, %v596, %v1073
    %1075 = vst [vmem:[%s958 + $0xd8] sm:$0xf] %v1074
    %1076 = vst.msk [vmem:[%s958 + $0xdc] sm:$0xf] %vm16, %v605
    %v1077 = vld [vmem:[%s958 + $0xe0] sm:$0x1]
    %v1078 = vsel %vm33, %v606, %v1077
    %1079 = vst [vmem:[%s958 + $0xe0] sm:$0x1] %v1078
    %v1080 = vld [vmem:[%s958 + $0xe4] sm:$0xf]
    %v1081 = vsel %vm960, %v613, %v1080
    %1082 = vst [vmem:[%s958 + $0xe4] sm:$0xf] %v1081
    %1083 = vst.msk [vmem:[%s958 + $0xe8] sm:$0xf] %vm16, %v622
    %v1084 = vld [vmem:[%s958 + $0xec] sm:$0x1]
    %v1085 = vsel %vm33, %v623, %v1084
    %1086 = vst [vmem:[%s958 + $0xec] sm:$0x1] %v1085
    %v1087 = vld [vmem:[%s958 + $0xf0] sm:$0xf]
    %v1088 = vsel %vm960, %v630, %v1087
    %1089 = vst [vmem:[%s958 + $0xf0] sm:$0xf] %v1088
    %1090 = vst.msk [vmem:[%s958 + $0xf4] sm:$0xf] %vm16, %v639
    %v1091 = vld [vmem:[%s958 + $0xf8] sm:$0x1]
    %v1092 = vsel %vm33, %v640, %v1091
    %1093 = vst [vmem:[%s958 + $0xf8] sm:$0x1] %v1092
    %v1094 = vld [vmem:[%s958 + $0xfc] sm:$0xf]
    %v1095 = vsel %vm960, %v647, %v1094
    %1096 = vst [vmem:[%s958 + $0xfc] sm:$0xf] %v1095
    %1097 = vst.msk [vmem:[%s958 + $0x100] sm:$0xf] %vm16, %v656
    %v1098 = vld [vmem:[%s958 + $0x104] sm:$0x1]
    %v1099 = vsel %vm33, %v657, %v1098
    %1100 = vst [vmem:[%s958 + $0x104] sm:$0x1] %v1099
    %v1101 = vld [vmem:[%s958 + $0x108] sm:$0xf]
    %v1102 = vsel %vm960, %v664, %v1101
    %1103 = vst [vmem:[%s958 + $0x108] sm:$0xf] %v1102
    %1104 = vst.msk [vmem:[%s958 + $0x10c] sm:$0xf] %vm16, %v673
    %v1105 = vld [vmem:[%s958 + $0x110] sm:$0x1]
    %v1106 = vsel %vm33, %v674, %v1105
    %1107 = vst [vmem:[%s958 + $0x110] sm:$0x1] %v1106
    %v1108 = vld [vmem:[%s958 + $0x114] sm:$0xf]
    %v1109 = vsel %vm960, %v681, %v1108
    %1110 = vst [vmem:[%s958 + $0x114] sm:$0xf] %v1109
    %1111 = vst.msk [vmem:[%s958 + $0x118] sm:$0xf] %vm16, %v690
    %v1112 = vld [vmem:[%s958 + $0x11c] sm:$0x1]
    %v1113 = vsel %vm33, %v691, %v1112
    %1114 = vst [vmem:[%s958 + $0x11c] sm:$0x1] %v1113
    %v1115 = vld [vmem:[%s958 + $0x120] sm:$0xf]
    %v1116 = vsel %vm960, %v698, %v1115
    %1117 = vst [vmem:[%s958 + $0x120] sm:$0xf] %v1116
    %1118 = vst.msk [vmem:[%s958 + $0x124] sm:$0xf] %vm16, %v707
    %v1119 = vld [vmem:[%s958 + $0x128] sm:$0x1]
    %v1120 = vsel %vm33, %v708, %v1119
    %1121 = vst [vmem:[%s958 + $0x128] sm:$0x1] %v1120
    %v1122 = vld [vmem:[%s958 + $0x12c] sm:$0xf]
    %v1123 = vsel %vm960, %v715, %v1122
    %1124 = vst [vmem:[%s958 + $0x12c] sm:$0xf] %v1123
    %1125 = vst.msk [vmem:[%s958 + $0x130] sm:$0xf] %vm16, %v724
    %v1126 = vld [vmem:[%s958 + $0x134] sm:$0x1]
    %v1127 = vsel %vm33, %v725, %v1126
    %1128 = vst [vmem:[%s958 + $0x134] sm:$0x1] %v1127
    %v1129 = vld [vmem:[%s958 + $0x138] sm:$0xf]
    %v1130 = vsel %vm960, %v732, %v1129
    %1131 = vst [vmem:[%s958 + $0x138] sm:$0xf] %v1130
    %1132 = vst.msk [vmem:[%s958 + $0x13c] sm:$0xf] %vm16, %v741
    %v1133 = vld [vmem:[%s958 + $0x140] sm:$0x1]
    %v1134 = vsel %vm33, %v742, %v1133
    %1135 = vst [vmem:[%s958 + $0x140] sm:$0x1] %v1134
    %v1136 = vld [vmem:[%s958 + $0x144] sm:$0xf]
    %v1137 = vsel %vm960, %v749, %v1136
    %1138 = vst [vmem:[%s958 + $0x144] sm:$0xf] %v1137
    %1139 = vst.msk [vmem:[%s958 + $0x148] sm:$0xf] %vm16, %v758
    %v1140 = vld [vmem:[%s958 + $0x14c] sm:$0x1]
    %v1141 = vsel %vm33, %v759, %v1140
    %1142 = vst [vmem:[%s958 + $0x14c] sm:$0x1] %v1141
    %v1143 = vld [vmem:[%s958 + $0x150] sm:$0xf]
    %v1144 = vsel %vm960, %v766, %v1143
    %1145 = vst [vmem:[%s958 + $0x150] sm:$0xf] %v1144
    %1146 = vst.msk [vmem:[%s958 + $0x154] sm:$0xf] %vm16, %v775
    %v1147 = vld [vmem:[%s958 + $0x158] sm:$0x1]
    %v1148 = vsel %vm33, %v776, %v1147
    %1149 = vst [vmem:[%s958 + $0x158] sm:$0x1] %v1148
    %v1150 = vld [vmem:[%s958 + $0x15c] sm:$0xf]
    %v1151 = vsel %vm960, %v783, %v1150
    %1152 = vst [vmem:[%s958 + $0x15c] sm:$0xf] %v1151
    %1153 = vst.msk [vmem:[%s958 + $0x160] sm:$0xf] %vm16, %v792
    %v1154 = vld [vmem:[%s958 + $0x164] sm:$0x1]
    %v1155 = vsel %vm33, %v793, %v1154
    %1156 = vst [vmem:[%s958 + $0x164] sm:$0x1] %v1155
    %v1157 = vld [vmem:[%s958 + $0x168] sm:$0xf]
    %v1158 = vsel %vm960, %v800, %v1157
    %1159 = vst [vmem:[%s958 + $0x168] sm:$0xf] %v1158
    %1160 = vst.msk [vmem:[%s958 + $0x16c] sm:$0xf] %vm16, %v809
    %v1161 = vld [vmem:[%s958 + $0x170] sm:$0x1]
    %v1162 = vsel %vm33, %v810, %v1161
    %1163 = vst [vmem:[%s958 + $0x170] sm:$0x1] %v1162
    %v1164 = vld [vmem:[%s958 + $0x174] sm:$0xf]
    %v1165 = vsel %vm960, %v817, %v1164
    %1166 = vst [vmem:[%s958 + $0x174] sm:$0xf] %v1165
    %1167 = vst.msk [vmem:[%s958 + $0x178] sm:$0xf] %vm16, %v826
    %v1168 = vld [vmem:[%s958 + $0x17c] sm:$0x1]
    %v1169 = vsel %vm33, %v827, %v1168
    %1170 = vst [vmem:[%s958 + $0x17c] sm:$0x1] %v1169
    %v1171 = vld [vmem:[%s958 + $0x180] sm:$0xf]
    %v1172 = vsel %vm960, %v834, %v1171
    %1173 = vst [vmem:[%s958 + $0x180] sm:$0xf] %v1172
    %1174 = vst.msk [vmem:[%s958 + $0x184] sm:$0xf] %vm16, %v843
    %v1175 = vld [vmem:[%s958 + $0x188] sm:$0x1]
    %v1176 = vsel %vm33, %v844, %v1175
    %1177 = vst [vmem:[%s958 + $0x188] sm:$0x1] %v1176
    %v1178 = vld [vmem:[%s958 + $0x18c] sm:$0xf]
    %v1179 = vsel %vm960, %v851, %v1178
    %1180 = vst [vmem:[%s958 + $0x18c] sm:$0xf] %v1179
    %1181 = vst.msk [vmem:[%s958 + $0x190] sm:$0xf] %vm16, %v860
    %v1182 = vld [vmem:[%s958 + $0x194] sm:$0x1]
    %v1183 = vsel %vm33, %v861, %v1182
    %1184 = vst [vmem:[%s958 + $0x194] sm:$0x1] %v1183
    %v1185 = vld [vmem:[#allocation2] sm:$0xf]
    %v1186 = vld [vmem:[#allocation2 + $0x4] sm:$0xf]
    %v1187 = vld [vmem:[#allocation2 + $0xc] sm:$0xf]
    %v1188 = vld [vmem:[#allocation2 + $0x10] sm:$0xf]
    %v1189 = vld [vmem:[#allocation2 + $0x18] sm:$0xf]
    %v1190 = vld [vmem:[#allocation2 + $0x1c] sm:$0xf]
    %v1191 = vld [vmem:[#allocation2 + $0x24] sm:$0xf]
    %v1192 = vld [vmem:[#allocation2 + $0x28] sm:$0xf]
    %v1193 = vld [vmem:[#allocation2 + $0x30] sm:$0xf]
    %v1194 = vld [vmem:[#allocation2 + $0x34] sm:$0xf]
    %v1195 = vld [vmem:[#allocation2 + $0x3c] sm:$0xf]
    %v1196 = vld [vmem:[#allocation2 + $0x40] sm:$0xf]
    %v1197 = vld [vmem:[#allocation2 + $0x48] sm:$0xf]
    %v1198 = vld [vmem:[#allocation2 + $0x4c] sm:$0xf]
    %v1199 = vld [vmem:[#allocation2 + $0x54] sm:$0xf]
    %v1200 = vld [vmem:[#allocation2 + $0x58] sm:$0xf]
    %v1201 = vld [vmem:[#allocation2 + $0x60] sm:$0xf]
    %v1202 = vld [vmem:[#allocation2 + $0x64] sm:$0xf]
    %v1203 = vld [vmem:[#allocation2 + $0x6c] sm:$0xf]
    %v1204 = vld [vmem:[#allocation2 + $0x70] sm:$0xf]
    %v1205 = vld [vmem:[#allocation2 + $0x78] sm:$0xf]
    %v1206 = vld [vmem:[#allocation2 + $0x7c] sm:$0xf]
    %v1207 = vld [vmem:[#allocation2 + $0x84] sm:$0xf]
    %v1208 = vld [vmem:[#allocation2 + $0x88] sm:$0xf]
    %v1209 = vld [vmem:[#allocation2 + $0x90] sm:$0xf]
    %v1210 = vld [vmem:[#allocation2 + $0x94] sm:$0xf]
    %v1211 = vld [vmem:[#allocation2 + $0x9c] sm:$0xf]
    %v1212 = vld [vmem:[#allocation2 + $0xa0] sm:$0xf]
    %v1213 = vld [vmem:[#allocation2 + $0xa8] sm:$0xf]
    %v1214 = vld [vmem:[#allocation2 + $0xac] sm:$0xf]
    %v1215 = vld [vmem:[#allocation2 + $0xb4] sm:$0xf]
    %v1216 = vld [vmem:[#allocation2 + $0xb8] sm:$0xf]
    %v1217 = vld [vmem:[#allocation2 + $0xd8] sm:$0xf]
    %v1218 = vld [vmem:[#allocation2 + $0xdc] sm:$0xf]
    %v1219 = vld [vmem:[#allocation2 + $0xe4] sm:$0xf]
    %v1220 = vld [vmem:[#allocation2 + $0xe8] sm:$0xf]
    %v1221 = vld [vmem:[#allocation2 + $0xf0] sm:$0xf]
    %v1222 = vld [vmem:[#allocation2 + $0xf4] sm:$0xf]
    %v1223 = vld [vmem:[#allocation2 + $0xfc] sm:$0xf]
    %v1224 = vld [vmem:[#allocation2 + $0x100] sm:$0xf]
    %v1225 = vld [vmem:[#allocation2 + $0x108] sm:$0xf]
    %v1226 = vld [vmem:[#allocation2 + $0x10c] sm:$0xf]
    %v1227 = vld [vmem:[#allocation2 + $0x114] sm:$0xf]
    %v1228 = vld [vmem:[#allocation2 + $0x118] sm:$0xf]
    %v1229 = vld [vmem:[#allocation2 + $0x120] sm:$0xf]
    %v1230 = vld [vmem:[#allocation2 + $0x124] sm:$0xf]
    %v1231 = vld [vmem:[#allocation2 + $0x12c] sm:$0xf]
    %v1232 = vld [vmem:[#allocation2 + $0x130] sm:$0xf]
    %v1233 = vld [vmem:[#allocation2 + $0x138] sm:$0xf]
    %v1234 = vld [vmem:[#allocation2 + $0x13c] sm:$0xf]
    %v1235 = vld [vmem:[#allocation2 + $0x144] sm:$0xf]
    %v1236 = vld [vmem:[#allocation2 + $0x148] sm:$0xf]
    %v1237 = vld [vmem:[#allocation2 + $0x150] sm:$0xf]
    %v1238 = vld [vmem:[#allocation2 + $0x154] sm:$0xf]
    %v1239 = vld [vmem:[#allocation2 + $0x15c] sm:$0xf]
    %v1240 = vld [vmem:[#allocation2 + $0x160] sm:$0xf]
    %v1241 = vld [vmem:[#allocation2 + $0x168] sm:$0xf]
    %v1242 = vld [vmem:[#allocation2 + $0x16c] sm:$0xf]
    %v1243 = vld [vmem:[#allocation2 + $0x174] sm:$0xf]
    %v1244 = vld [vmem:[#allocation2 + $0x178] sm:$0xf]
    %v1245 = vld [vmem:[#allocation2 + $0x180] sm:$0xf]
    %v1246 = vld [vmem:[#allocation2 + $0x184] sm:$0xf]
    %v1247 = vld [vmem:[#allocation2 + $0x18c] sm:$0xf]
    %v1248 = vld [vmem:[#allocation2 + $0x190] sm:$0xf]
    %v1249 = vld [vmem:[#allocation2 + $0x8] sm:$0x1]
    %v1250 = vld [vmem:[#allocation2 + $0x14] sm:$0x1]
    %v1251 = vld [vmem:[#allocation2 + $0x20] sm:$0x1]
    %v1252 = vld [vmem:[#allocation2 + $0x2c] sm:$0x1]
    %v1253 = vld [vmem:[#allocation2 + $0x38] sm:$0x1]
    %v1254 = vld [vmem:[#allocation2 + $0x44] sm:$0x1]
    %v1255 = vld [vmem:[#allocation2 + $0x50] sm:$0x1]
    %v1256 = vld [vmem:[#allocation2 + $0x5c] sm:$0x1]
    %v1257 = vld [vmem:[#allocation2 + $0x68] sm:$0x1]
    %v1258 = vld [vmem:[#allocation2 + $0x74] sm:$0x1]
    %v1259 = vld [vmem:[#allocation2 + $0x80] sm:$0x1]
    %v1260 = vld [vmem:[#allocation2 + $0x8c] sm:$0x1]
    %v1261 = vld [vmem:[#allocation2 + $0x98] sm:$0x1]
    %v1262 = vld [vmem:[#allocation2 + $0xa4] sm:$0x1]
    %v1263 = vld [vmem:[#allocation2 + $0xb0] sm:$0x1]
    %v1264 = vld [vmem:[#allocation2 + $0xbc] sm:$0x1]
    %v1265 = vld [vmem:[#allocation2 + $0xe0] sm:$0x1]
    %v1266 = vld [vmem:[#allocation2 + $0xec] sm:$0x1]
    %v1267 = vld [vmem:[#allocation2 + $0xf8] sm:$0x1]
    %v1268 = vld [vmem:[#allocation2 + $0x104] sm:$0x1]
    %v1269 = vld [vmem:[#allocation2 + $0x110] sm:$0x1]
    %v1270 = vld [vmem:[#allocation2 + $0x11c] sm:$0x1]
    %v1271 = vld [vmem:[#allocation2 + $0x128] sm:$0x1]
    %v1272 = vld [vmem:[#allocation2 + $0x134] sm:$0x1]
    %v1273 = vld [vmem:[#allocation2 + $0x140] sm:$0x1]
    %v1274 = vld [vmem:[#allocation2 + $0x14c] sm:$0x1]
    %v1275 = vld [vmem:[#allocation2 + $0x158] sm:$0x1]
    %v1276 = vld [vmem:[#allocation2 + $0x164] sm:$0x1]
    %v1277 = vld [vmem:[#allocation2 + $0x170] sm:$0x1]
    %v1278 = vld [vmem:[#allocation2 + $0x17c] sm:$0x1]
    %v1279 = vld [vmem:[#allocation2 + $0x188] sm:$0x1]
    %v1280 = vld [vmem:[#allocation2 + $0x194] sm:$0x1]
    %v1281 = vld [vmem:[#allocation2] sm:$0xe]
    %v1282 = vld [vmem:[#allocation2 + $0xc] sm:$0xe]
    %v1283 = vld [vmem:[#allocation2 + $0x18] sm:$0xe]
    %v1284 = vld [vmem:[#allocation2 + $0x24] sm:$0xe]
    %v1285 = vld [vmem:[#allocation2 + $0x30] sm:$0xe]
    %v1286 = vld [vmem:[#allocation2 + $0x3c] sm:$0xe]
    %v1287 = vld [vmem:[#allocation2 + $0x48] sm:$0xe]
    %v1288 = vld [vmem:[#allocation2 + $0x54] sm:$0xe]
    %v1289 = vld [vmem:[#allocation2 + $0x60] sm:$0xe]
    %v1290 = vld [vmem:[#allocation2 + $0x6c] sm:$0xe]
    %v1291 = vld [vmem:[#allocation2 + $0x78] sm:$0xe]
    %v1292 = vld [vmem:[#allocation2 + $0x84] sm:$0xe]
    %v1293 = vld [vmem:[#allocation2 + $0x90] sm:$0xe]
    %v1294 = vld [vmem:[#allocation2 + $0x9c] sm:$0xe]
    %v1295 = vld [vmem:[#allocation2 + $0xa8] sm:$0xe]
    %v1296 = vld [vmem:[#allocation2 + $0xb4] sm:$0xe]
    %v1297 = vld [vmem:[#allocation2 + $0xd8] sm:$0xe]
    %v1298 = vld [vmem:[#allocation2 + $0xe4] sm:$0xe]
    %v1299 = vld [vmem:[#allocation2 + $0xf0] sm:$0xe]
    %v1300 = vld [vmem:[#allocation2 + $0xfc] sm:$0xe]
    %v1301 = vld [vmem:[#allocation2 + $0x108] sm:$0xe]
    %v1302 = vld [vmem:[#allocation2 + $0x114] sm:$0xe]
    %v1303 = vld [vmem:[#allocation2 + $0x120] sm:$0xe]
    %v1304 = vld [vmem:[#allocation2 + $0x12c] sm:$0xe]
    %v1305 = vld [vmem:[#allocation2 + $0x138] sm:$0xe]
    %v1306 = vld [vmem:[#allocation2 + $0x144] sm:$0xe]
    %v1307 = vld [vmem:[#allocation2 + $0x150] sm:$0xe]
    %v1308 = vld [vmem:[#allocation2 + $0x15c] sm:$0xe]
    %v1309 = vld [vmem:[#allocation2 + $0x168] sm:$0xe]
    %v1310 = vld [vmem:[#allocation2 + $0x174] sm:$0xe]
    %v1311 = vld [vmem:[#allocation2 + $0x180] sm:$0xe]
    %v1312 = vld [vmem:[#allocation2 + $0x18c] sm:$0xe]
    %v1313 = vld [vmem:[%s958] sm:$0xf]
    %v1314 = vld [vmem:[%s958 + $0x4] sm:$0xf]
    %v1315 = vld [vmem:[%s958 + $0xc] sm:$0xf]
    %v1316 = vld [vmem:[%s958 + $0x10] sm:$0xf]
    %v1317 = vld [vmem:[%s958 + $0x18] sm:$0xf]
    %v1318 = vld [vmem:[%s958 + $0x1c] sm:$0xf]
    %v1319 = vld [vmem:[%s958 + $0x24] sm:$0xf]
    %v1320 = vld [vmem:[%s958 + $0x28] sm:$0xf]
    %v1321 = vld [vmem:[%s958 + $0x30] sm:$0xf]
    %v1322 = vld [vmem:[%s958 + $0x34] sm:$0xf]
    %v1323 = vld [vmem:[%s958 + $0x3c] sm:$0xf]
    %v1324 = vld [vmem:[%s958 + $0x40] sm:$0xf]
    %v1325 = vld [vmem:[%s958 + $0x48] sm:$0xf]
    %v1326 = vld [vmem:[%s958 + $0x4c] sm:$0xf]
    %v1327 = vld [vmem:[%s958 + $0x54] sm:$0xf]
    %v1328 = vld [vmem:[%s958 + $0x58] sm:$0xf]
    %v1329 = vld [vmem:[%s958 + $0x60] sm:$0xf]
    %v1330 = vld [vmem:[%s958 + $0x64] sm:$0xf]
    %v1331 = vld [vmem:[%s958 + $0x6c] sm:$0xf]
    %v1332 = vld [vmem:[%s958 + $0x70] sm:$0xf]
    %v1333 = vld [vmem:[%s958 + $0x78] sm:$0xf]
    %v1334 = vld [vmem:[%s958 + $0x7c] sm:$0xf]
    %v1335 = vld [vmem:[%s958 + $0x84] sm:$0xf]
    %v1336 = vld [vmem:[%s958 + $0x88] sm:$0xf]
    %v1337 = vld [vmem:[%s958 + $0x90] sm:$0xf]
    %v1338 = vld [vmem:[%s958 + $0x94] sm:$0xf]
    %v1339 = vld [vmem:[%s958 + $0x9c] sm:$0xf]
    %v1340 = vld [vmem:[%s958 + $0xa0] sm:$0xf]
    %v1341 = vld [vmem:[%s958 + $0xa8] sm:$0xf]
    %v1342 = vld [vmem:[%s958 + $0xac] sm:$0xf]
    %v1343 = vld [vmem:[%s958 + $0xb4] sm:$0xf]
    %v1344 = vld [vmem:[%s958 + $0xb8] sm:$0xf]
    %v1345 = vld [vmem:[%s958 + $0xd8] sm:$0xf]
    %v1346 = vld [vmem:[%s958 + $0xdc] sm:$0xf]
    %v1347 = vld [vmem:[%s958 + $0xe4] sm:$0xf]
    %v1348 = vld [vmem:[%s958 + $0xe8] sm:$0xf]
    %v1349 = vld [vmem:[%s958 + $0xf0] sm:$0xf]
    %v1350 = vld [vmem:[%s958 + $0xf4] sm:$0xf]
    %v1351 = vld [vmem:[%s958 + $0xfc] sm:$0xf]
    %v1352 = vld [vmem:[%s958 + $0x100] sm:$0xf]
    %v1353 = vld [vmem:[%s958 + $0x108] sm:$0xf]
    %v1354 = vld [vmem:[%s958 + $0x10c] sm:$0xf]
    %v1355 = vld [vmem:[%s958 + $0x114] sm:$0xf]
    %v1356 = vld [vmem:[%s958 + $0x118] sm:$0xf]
    %v1357 = vld [vmem:[%s958 + $0x120] sm:$0xf]
    %v1358 = vld [vmem:[%s958 + $0x124] sm:$0xf]
    %v1359 = vld [vmem:[%s958 + $0x12c] sm:$0xf]
    %v1360 = vld [vmem:[%s958 + $0x130] sm:$0xf]
    %v1361 = vld [vmem:[%s958 + $0x138] sm:$0xf]
    %v1362 = vld [vmem:[%s958 + $0x13c] sm:$0xf]
    %v1363 = vld [vmem:[%s958 + $0x144] sm:$0xf]
    %v1364 = vld [vmem:[%s958 + $0x148] sm:$0xf]
    %v1365 = vld [vmem:[%s958 + $0x150] sm:$0xf]
    %v1366 = vld [vmem:[%s958 + $0x154] sm:$0xf]
    %v1367 = vld [vmem:[%s958 + $0x15c] sm:$0xf]
    %v1368 = vld [vmem:[%s958 + $0x160] sm:$0xf]
    %v1369 = vld [vmem:[%s958 + $0x168] sm:$0xf]
    %v1370 = vld [vmem:[%s958 + $0x16c] sm:$0xf]
    %v1371 = vld [vmem:[%s958 + $0x174] sm:$0xf]
    %v1372 = vld [vmem:[%s958 + $0x178] sm:$0xf]
    %v1373 = vld [vmem:[%s958 + $0x180] sm:$0xf]
    %v1374 = vld [vmem:[%s958 + $0x184] sm:$0xf]
    %v1375 = vld [vmem:[%s958 + $0x18c] sm:$0xf]
    %v1376 = vld [vmem:[%s958 + $0x190] sm:$0xf]
    %v1377 = vld [vmem:[%s958 + $0x8] sm:$0x1]
    %v1378 = vld [vmem:[%s958 + $0x14] sm:$0x1]
    %v1379 = vld [vmem:[%s958 + $0x20] sm:$0x1]
    %v1380 = vld [vmem:[%s958 + $0x2c] sm:$0x1]
    %v1381 = vld [vmem:[%s958 + $0x38] sm:$0x1]
    %v1382 = vld [vmem:[%s958 + $0x44] sm:$0x1]
    %v1383 = vld [vmem:[%s958 + $0x50] sm:$0x1]
    %v1384 = vld [vmem:[%s958 + $0x5c] sm:$0x1]
    %v1385 = vld [vmem:[%s958 + $0x68] sm:$0x1]
    %v1386 = vld [vmem:[%s958 + $0x74] sm:$0x1]
    %v1387 = vld [vmem:[%s958 + $0x80] sm:$0x1]
    %v1388 = vld [vmem:[%s958 + $0x8c] sm:$0x1]
    %v1389 = vld [vmem:[%s958 + $0x98] sm:$0x1]
    %v1390 = vld [vmem:[%s958 + $0xa4] sm:$0x1]
    %v1391 = vld [vmem:[%s958 + $0xb0] sm:$0x1]
    %v1392 = vld [vmem:[%s958 + $0xbc] sm:$0x1]
    %v1393 = vld [vmem:[%s958 + $0xe0] sm:$0x1]
    %v1394 = vld [vmem:[%s958 + $0xec] sm:$0x1]
    %v1395 = vld [vmem:[%s958 + $0xf8] sm:$0x1]
    %v1396 = vld [vmem:[%s958 + $0x104] sm:$0x1]
    %v1397 = vld [vmem:[%s958 + $0x110] sm:$0x1]
    %v1398 = vld [vmem:[%s958 + $0x11c] sm:$0x1]
    %v1399 = vld [vmem:[%s958 + $0x128] sm:$0x1]
    %v1400 = vld [vmem:[%s958 + $0x134] sm:$0x1]
    %v1401 = vld [vmem:[%s958 + $0x140] sm:$0x1]
    %v1402 = vld [vmem:[%s958 + $0x14c] sm:$0x1]
    %v1403 = vld [vmem:[%s958 + $0x158] sm:$0x1]
    %v1404 = vld [vmem:[%s958 + $0x164] sm:$0x1]
    %v1405 = vld [vmem:[%s958 + $0x170] sm:$0x1]
    %v1406 = vld [vmem:[%s958 + $0x17c] sm:$0x1]
    %v1407 = vld [vmem:[%s958 + $0x188] sm:$0x1]
    %v1408 = vld [vmem:[%s958 + $0x194] sm:$0x1]
    %v1409 = vld [vmem:[%s958] sm:$0xe]
    %v1410 = vld [vmem:[%s958 + $0xc] sm:$0xe]
    %v1411 = vld [vmem:[%s958 + $0x18] sm:$0xe]
    %v1412 = vld [vmem:[%s958 + $0x24] sm:$0xe]
    %v1413 = vld [vmem:[%s958 + $0x30] sm:$0xe]
    %v1414 = vld [vmem:[%s958 + $0x3c] sm:$0xe]
    %v1415 = vld [vmem:[%s958 + $0x48] sm:$0xe]
    %v1416 = vld [vmem:[%s958 + $0x54] sm:$0xe]
    %v1417 = vld [vmem:[%s958 + $0x60] sm:$0xe]
    %v1418 = vld [vmem:[%s958 + $0x6c] sm:$0xe]
    %v1419 = vld [vmem:[%s958 + $0x78] sm:$0xe]
    %v1420 = vld [vmem:[%s958 + $0x84] sm:$0xe]
    %v1421 = vld [vmem:[%s958 + $0x90] sm:$0xe]
    %v1422 = vld [vmem:[%s958 + $0x9c] sm:$0xe]
    %v1423 = vld [vmem:[%s958 + $0xa8] sm:$0xe]
    %v1424 = vld [vmem:[%s958 + $0xb4] sm:$0xe]
    %v1425 = vld [vmem:[%s958 + $0xd8] sm:$0xe]
    %v1426 = vld [vmem:[%s958 + $0xe4] sm:$0xe]
    %v1427 = vld [vmem:[%s958 + $0xf0] sm:$0xe]
    %v1428 = vld [vmem:[%s958 + $0xfc] sm:$0xe]
    %v1429 = vld [vmem:[%s958 + $0x108] sm:$0xe]
    %v1430 = vld [vmem:[%s958 + $0x114] sm:$0xe]
    %v1431 = vld [vmem:[%s958 + $0x120] sm:$0xe]
    %v1432 = vld [vmem:[%s958 + $0x12c] sm:$0xe]
    %v1433 = vld [vmem:[%s958 + $0x138] sm:$0xe]
    %v1434 = vld [vmem:[%s958 + $0x144] sm:$0xe]
    %v1435 = vld [vmem:[%s958 + $0x150] sm:$0xe]
    %v1436 = vld [vmem:[%s958 + $0x15c] sm:$0xe]
    %v1437 = vld [vmem:[%s958 + $0x168] sm:$0xe]
    %v1438 = vld [vmem:[%s958 + $0x174] sm:$0xe]
    %v1439 = vld [vmem:[%s958 + $0x180] sm:$0xe]
    %v1440 = vld [vmem:[%s958 + $0x18c] sm:$0xe]
    %s1441 = scalar_lea.vmem [#allocation2], 24
    %v1442 = vld [vmem:[%s1441] sm:$0xf]
    %v1443 = vld [vmem:[%s1441 + $0x4] sm:$0xf]
    %v1444 = vld [vmem:[%s1441 + $0xc] sm:$0xf]
    %v1445 = vld [vmem:[%s1441 + $0x10] sm:$0xf]
    %v1446 = vld [vmem:[%s1441 + $0x18] sm:$0xf]
    %v1447 = vld [vmem:[%s1441 + $0x1c] sm:$0xf]
    %v1448 = vld [vmem:[%s1441 + $0x24] sm:$0xf]
    %v1449 = vld [vmem:[%s1441 + $0x28] sm:$0xf]
    %v1450 = vld [vmem:[%s1441 + $0x30] sm:$0xf]
    %v1451 = vld [vmem:[%s1441 + $0x34] sm:$0xf]
    %v1452 = vld [vmem:[%s1441 + $0x3c] sm:$0xf]
    %v1453 = vld [vmem:[%s1441 + $0x40] sm:$0xf]
    %v1454 = vld [vmem:[%s1441 + $0x48] sm:$0xf]
    %v1455 = vld [vmem:[%s1441 + $0x4c] sm:$0xf]
    %v1456 = vld [vmem:[%s1441 + $0x54] sm:$0xf]
    %v1457 = vld [vmem:[%s1441 + $0x58] sm:$0xf]
    %v1458 = vld [vmem:[%s1441 + $0x60] sm:$0xf]
    %v1459 = vld [vmem:[%s1441 + $0x64] sm:$0xf]
    %v1460 = vld [vmem:[%s1441 + $0x6c] sm:$0xf]
    %v1461 = vld [vmem:[%s1441 + $0x70] sm:$0xf]
    %v1462 = vld [vmem:[%s1441 + $0x78] sm:$0xf]
    %v1463 = vld [vmem:[%s1441 + $0x7c] sm:$0xf]
    %v1464 = vld [vmem:[%s1441 + $0x84] sm:$0xf]
    %v1465 = vld [vmem:[%s1441 + $0x88] sm:$0xf]
    %v1466 = vld [vmem:[%s1441 + $0x90] sm:$0xf]
    %v1467 = vld [vmem:[%s1441 + $0x94] sm:$0xf]
    %v1468 = vld [vmem:[%s1441 + $0x9c] sm:$0xf]
    %v1469 = vld [vmem:[%s1441 + $0xa0] sm:$0xf]
    %v1470 = vld [vmem:[%s1441 + $0xa8] sm:$0xf]
    %v1471 = vld [vmem:[%s1441 + $0xac] sm:$0xf]
    %v1472 = vld [vmem:[%s1441 + $0xb4] sm:$0xf]
    %v1473 = vld [vmem:[%s1441 + $0xb8] sm:$0xf]
    %v1474 = vld [vmem:[%s1441 + $0xd8] sm:$0xf]
    %v1475 = vld [vmem:[%s1441 + $0xdc] sm:$0xf]
    %v1476 = vld [vmem:[%s1441 + $0xe4] sm:$0xf]
    %v1477 = vld [vmem:[%s1441 + $0xe8] sm:$0xf]
    %v1478 = vld [vmem:[%s1441 + $0xf0] sm:$0xf]
    %v1479 = vld [vmem:[%s1441 + $0xf4] sm:$0xf]
    %v1480 = vld [vmem:[%s1441 + $0xfc] sm:$0xf]
    %v1481 = vld [vmem:[%s1441 + $0x100] sm:$0xf]
    %v1482 = vld [vmem:[%s1441 + $0x108] sm:$0xf]
    %v1483 = vld [vmem:[%s1441 + $0x10c] sm:$0xf]
    %v1484 = vld [vmem:[%s1441 + $0x114] sm:$0xf]
    %v1485 = vld [vmem:[%s1441 + $0x118] sm:$0xf]
    %v1486 = vld [vmem:[%s1441 + $0x120] sm:$0xf]
    %v1487 = vld [vmem:[%s1441 + $0x124] sm:$0xf]
    %v1488 = vld [vmem:[%s1441 + $0x12c] sm:$0xf]
    %v1489 = vld [vmem:[%s1441 + $0x130] sm:$0xf]
    %v1490 = vld [vmem:[%s1441 + $0x138] sm:$0xf]
    %v1491 = vld [vmem:[%s1441 + $0x13c] sm:$0xf]
    %v1492 = vld [vmem:[%s1441 + $0x144] sm:$0xf]
    %v1493 = vld [vmem:[%s1441 + $0x148] sm:$0xf]
    %v1494 = vld [vmem:[%s1441 + $0x150] sm:$0xf]
    %v1495 = vld [vmem:[%s1441 + $0x154] sm:$0xf]
    %v1496 = vld [vmem:[%s1441 + $0x15c] sm:$0xf]
    %v1497 = vld [vmem:[%s1441 + $0x160] sm:$0xf]
    %v1498 = vld [vmem:[%s1441 + $0x168] sm:$0xf]
    %v1499 = vld [vmem:[%s1441 + $0x16c] sm:$0xf]
    %v1500 = vld [vmem:[%s1441 + $0x174] sm:$0xf]
    %v1501 = vld [vmem:[%s1441 + $0x178] sm:$0xf]
    %v1502 = vld [vmem:[%s1441 + $0x180] sm:$0xf]
    %v1503 = vld [vmem:[%s1441 + $0x184] sm:$0xf]
    %v1504 = vld [vmem:[%s1441 + $0x18c] sm:$0xf]
    %v1505 = vld [vmem:[%s1441 + $0x190] sm:$0xf]
    %v1506 = vld [vmem:[%s1441 + $0x8] sm:$0x1]
    %v1507 = vld [vmem:[%s1441 + $0x14] sm:$0x1]
    %v1508 = vld [vmem:[%s1441 + $0x20] sm:$0x1]
    %v1509 = vld [vmem:[%s1441 + $0x2c] sm:$0x1]
    %v1510 = vld [vmem:[%s1441 + $0x38] sm:$0x1]
    %v1511 = vld [vmem:[%s1441 + $0x44] sm:$0x1]
    %v1512 = vld [vmem:[%s1441 + $0x50] sm:$0x1]
    %v1513 = vld [vmem:[%s1441 + $0x5c] sm:$0x1]
    %v1514 = vld [vmem:[%s1441 + $0x68] sm:$0x1]
    %v1515 = vld [vmem:[%s1441 + $0x74] sm:$0x1]
    %v1516 = vld [vmem:[%s1441 + $0x80] sm:$0x1]
    %v1517 = vld [vmem:[%s1441 + $0x8c] sm:$0x1]
    %v1518 = vld [vmem:[%s1441 + $0x98] sm:$0x1]
    %v1519 = vld [vmem:[%s1441 + $0xa4] sm:$0x1]
    %v1520 = vld [vmem:[%s1441 + $0xb0] sm:$0x1]
    %v1521 = vld [vmem:[%s1441 + $0xbc] sm:$0x1]
    %v1522 = vld [vmem:[%s1441 + $0xe0] sm:$0x1]
    %v1523 = vld [vmem:[%s1441 + $0xec] sm:$0x1]
    %v1524 = vld [vmem:[%s1441 + $0xf8] sm:$0x1]
    %v1525 = vld [vmem:[%s1441 + $0x104] sm:$0x1]
    %v1526 = vld [vmem:[%s1441 + $0x110] sm:$0x1]
    %v1527 = vld [vmem:[%s1441 + $0x11c] sm:$0x1]
    %v1528 = vld [vmem:[%s1441 + $0x128] sm:$0x1]
    %v1529 = vld [vmem:[%s1441 + $0x134] sm:$0x1]
    %v1530 = vld [vmem:[%s1441 + $0x140] sm:$0x1]
    %v1531 = vld [vmem:[%s1441 + $0x14c] sm:$0x1]
    %v1532 = vld [vmem:[%s1441 + $0x158] sm:$0x1]
    %v1533 = vld [vmem:[%s1441 + $0x164] sm:$0x1]
    %v1534 = vld [vmem:[%s1441 + $0x170] sm:$0x1]
    %v1535 = vld [vmem:[%s1441 + $0x17c] sm:$0x1]
    %v1536 = vld [vmem:[%s1441 + $0x188] sm:$0x1]
    %v1537 = vld [vmem:[%s1441 + $0x194] sm:$0x1]
    %v1538 = vld [vmem:[%s1441] sm:$0xe]
    %v1539 = vld [vmem:[%s1441 + $0xc] sm:$0xe]
    %v1540 = vld [vmem:[%s1441 + $0x18] sm:$0xe]
    %v1541 = vld [vmem:[%s1441 + $0x24] sm:$0xe]
    %v1542 = vld [vmem:[%s1441 + $0x30] sm:$0xe]
    %v1543 = vld [vmem:[%s1441 + $0x3c] sm:$0xe]
    %v1544 = vld [vmem:[%s1441 + $0x48] sm:$0xe]
    %v1545 = vld [vmem:[%s1441 + $0x54] sm:$0xe]
    %v1546 = vld [vmem:[%s1441 + $0x60] sm:$0xe]
    %v1547 = vld [vmem:[%s1441 + $0x6c] sm:$0xe]
    %v1548 = vld [vmem:[%s1441 + $0x78] sm:$0xe]
    %v1549 = vld [vmem:[%s1441 + $0x84] sm:$0xe]
    %v1550 = vld [vmem:[%s1441 + $0x90] sm:$0xe]
    %v1551 = vld [vmem:[%s1441 + $0x9c] sm:$0xe]
    %v1552 = vld [vmem:[%s1441 + $0xa8] sm:$0xe]
    %v1553 = vld [vmem:[%s1441 + $0xb4] sm:$0xe]
    %v1554 = vld [vmem:[%s1441 + $0xd8] sm:$0xe]
    %v1555 = vld [vmem:[%s1441 + $0xe4] sm:$0xe]
    %v1556 = vld [vmem:[%s1441 + $0xf0] sm:$0xe]
    %v1557 = vld [vmem:[%s1441 + $0xfc] sm:$0xe]
    %v1558 = vld [vmem:[%s1441 + $0x108] sm:$0xe]
    %v1559 = vld [vmem:[%s1441 + $0x114] sm:$0xe]
    %v1560 = vld [vmem:[%s1441 + $0x120] sm:$0xe]
    %v1561 = vld [vmem:[%s1441 + $0x12c] sm:$0xe]
    %v1562 = vld [vmem:[%s1441 + $0x138] sm:$0xe]
    %v1563 = vld [vmem:[%s1441 + $0x144] sm:$0xe]
    %v1564 = vld [vmem:[%s1441 + $0x150] sm:$0xe]
    %v1565 = vld [vmem:[%s1441 + $0x15c] sm:$0xe]
    %v1566 = vld [vmem:[%s1441 + $0x168] sm:$0xe]
    %v1567 = vld [vmem:[%s1441 + $0x174] sm:$0xe]
    %v1568 = vld [vmem:[%s1441 + $0x180] sm:$0xe]
    %v1569 = vld [vmem:[%s1441 + $0x18c] sm:$0xe]
    %v1634 = vunpack.c.l.b16 %v1185
    %v1635 = vunpack.c.l.b16 %v1186
    %v1636 = vunpack.c.l.b16 %v1187
    %v1637 = vunpack.c.l.b16 %v1188
    %v1638 = vunpack.c.l.b16 %v1189
    %v1639 = vunpack.c.l.b16 %v1190
    %v1640 = vunpack.c.l.b16 %v1191
    %v1641 = vunpack.c.l.b16 %v1192
    %v1642 = vunpack.c.l.b16 %v1193
    %v1643 = vunpack.c.l.b16 %v1194
    %v1644 = vunpack.c.l.b16 %v1195
    %v1645 = vunpack.c.l.b16 %v1196
    %v1646 = vunpack.c.l.b16 %v1197
    %v1647 = vunpack.c.l.b16 %v1198
    %v1648 = vunpack.c.l.b16 %v1199
    %v1649 = vunpack.c.l.b16 %v1200
    %v1650 = vunpack.c.l.b16 %v1201
    %v1651 = vunpack.c.l.b16 %v1202
    %v1652 = vunpack.c.l.b16 %v1203
    %v1653 = vunpack.c.l.b16 %v1204
    %v1654 = vunpack.c.l.b16 %v1205
    %v1655 = vunpack.c.l.b16 %v1206
    %v1656 = vunpack.c.l.b16 %v1207
    %v1657 = vunpack.c.l.b16 %v1208
    %v1658 = vunpack.c.l.b16 %v1209
    %v1659 = vunpack.c.l.b16 %v1210
    %v1660 = vunpack.c.l.b16 %v1211
    %v1661 = vunpack.c.l.b16 %v1212
    %v1662 = vunpack.c.l.b16 %v1213
    %v1663 = vunpack.c.l.b16 %v1214
    %v1664 = vunpack.c.l.b16 %v1215
    %v1665 = vunpack.c.l.b16 %v1216
    %v1666 = vunpack.c.l.b16 %v1217
    %v1667 = vunpack.c.l.b16 %v1218
    %v1668 = vunpack.c.l.b16 %v1219
    %v1669 = vunpack.c.l.b16 %v1220
    %v1670 = vunpack.c.l.b16 %v1221
    %v1671 = vunpack.c.l.b16 %v1222
    %v1672 = vunpack.c.l.b16 %v1223
    %v1673 = vunpack.c.l.b16 %v1224
    %v1674 = vunpack.c.l.b16 %v1225
    %v1675 = vunpack.c.l.b16 %v1226
    %v1676 = vunpack.c.l.b16 %v1227
    %v1677 = vunpack.c.l.b16 %v1228
    %v1678 = vunpack.c.l.b16 %v1229
    %v1679 = vunpack.c.l.b16 %v1230
    %v1680 = vunpack.c.l.b16 %v1231
    %v1681 = vunpack.c.l.b16 %v1232
    %v1682 = vunpack.c.l.b16 %v1233
    %v1683 = vunpack.c.l.b16 %v1234
    %v1684 = vunpack.c.l.b16 %v1235
    %v1685 = vunpack.c.l.b16 %v1236
    %v1686 = vunpack.c.l.b16 %v1237
    %v1687 = vunpack.c.l.b16 %v1238
    %v1688 = vunpack.c.l.b16 %v1239
    %v1689 = vunpack.c.l.b16 %v1240
    %v1690 = vunpack.c.l.b16 %v1241
    %v1691 = vunpack.c.l.b16 %v1242
    %v1692 = vunpack.c.l.b16 %v1243
    %v1693 = vunpack.c.l.b16 %v1244
    %v1694 = vunpack.c.l.b16 %v1245
    %v1695 = vunpack.c.l.b16 %v1246
    %v1696 = vunpack.c.l.b16 %v1247
    %v1697 = vunpack.c.l.b16 %v1248
    %v1698 = vpack.c.b16 %v1635, %v1634
    %v1699 = vpack.c.b16 %v1637, %v1636
    %v1700 = vpack.c.b16 %v1639, %v1638
    %v1701 = vpack.c.b16 %v1641, %v1640
    %v1702 = vpack.c.b16 %v1643, %v1642
    %v1703 = vpack.c.b16 %v1645, %v1644
    %v1704 = vpack.c.b16 %v1647, %v1646
    %v1705 = vpack.c.b16 %v1649, %v1648
    %v1706 = vpack.c.b16 %v1651, %v1650
    %v1707 = vpack.c.b16 %v1653, %v1652
    %v1708 = vpack.c.b16 %v1655, %v1654
    %v1709 = vpack.c.b16 %v1657, %v1656
    %v1710 = vpack.c.b16 %v1659, %v1658
    %v1711 = vpack.c.b16 %v1661, %v1660
    %v1712 = vpack.c.b16 %v1663, %v1662
    %v1713 = vpack.c.b16 %v1665, %v1664
    %v1714 = vpack.c.b16 %v1667, %v1666
    %v1715 = vpack.c.b16 %v1669, %v1668
    %v1716 = vpack.c.b16 %v1671, %v1670
    %v1717 = vpack.c.b16 %v1673, %v1672
    %v1718 = vpack.c.b16 %v1675, %v1674
    %v1719 = vpack.c.b16 %v1677, %v1676
    %v1720 = vpack.c.b16 %v1679, %v1678
    %v1721 = vpack.c.b16 %v1681, %v1680
    %v1722 = vpack.c.b16 %v1683, %v1682
    %v1723 = vpack.c.b16 %v1685, %v1684
    %v1724 = vpack.c.b16 %v1687, %v1686
    %v1725 = vpack.c.b16 %v1689, %v1688
    %v1726 = vpack.c.b16 %v1691, %v1690
    %v1727 = vpack.c.b16 %v1693, %v1692
    %v1728 = vpack.c.b16 %v1695, %v1694
    %v1729 = vpack.c.b16 %v1697, %v1696
    %v1762 = vunpack.c.l.b16 %v1249
    %v1763 = vunpack.c.l.b16 %v1250
    %v1764 = vunpack.c.l.b16 %v1251
    %v1765 = vunpack.c.l.b16 %v1252
    %v1766 = vunpack.c.l.b16 %v1253
    %v1767 = vunpack.c.l.b16 %v1254
    %v1768 = vunpack.c.l.b16 %v1255
    %v1769 = vunpack.c.l.b16 %v1256
    %v1770 = vunpack.c.l.b16 %v1257
    %v1771 = vunpack.c.l.b16 %v1258
    %v1772 = vunpack.c.l.b16 %v1259
    %v1773 = vunpack.c.l.b16 %v1260
    %v1774 = vunpack.c.l.b16 %v1261
    %v1775 = vunpack.c.l.b16 %v1262
    %v1776 = vunpack.c.l.b16 %v1263
    %v1777 = vunpack.c.l.b16 %v1264
    %v1778 = vunpack.c.l.b16 %v1265
    %v1779 = vunpack.c.l.b16 %v1266
    %v1780 = vunpack.c.l.b16 %v1267
    %v1781 = vunpack.c.l.b16 %v1268
    %v1782 = vunpack.c.l.b16 %v1269
    %v1783 = vunpack.c.l.b16 %v1270
    %v1784 = vunpack.c.l.b16 %v1271
    %v1785 = vunpack.c.l.b16 %v1272
    %v1786 = vunpack.c.l.b16 %v1273
    %v1787 = vunpack.c.l.b16 %v1274
    %v1788 = vunpack.c.l.b16 %v1275
    %v1789 = vunpack.c.l.b16 %v1276
    %v1790 = vunpack.c.l.b16 %v1277
    %v1791 = vunpack.c.l.b16 %v1278
    %v1792 = vunpack.c.l.b16 %v1279
    %v1793 = vunpack.c.l.b16 %v1280
    %v1794 = vpack.c.b16 %v1762, %v1762
    %v1795 = vpack.c.b16 %v1763, %v1763
    %v1796 = vpack.c.b16 %v1764, %v1764
    %v1797 = vpack.c.b16 %v1765, %v1765
    %v1798 = vpack.c.b16 %v1766, %v1766
    %v1799 = vpack.c.b16 %v1767, %v1767
    %v1800 = vpack.c.b16 %v1768, %v1768
    %v1801 = vpack.c.b16 %v1769, %v1769
    %v1802 = vpack.c.b16 %v1770, %v1770
    %v1803 = vpack.c.b16 %v1771, %v1771
    %v1804 = vpack.c.b16 %v1772, %v1772
    %v1805 = vpack.c.b16 %v1773, %v1773
    %v1806 = vpack.c.b16 %v1774, %v1774
    %v1807 = vpack.c.b16 %v1775, %v1775
    %v1808 = vpack.c.b16 %v1776, %v1776
    %v1809 = vpack.c.b16 %v1777, %v1777
    %v1810 = vpack.c.b16 %v1778, %v1778
    %v1811 = vpack.c.b16 %v1779, %v1779
    %v1812 = vpack.c.b16 %v1780, %v1780
    %v1813 = vpack.c.b16 %v1781, %v1781
    %v1814 = vpack.c.b16 %v1782, %v1782
    %v1815 = vpack.c.b16 %v1783, %v1783
    %v1816 = vpack.c.b16 %v1784, %v1784
    %v1817 = vpack.c.b16 %v1785, %v1785
    %v1818 = vpack.c.b16 %v1786, %v1786
    %v1819 = vpack.c.b16 %v1787, %v1787
    %v1820 = vpack.c.b16 %v1788, %v1788
    %v1821 = vpack.c.b16 %v1789, %v1789
    %v1822 = vpack.c.b16 %v1790, %v1790
    %v1823 = vpack.c.b16 %v1791, %v1791
    %v1824 = vpack.c.b16 %v1792, %v1792
    %v1825 = vpack.c.b16 %v1793, %v1793
    %vm1826 = vsmask.f32 7424
    %v1828 = vshrl.u32 %v1698, 16
    %v1830 = vshll.u32 %v1698, 16
    %v1832 = vrot.slane %v1830, 1
    %v1833 = vor.u32 %v1828, %v1832
    %v1835 = vshll.u32 %v1794, 16
    %v1837 = vrot.slane %v1835, 1
    %v1838 = vsel %vm1826, %v1833, %v1837
    %v1840 = vshrl.u32 %v1699, 16
    %v1842 = vshll.u32 %v1699, 16
    %v1844 = vrot.slane %v1842, 1
    %v1845 = vor.u32 %v1840, %v1844
    %v1847 = vshll.u32 %v1795, 16
    %v1849 = vrot.slane %v1847, 1
    %v1850 = vsel %vm1826, %v1845, %v1849
    %v1852 = vshrl.u32 %v1700, 16
    %v1854 = vshll.u32 %v1700, 16
    %v1856 = vrot.slane %v1854, 1
    %v1857 = vor.u32 %v1852, %v1856
    %v1859 = vshll.u32 %v1796, 16
    %v1861 = vrot.slane %v1859, 1
    %v1862 = vsel %vm1826, %v1857, %v1861
    %v1864 = vshrl.u32 %v1701, 16
    %v1866 = vshll.u32 %v1701, 16
    %v1868 = vrot.slane %v1866, 1
    %v1869 = vor.u32 %v1864, %v1868
    %v1871 = vshll.u32 %v1797, 16
    %v1873 = vrot.slane %v1871, 1
    %v1874 = vsel %vm1826, %v1869, %v1873
    %v1876 = vshrl.u32 %v1702, 16
    %v1878 = vshll.u32 %v1702, 16
    %v1880 = vrot.slane %v1878, 1
    %v1881 = vor.u32 %v1876, %v1880
    %v1883 = vshll.u32 %v1798, 16
    %v1885 = vrot.slane %v1883, 1
    %v1886 = vsel %vm1826, %v1881, %v1885
    %v1888 = vshrl.u32 %v1703, 16
    %v1890 = vshll.u32 %v1703, 16
    %v1892 = vrot.slane %v1890, 1
    %v1893 = vor.u32 %v1888, %v1892
    %v1895 = vshll.u32 %v1799, 16
    %v1897 = vrot.slane %v1895, 1
    %v1898 = vsel %vm1826, %v1893, %v1897
    %v1900 = vshrl.u32 %v1704, 16
    %v1902 = vshll.u32 %v1704, 16
    %v1904 = vrot.slane %v1902, 1
    %v1905 = vor.u32 %v1900, %v1904
    %v1907 = vshll.u32 %v1800, 16
    %v1909 = vrot.slane %v1907, 1
    %v1910 = vsel %vm1826, %v1905, %v1909
    %v1912 = vshrl.u32 %v1705, 16
    %v1914 = vshll.u32 %v1705, 16
    %v1916 = vrot.slane %v1914, 1
    %v1917 = vor.u32 %v1912, %v1916
    %v1919 = vshll.u32 %v1801, 16
    %v1921 = vrot.slane %v1919, 1
    %v1922 = vsel %vm1826, %v1917, %v1921
    %v1924 = vshrl.u32 %v1706, 16
    %v1926 = vshll.u32 %v1706, 16
    %v1928 = vrot.slane %v1926, 1
    %v1929 = vor.u32 %v1924, %v1928
    %v1931 = vshll.u32 %v1802, 16
    %v1933 = vrot.slane %v1931, 1
    %v1934 = vsel %vm1826, %v1929, %v1933
    %v1936 = vshrl.u32 %v1707, 16
    %v1938 = vshll.u32 %v1707, 16
    %v1940 = vrot.slane %v1938, 1
    %v1941 = vor.u32 %v1936, %v1940
    %v1943 = vshll.u32 %v1803, 16
    %v1945 = vrot.slane %v1943, 1
    %v1946 = vsel %vm1826, %v1941, %v1945
    %v1948 = vshrl.u32 %v1708, 16
    %v1950 = vshll.u32 %v1708, 16
    %v1952 = vrot.slane %v1950, 1
    %v1953 = vor.u32 %v1948, %v1952
    %v1955 = vshll.u32 %v1804, 16
    %v1957 = vrot.slane %v1955, 1
    %v1958 = vsel %vm1826, %v1953, %v1957
    %v1960 = vshrl.u32 %v1709, 16
    %v1962 = vshll.u32 %v1709, 16
    %v1964 = vrot.slane %v1962, 1
    %v1965 = vor.u32 %v1960, %v1964
    %v1967 = vshll.u32 %v1805, 16
    %v1969 = vrot.slane %v1967, 1
    %v1970 = vsel %vm1826, %v1965, %v1969
    %v1972 = vshrl.u32 %v1710, 16
    %v1974 = vshll.u32 %v1710, 16
    %v1976 = vrot.slane %v1974, 1
    %v1977 = vor.u32 %v1972, %v1976
    %v1979 = vshll.u32 %v1806, 16
    %v1981 = vrot.slane %v1979, 1
    %v1982 = vsel %vm1826, %v1977, %v1981
    %v1984 = vshrl.u32 %v1711, 16
    %v1986 = vshll.u32 %v1711, 16
    %v1988 = vrot.slane %v1986, 1
    %v1989 = vor.u32 %v1984, %v1988
    %v1991 = vshll.u32 %v1807, 16
    %v1993 = vrot.slane %v1991, 1
    %v1994 = vsel %vm1826, %v1989, %v1993
    %v1996 = vshrl.u32 %v1712, 16
    %v1998 = vshll.u32 %v1712, 16
    %v2000 = vrot.slane %v1998, 1
    %v2001 = vor.u32 %v1996, %v2000
    %v2003 = vshll.u32 %v1808, 16
    %v2005 = vrot.slane %v2003, 1
    %v2006 = vsel %vm1826, %v2001, %v2005
    %v2008 = vshrl.u32 %v1713, 16
    %v2010 = vshll.u32 %v1713, 16
    %v2012 = vrot.slane %v2010, 1
    %v2013 = vor.u32 %v2008, %v2012
    %v2015 = vshll.u32 %v1809, 16
    %v2017 = vrot.slane %v2015, 1
    %v2018 = vsel %vm1826, %v2013, %v2017
    %v2020 = vshrl.u32 %v1714, 16
    %v2022 = vshll.u32 %v1714, 16
    %v2024 = vrot.slane %v2022, 1
    %v2025 = vor.u32 %v2020, %v2024
    %v2027 = vshll.u32 %v1810, 16
    %v2029 = vrot.slane %v2027, 1
    %v2030 = vsel %vm1826, %v2025, %v2029
    %v2032 = vshrl.u32 %v1715, 16
    %v2034 = vshll.u32 %v1715, 16
    %v2036 = vrot.slane %v2034, 1
    %v2037 = vor.u32 %v2032, %v2036
    %v2039 = vshll.u32 %v1811, 16
    %v2041 = vrot.slane %v2039, 1
    %v2042 = vsel %vm1826, %v2037, %v2041
    %v2044 = vshrl.u32 %v1716, 16
    %v2046 = vshll.u32 %v1716, 16
    %v2048 = vrot.slane %v2046, 1
    %v2049 = vor.u32 %v2044, %v2048
    %v2051 = vshll.u32 %v1812, 16
    %v2053 = vrot.slane %v2051, 1
    %v2054 = vsel %vm1826, %v2049, %v2053
    %v2056 = vshrl.u32 %v1717, 16
    %v2058 = vshll.u32 %v1717, 16
    %v2060 = vrot.slane %v2058, 1
    %v2061 = vor.u32 %v2056, %v2060
    %v2063 = vshll.u32 %v1813, 16
    %v2065 = vrot.slane %v2063, 1
    %v2066 = vsel %vm1826, %v2061, %v2065
    %v2068 = vshrl.u32 %v1718, 16
    %v2070 = vshll.u32 %v1718, 16
    %v2072 = vrot.slane %v2070, 1
    %v2073 = vor.u32 %v2068, %v2072
    %v2075 = vshll.u32 %v1814, 16
    %v2077 = vrot.slane %v2075, 1
    %v2078 = vsel %vm1826, %v2073, %v2077
    %v2080 = vshrl.u32 %v1719, 16
    %v2082 = vshll.u32 %v1719, 16
    %v2084 = vrot.slane %v2082, 1
    %v2085 = vor.u32 %v2080, %v2084
    %v2087 = vshll.u32 %v1815, 16
    %v2089 = vrot.slane %v2087, 1
    %v2090 = vsel %vm1826, %v2085, %v2089
    %v2092 = vshrl.u32 %v1720, 16
    %v2094 = vshll.u32 %v1720, 16
    %v2096 = vrot.slane %v2094, 1
    %v2097 = vor.u32 %v2092, %v2096
    %v2099 = vshll.u32 %v1816, 16
    %v2101 = vrot.slane %v2099, 1
    %v2102 = vsel %vm1826, %v2097, %v2101
    %v2104 = vshrl.u32 %v1721, 16
    %v2106 = vshll.u32 %v1721, 16
    %v2108 = vrot.slane %v2106, 1
    %v2109 = vor.u32 %v2104, %v2108
    %v2111 = vshll.u32 %v1817, 16
    %v2113 = vrot.slane %v2111, 1
    %v2114 = vsel %vm1826, %v2109, %v2113
    %v2116 = vshrl.u32 %v1722, 16
    %v2118 = vshll.u32 %v1722, 16
    %v2120 = vrot.slane %v2118, 1
    %v2121 = vor.u32 %v2116, %v2120
    %v2123 = vshll.u32 %v1818, 16
    %v2125 = vrot.slane %v2123, 1
    %v2126 = vsel %vm1826, %v2121, %v2125
    %v2128 = vshrl.u32 %v1723, 16
    %v2130 = vshll.u32 %v1723, 16
    %v2132 = vrot.slane %v2130, 1
    %v2133 = vor.u32 %v2128, %v2132
    %v2135 = vshll.u32 %v1819, 16
    %v2137 = vrot.slane %v2135, 1
    %v2138 = vsel %vm1826, %v2133, %v2137
    %v2140 = vshrl.u32 %v1724, 16
    %v2142 = vshll.u32 %v1724, 16
    %v2144 = vrot.slane %v2142, 1
    %v2145 = vor.u32 %v2140, %v2144
    %v2147 = vshll.u32 %v1820, 16
    %v2149 = vrot.slane %v2147, 1
    %v2150 = vsel %vm1826, %v2145, %v2149
    %v2152 = vshrl.u32 %v1725, 16
    %v2154 = vshll.u32 %v1725, 16
    %v2156 = vrot.slane %v2154, 1
    %v2157 = vor.u32 %v2152, %v2156
    %v2159 = vshll.u32 %v1821, 16
    %v2161 = vrot.slane %v2159, 1
    %v2162 = vsel %vm1826, %v2157, %v2161
    %v2164 = vshrl.u32 %v1726, 16
    %v2166 = vshll.u32 %v1726, 16
    %v2168 = vrot.slane %v2166, 1
    %v2169 = vor.u32 %v2164, %v2168
    %v2171 = vshll.u32 %v1822, 16
    %v2173 = vrot.slane %v2171, 1
    %v2174 = vsel %vm1826, %v2169, %v2173
    %v2176 = vshrl.u32 %v1727, 16
    %v2178 = vshll.u32 %v1727, 16
    %v2180 = vrot.slane %v2178, 1
    %v2181 = vor.u32 %v2176, %v2180
    %v2183 = vshll.u32 %v1823, 16
    %v2185 = vrot.slane %v2183, 1
    %v2186 = vsel %vm1826, %v2181, %v2185
    %v2188 = vshrl.u32 %v1728, 16
    %v2190 = vshll.u32 %v1728, 16
    %v2192 = vrot.slane %v2190, 1
    %v2193 = vor.u32 %v2188, %v2192
    %v2195 = vshll.u32 %v1824, 16
    %v2197 = vrot.slane %v2195, 1
    %v2198 = vsel %vm1826, %v2193, %v2197
    %v2200 = vshrl.u32 %v1729, 16
    %v2202 = vshll.u32 %v1729, 16
    %v2204 = vrot.slane %v2202, 1
    %v2205 = vor.u32 %v2200, %v2204
    %v2207 = vshll.u32 %v1825, 16
    %v2209 = vrot.slane %v2207, 1
    %v2210 = vsel %vm1826, %v2205, %v2209
    %2211 = vrot.lane.b32.xlu0 %v1838, 4
    %v2212 = vpop.permute.xlu0 %2211
    %2213 = vrot.lane.b32.xlu0 %v1850, 4
    %v2214 = vpop.permute.xlu0 %2213
    %2215 = vrot.lane.b32.xlu0 %v1862, 4
    %v2216 = vpop.permute.xlu0 %2215
    %2217 = vrot.lane.b32.xlu0 %v1874, 4
    %v2218 = vpop.permute.xlu0 %2217
    %2219 = vrot.lane.b32.xlu0 %v1886, 4
    %v2220 = vpop.permute.xlu0 %2219
    %2221 = vrot.lane.b32.xlu0 %v1898, 4
    %v2222 = vpop.permute.xlu0 %2221
    %2223 = vrot.lane.b32.xlu0 %v1910, 4
    %v2224 = vpop.permute.xlu0 %2223
    %2225 = vrot.lane.b32.xlu0 %v1922, 4
    %v2226 = vpop.permute.xlu0 %2225
    %2227 = vrot.lane.b32.xlu0 %v1934, 4
    %v2228 = vpop.permute.xlu0 %2227
    %2229 = vrot.lane.b32.xlu0 %v1946, 4
    %v2230 = vpop.permute.xlu0 %2229
    %2231 = vrot.lane.b32.xlu0 %v1958, 4
    %v2232 = vpop.permute.xlu0 %2231
    %2233 = vrot.lane.b32.xlu0 %v1970, 4
    %v2234 = vpop.permute.xlu0 %2233
    %2235 = vrot.lane.b32.xlu0 %v1982, 4
    %v2236 = vpop.permute.xlu0 %2235
    %2237 = vrot.lane.b32.xlu0 %v1994, 4
    %v2238 = vpop.permute.xlu0 %2237
    %2239 = vrot.lane.b32.xlu0 %v2006, 4
    %v2240 = vpop.permute.xlu0 %2239
    %2241 = vrot.lane.b32.xlu0 %v2018, 4
    %v2242 = vpop.permute.xlu0 %2241
    %2243 = vrot.lane.b32.xlu0 %v2030, 4
    %v2244 = vpop.permute.xlu0 %2243
    %2245 = vrot.lane.b32.xlu0 %v2042, 4
    %v2246 = vpop.permute.xlu0 %2245
    %2247 = vrot.lane.b32.xlu0 %v2054, 4
    %v2248 = vpop.permute.xlu0 %2247
    %2249 = vrot.lane.b32.xlu0 %v2066, 4
    %v2250 = vpop.permute.xlu0 %2249
    %2251 = vrot.lane.b32.xlu0 %v2078, 4
    %v2252 = vpop.permute.xlu0 %2251
    %2253 = vrot.lane.b32.xlu0 %v2090, 4
    %v2254 = vpop.permute.xlu0 %2253
    %2255 = vrot.lane.b32.xlu0 %v2102, 4
    %v2256 = vpop.permute.xlu0 %2255
    %2257 = vrot.lane.b32.xlu0 %v2114, 4
    %v2258 = vpop.permute.xlu0 %2257
    %2259 = vrot.lane.b32.xlu0 %v2126, 4
    %v2260 = vpop.permute.xlu0 %2259
    %2261 = vrot.lane.b32.xlu0 %v2138, 4
    %v2262 = vpop.permute.xlu0 %2261
    %2263 = vrot.lane.b32.xlu0 %v2150, 4
    %v2264 = vpop.permute.xlu0 %2263
    %2265 = vrot.lane.b32.xlu0 %v2162, 4
    %v2266 = vpop.permute.xlu0 %2265
    %2267 = vrot.lane.b32.xlu0 %v2174, 4
    %v2268 = vpop.permute.xlu0 %2267
    %2269 = vrot.lane.b32.xlu0 %v2186, 4
    %v2270 = vpop.permute.xlu0 %2269
    %2271 = vrot.lane.b32.xlu0 %v2198, 4
    %v2272 = vpop.permute.xlu0 %2271
    %2273 = vrot.lane.b32.xlu0 %v2210, 4
    %v2274 = vpop.permute.xlu0 %2273
    %v2307 = vunpack.c.l.b16 %v1281
    %v2308 = vunpack.c.l.b16 %v1282
    %v2309 = vunpack.c.l.b16 %v1283
    %v2310 = vunpack.c.l.b16 %v1284
    %v2311 = vunpack.c.l.b16 %v1285
    %v2312 = vunpack.c.l.b16 %v1286
    %v2313 = vunpack.c.l.b16 %v1287
    %v2314 = vunpack.c.l.b16 %v1288
    %v2315 = vunpack.c.l.b16 %v1289
    %v2316 = vunpack.c.l.b16 %v1290
    %v2317 = vunpack.c.l.b16 %v1291
    %v2318 = vunpack.c.l.b16 %v1292
    %v2319 = vunpack.c.l.b16 %v1293
    %v2320 = vunpack.c.l.b16 %v1294
    %v2321 = vunpack.c.l.b16 %v1295
    %v2322 = vunpack.c.l.b16 %v1296
    %v2323 = vunpack.c.l.b16 %v1297
    %v2324 = vunpack.c.l.b16 %v1298
    %v2325 = vunpack.c.l.b16 %v1299
    %v2326 = vunpack.c.l.b16 %v1300
    %v2327 = vunpack.c.l.b16 %v1301
    %v2328 = vunpack.c.l.b16 %v1302
    %v2329 = vunpack.c.l.b16 %v1303
    %v2330 = vunpack.c.l.b16 %v1304
    %v2331 = vunpack.c.l.b16 %v1305
    %v2332 = vunpack.c.l.b16 %v1306
    %v2333 = vunpack.c.l.b16 %v1307
    %v2334 = vunpack.c.l.b16 %v1308
    %v2335 = vunpack.c.l.b16 %v1309
    %v2336 = vunpack.c.l.b16 %v1310
    %v2337 = vunpack.c.l.b16 %v1311
    %v2338 = vunpack.c.l.b16 %v1312
    %v2339 = vpack.c.b16 %v1635, %v2307
    %v2340 = vpack.c.b16 %v1637, %v2308
    %v2341 = vpack.c.b16 %v1639, %v2309
    %v2342 = vpack.c.b16 %v1641, %v2310
    %v2343 = vpack.c.b16 %v1643, %v2311
    %v2344 = vpack.c.b16 %v1645, %v2312
    %v2345 = vpack.c.b16 %v1647, %v2313
    %v2346 = vpack.c.b16 %v1649, %v2314
    %v2347 = vpack.c.b16 %v1651, %v2315
    %v2348 = vpack.c.b16 %v1653, %v2316
    %v2349 = vpack.c.b16 %v1655, %v2317
    %v2350 = vpack.c.b16 %v1657, %v2318
    %v2351 = vpack.c.b16 %v1659, %v2319
    %v2352 = vpack.c.b16 %v1661, %v2320
    %v2353 = vpack.c.b16 %v1663, %v2321
    %v2354 = vpack.c.b16 %v1665, %v2322
    %v2355 = vpack.c.b16 %v1667, %v2323
    %v2356 = vpack.c.b16 %v1669, %v2324
    %v2357 = vpack.c.b16 %v1671, %v2325
    %v2358 = vpack.c.b16 %v1673, %v2326
    %v2359 = vpack.c.b16 %v1675, %v2327
    %v2360 = vpack.c.b16 %v1677, %v2328
    %v2361 = vpack.c.b16 %v1679, %v2329
    %v2362 = vpack.c.b16 %v1681, %v2330
    %v2363 = vpack.c.b16 %v1683, %v2331
    %v2364 = vpack.c.b16 %v1685, %v2332
    %v2365 = vpack.c.b16 %v1687, %v2333
    %v2366 = vpack.c.b16 %v1689, %v2334
    %v2367 = vpack.c.b16 %v1691, %v2335
    %v2368 = vpack.c.b16 %v1693, %v2336
    %v2369 = vpack.c.b16 %v1695, %v2337
    %v2370 = vpack.c.b16 %v1697, %v2338
    %vm2371 = vcmask 1046528
    %v2372 = vrot.slane %v2339, 1
    %v2373 = vrot.slane %v1794, 1
    %v2374 = vsel %vm2371, %v2372, %v2373
    %v2375 = vrot.slane %v2340, 1
    %v2376 = vrot.slane %v1795, 1
    %v2377 = vsel %vm2371, %v2375, %v2376
    %v2378 = vrot.slane %v2341, 1
    %v2379 = vrot.slane %v1796, 1
    %v2380 = vsel %vm2371, %v2378, %v2379
    %v2381 = vrot.slane %v2342, 1
    %v2382 = vrot.slane %v1797, 1
    %v2383 = vsel %vm2371, %v2381, %v2382
    %v2384 = vrot.slane %v2343, 1
    %v2385 = vrot.slane %v1798, 1
    %v2386 = vsel %vm2371, %v2384, %v2385
    %v2387 = vrot.slane %v2344, 1
    %v2388 = vrot.slane %v1799, 1
    %v2389 = vsel %vm2371, %v2387, %v2388
    %v2390 = vrot.slane %v2345, 1
    %v2391 = vrot.slane %v1800, 1
    %v2392 = vsel %vm2371, %v2390, %v2391
    %v2393 = vrot.slane %v2346, 1
    %v2394 = vrot.slane %v1801, 1
    %v2395 = vsel %vm2371, %v2393, %v2394
    %v2396 = vrot.slane %v2347, 1
    %v2397 = vrot.slane %v1802, 1
    %v2398 = vsel %vm2371, %v2396, %v2397
    %v2399 = vrot.slane %v2348, 1
    %v2400 = vrot.slane %v1803, 1
    %v2401 = vsel %vm2371, %v2399, %v2400
    %v2402 = vrot.slane %v2349, 1
    %v2403 = vrot.slane %v1804, 1
    %v2404 = vsel %vm2371, %v2402, %v2403
    %v2405 = vrot.slane %v2350, 1
    %v2406 = vrot.slane %v1805, 1
    %v2407 = vsel %vm2371, %v2405, %v2406
    %v2408 = vrot.slane %v2351, 1
    %v2409 = vrot.slane %v1806, 1
    %v2410 = vsel %vm2371, %v2408, %v2409
    %v2411 = vrot.slane %v2352, 1
    %v2412 = vrot.slane %v1807, 1
    %v2413 = vsel %vm2371, %v2411, %v2412
    %v2414 = vrot.slane %v2353, 1
    %v2415 = vrot.slane %v1808, 1
    %v2416 = vsel %vm2371, %v2414, %v2415
    %v2417 = vrot.slane %v2354, 1
    %v2418 = vrot.slane %v1809, 1
    %v2419 = vsel %vm2371, %v2417, %v2418
    %v2420 = vrot.slane %v2355, 1
    %v2421 = vrot.slane %v1810, 1
    %v2422 = vsel %vm2371, %v2420, %v2421
    %v2423 = vrot.slane %v2356, 1
    %v2424 = vrot.slane %v1811, 1
    %v2425 = vsel %vm2371, %v2423, %v2424
    %v2426 = vrot.slane %v2357, 1
    %v2427 = vrot.slane %v1812, 1
    %v2428 = vsel %vm2371, %v2426, %v2427
    %v2429 = vrot.slane %v2358, 1
    %v2430 = vrot.slane %v1813, 1
    %v2431 = vsel %vm2371, %v2429, %v2430
    %v2432 = vrot.slane %v2359, 1
    %v2433 = vrot.slane %v1814, 1
    %v2434 = vsel %vm2371, %v2432, %v2433
    %v2435 = vrot.slane %v2360, 1
    %v2436 = vrot.slane %v1815, 1
    %v2437 = vsel %vm2371, %v2435, %v2436
    %v2438 = vrot.slane %v2361, 1
    %v2439 = vrot.slane %v1816, 1
    %v2440 = vsel %vm2371, %v2438, %v2439
    %v2441 = vrot.slane %v2362, 1
    %v2442 = vrot.slane %v1817, 1
    %v2443 = vsel %vm2371, %v2441, %v2442
    %v2444 = vrot.slane %v2363, 1
    %v2445 = vrot.slane %v1818, 1
    %v2446 = vsel %vm2371, %v2444, %v2445
    %v2447 = vrot.slane %v2364, 1
    %v2448 = vrot.slane %v1819, 1
    %v2449 = vsel %vm2371, %v2447, %v2448
    %v2450 = vrot.slane %v2365, 1
    %v2451 = vrot.slane %v1820, 1
    %v2452 = vsel %vm2371, %v2450, %v2451
    %v2453 = vrot.slane %v2366, 1
    %v2454 = vrot.slane %v1821, 1
    %v2455 = vsel %vm2371, %v2453, %v2454
    %v2456 = vrot.slane %v2367, 1
    %v2457 = vrot.slane %v1822, 1
    %v2458 = vsel %vm2371, %v2456, %v2457
    %v2459 = vrot.slane %v2368, 1
    %v2460 = vrot.slane %v1823, 1
    %v2461 = vsel %vm2371, %v2459, %v2460
    %v2462 = vrot.slane %v2369, 1
    %v2463 = vrot.slane %v1824, 1
    %v2464 = vsel %vm2371, %v2462, %v2463
    %v2465 = vrot.slane %v2370, 1
    %v2466 = vrot.slane %v1825, 1
    %v2467 = vsel %vm2371, %v2465, %v2466
    %2468 = vrot.lane.b32.xlu0 %v2374, 8
    %v2469 = vpop.permute.xlu0 %2468
    %2470 = vrot.lane.b32.xlu0 %v2377, 8
    %v2471 = vpop.permute.xlu0 %2470
    %2472 = vrot.lane.b32.xlu0 %v2380, 8
    %v2473 = vpop.permute.xlu0 %2472
    %2474 = vrot.lane.b32.xlu0 %v2383, 8
    %v2475 = vpop.permute.xlu0 %2474
    %2476 = vrot.lane.b32.xlu0 %v2386, 8
    %v2477 = vpop.permute.xlu0 %2476
    %2478 = vrot.lane.b32.xlu0 %v2389, 8
    %v2479 = vpop.permute.xlu0 %2478
    %2480 = vrot.lane.b32.xlu0 %v2392, 8
    %v2481 = vpop.permute.xlu0 %2480
    %2482 = vrot.lane.b32.xlu0 %v2395, 8
    %v2483 = vpop.permute.xlu0 %2482
    %2484 = vrot.lane.b32.xlu0 %v2398, 8
    %v2485 = vpop.permute.xlu0 %2484
    %2486 = vrot.lane.b32.xlu0 %v2401, 8
    %v2487 = vpop.permute.xlu0 %2486
    %2488 = vrot.lane.b32.xlu0 %v2404, 8
    %v2489 = vpop.permute.xlu0 %2488
    %2490 = vrot.lane.b32.xlu0 %v2407, 8
    %v2491 = vpop.permute.xlu0 %2490
    %2492 = vrot.lane.b32.xlu0 %v2410, 8
    %v2493 = vpop.permute.xlu0 %2492
    %2494 = vrot.lane.b32.xlu0 %v2413, 8
    %v2495 = vpop.permute.xlu0 %2494
    %2496 = vrot.lane.b32.xlu0 %v2416, 8
    %v2497 = vpop.permute.xlu0 %2496
    %2498 = vrot.lane.b32.xlu0 %v2419, 8
    %v2499 = vpop.permute.xlu0 %2498
    %2500 = vrot.lane.b32.xlu0 %v2422, 8
    %v2501 = vpop.permute.xlu0 %2500
    %2502 = vrot.lane.b32.xlu0 %v2425, 8
    %v2503 = vpop.permute.xlu0 %2502
    %2504 = vrot.lane.b32.xlu0 %v2428, 8
    %v2505 = vpop.permute.xlu0 %2504
    %2506 = vrot.lane.b32.xlu0 %v2431, 8
    %v2507 = vpop.permute.xlu0 %2506
    %2508 = vrot.lane.b32.xlu0 %v2434, 8
    %v2509 = vpop.permute.xlu0 %2508
    %2510 = vrot.lane.b32.xlu0 %v2437, 8
    %v2511 = vpop.permute.xlu0 %2510
    %2512 = vrot.lane.b32.xlu0 %v2440, 8
    %v2513 = vpop.permute.xlu0 %2512
    %2514 = vrot.lane.b32.xlu0 %v2443, 8
    %v2515 = vpop.permute.xlu0 %2514
    %2516 = vrot.lane.b32.xlu0 %v2446, 8
    %v2517 = vpop.permute.xlu0 %2516
    %2518 = vrot.lane.b32.xlu0 %v2449, 8
    %v2519 = vpop.permute.xlu0 %2518
    %2520 = vrot.lane.b32.xlu0 %v2452, 8
    %v2521 = vpop.permute.xlu0 %2520
    %2522 = vrot.lane.b32.xlu0 %v2455, 8
    %v2523 = vpop.permute.xlu0 %2522
    %2524 = vrot.lane.b32.xlu0 %v2458, 8
    %v2525 = vpop.permute.xlu0 %2524
    %2526 = vrot.lane.b32.xlu0 %v2461, 8
    %v2527 = vpop.permute.xlu0 %2526
    %2528 = vrot.lane.b32.xlu0 %v2464, 8
    %v2529 = vpop.permute.xlu0 %2528
    %2530 = vrot.lane.b32.xlu0 %v2467, 8
    %v2531 = vpop.permute.xlu0 %2530
    %v2596 = vunpack.c.l.b16 %v1313
    %v2597 = vunpack.c.l.b16 %v1314
    %v2598 = vunpack.c.l.b16 %v1315
    %v2599 = vunpack.c.l.b16 %v1316
    %v2600 = vunpack.c.l.b16 %v1317
    %v2601 = vunpack.c.l.b16 %v1318
    %v2602 = vunpack.c.l.b16 %v1319
    %v2603 = vunpack.c.l.b16 %v1320
    %v2604 = vunpack.c.l.b16 %v1321
    %v2605 = vunpack.c.l.b16 %v1322
    %v2606 = vunpack.c.l.b16 %v1323
    %v2607 = vunpack.c.l.b16 %v1324
    %v2608 = vunpack.c.l.b16 %v1325
    %v2609 = vunpack.c.l.b16 %v1326
    %v2610 = vunpack.c.l.b16 %v1327
    %v2611 = vunpack.c.l.b16 %v1328
    %v2612 = vunpack.c.l.b16 %v1329
    %v2613 = vunpack.c.l.b16 %v1330
    %v2614 = vunpack.c.l.b16 %v1331
    %v2615 = vunpack.c.l.b16 %v1332
    %v2616 = vunpack.c.l.b16 %v1333
    %v2617 = vunpack.c.l.b16 %v1334
    %v2618 = vunpack.c.l.b16 %v1335
    %v2619 = vunpack.c.l.b16 %v1336
    %v2620 = vunpack.c.l.b16 %v1337
    %v2621 = vunpack.c.l.b16 %v1338
    %v2622 = vunpack.c.l.b16 %v1339
    %v2623 = vunpack.c.l.b16 %v1340
    %v2624 = vunpack.c.l.b16 %v1341
    %v2625 = vunpack.c.l.b16 %v1342
    %v2626 = vunpack.c.l.b16 %v1343
    %v2627 = vunpack.c.l.b16 %v1344
    %v2628 = vunpack.c.l.b16 %v1345
    %v2629 = vunpack.c.l.b16 %v1346
    %v2630 = vunpack.c.l.b16 %v1347
    %v2631 = vunpack.c.l.b16 %v1348
    %v2632 = vunpack.c.l.b16 %v1349
    %v2633 = vunpack.c.l.b16 %v1350
    %v2634 = vunpack.c.l.b16 %v1351
    %v2635 = vunpack.c.l.b16 %v1352
    %v2636 = vunpack.c.l.b16 %v1353
    %v2637 = vunpack.c.l.b16 %v1354
    %v2638 = vunpack.c.l.b16 %v1355
    %v2639 = vunpack.c.l.b16 %v1356
    %v2640 = vunpack.c.l.b16 %v1357
    %v2641 = vunpack.c.l.b16 %v1358
    %v2642 = vunpack.c.l.b16 %v1359
    %v2643 = vunpack.c.l.b16 %v1360
    %v2644 = vunpack.c.l.b16 %v1361
    %v2645 = vunpack.c.l.b16 %v1362
    %v2646 = vunpack.c.l.b16 %v1363
    %v2647 = vunpack.c.l.b16 %v1364
    %v2648 = vunpack.c.l.b16 %v1365
    %v2649 = vunpack.c.l.b16 %v1366
    %v2650 = vunpack.c.l.b16 %v1367
    %v2651 = vunpack.c.l.b16 %v1368
    %v2652 = vunpack.c.l.b16 %v1369
    %v2653 = vunpack.c.l.b16 %v1370
    %v2654 = vunpack.c.l.b16 %v1371
    %v2655 = vunpack.c.l.b16 %v1372
    %v2656 = vunpack.c.l.b16 %v1373
    %v2657 = vunpack.c.l.b16 %v1374
    %v2658 = vunpack.c.l.b16 %v1375
    %v2659 = vunpack.c.l.b16 %v1376
    %v2660 = vpack.c.b16 %v2597, %v2596
    %v2661 = vpack.c.b16 %v2599, %v2598
    %v2662 = vpack.c.b16 %v2601, %v2600
    %v2663 = vpack.c.b16 %v2603, %v2602
    %v2664 = vpack.c.b16 %v2605, %v2604
    %v2665 = vpack.c.b16 %v2607, %v2606
    %v2666 = vpack.c.b16 %v2609, %v2608
    %v2667 = vpack.c.b16 %v2611, %v2610
    %v2668 = vpack.c.b16 %v2613, %v2612
    %v2669 = vpack.c.b16 %v2615, %v2614
    %v2670 = vpack.c.b16 %v2617, %v2616
    %v2671 = vpack.c.b16 %v2619, %v2618
    %v2672 = vpack.c.b16 %v2621, %v2620
    %v2673 = vpack.c.b16 %v2623, %v2622
    %v2674 = vpack.c.b16 %v2625, %v2624
    %v2675 = vpack.c.b16 %v2627, %v2626
    %v2676 = vpack.c.b16 %v2629, %v2628
    %v2677 = vpack.c.b16 %v2631, %v2630
    %v2678 = vpack.c.b16 %v2633, %v2632
    %v2679 = vpack.c.b16 %v2635, %v2634
    %v2680 = vpack.c.b16 %v2637, %v2636
    %v2681 = vpack.c.b16 %v2639, %v2638
    %v2682 = vpack.c.b16 %v2641, %v2640
    %v2683 = vpack.c.b16 %v2643, %v2642
    %v2684 = vpack.c.b16 %v2645, %v2644
    %v2685 = vpack.c.b16 %v2647, %v2646
    %v2686 = vpack.c.b16 %v2649, %v2648
    %v2687 = vpack.c.b16 %v2651, %v2650
    %v2688 = vpack.c.b16 %v2653, %v2652
    %v2689 = vpack.c.b16 %v2655, %v2654
    %v2690 = vpack.c.b16 %v2657, %v2656
    %v2691 = vpack.c.b16 %v2659, %v2658
    %2692 = vrot.lane.b32.xlu0 %v2660, 12
    %v2693 = vpop.permute.xlu0 %2692
    %2694 = vrot.lane.b32.xlu0 %v2661, 12
    %v2695 = vpop.permute.xlu0 %2694
    %2696 = vrot.lane.b32.xlu0 %v2662, 12
    %v2697 = vpop.permute.xlu0 %2696
    %2698 = vrot.lane.b32.xlu0 %v2663, 12
    %v2699 = vpop.permute.xlu0 %2698
    %2700 = vrot.lane.b32.xlu0 %v2664, 12
    %v2701 = vpop.permute.xlu0 %2700
    %2702 = vrot.lane.b32.xlu0 %v2665, 12
    %v2703 = vpop.permute.xlu0 %2702
    %2704 = vrot.lane.b32.xlu0 %v2666, 12
    %v2705 = vpop.permute.xlu0 %2704
    %2706 = vrot.lane.b32.xlu0 %v2667, 12
    %v2707 = vpop.permute.xlu0 %2706
    %2708 = vrot.lane.b32.xlu0 %v2668, 12
    %v2709 = vpop.permute.xlu0 %2708
    %2710 = vrot.lane.b32.xlu0 %v2669, 12
    %v2711 = vpop.permute.xlu0 %2710
    %2712 = vrot.lane.b32.xlu0 %v2670, 12
    %v2713 = vpop.permute.xlu0 %2712
    %2714 = vrot.lane.b32.xlu0 %v2671, 12
    %v2715 = vpop.permute.xlu0 %2714
    %2716 = vrot.lane.b32.xlu0 %v2672, 12
    %v2717 = vpop.permute.xlu0 %2716
    %2718 = vrot.lane.b32.xlu0 %v2673, 12
    %v2719 = vpop.permute.xlu0 %2718
    %2720 = vrot.lane.b32.xlu0 %v2674, 12
    %v2721 = vpop.permute.xlu0 %2720
    %2722 = vrot.lane.b32.xlu0 %v2675, 12
    %v2723 = vpop.permute.xlu0 %2722
    %2724 = vrot.lane.b32.xlu0 %v2676, 12
    %v2725 = vpop.permute.xlu0 %2724
    %2726 = vrot.lane.b32.xlu0 %v2677, 12
    %v2727 = vpop.permute.xlu0 %2726
    %2728 = vrot.lane.b32.xlu0 %v2678, 12
    %v2729 = vpop.permute.xlu0 %2728
    %2730 = vrot.lane.b32.xlu0 %v2679, 12
    %v2731 = vpop.permute.xlu0 %2730
    %2732 = vrot.lane.b32.xlu0 %v2680, 12
    %v2733 = vpop.permute.xlu0 %2732
    %2734 = vrot.lane.b32.xlu0 %v2681, 12
    %v2735 = vpop.permute.xlu0 %2734
    %2736 = vrot.lane.b32.xlu0 %v2682, 12
    %v2737 = vpop.permute.xlu0 %2736
    %2738 = vrot.lane.b32.xlu0 %v2683, 12
    %v2739 = vpop.permute.xlu0 %2738
    %2740 = vrot.lane.b32.xlu0 %v2684, 12
    %v2741 = vpop.permute.xlu0 %2740
    %2742 = vrot.lane.b32.xlu0 %v2685, 12
    %v2743 = vpop.permute.xlu0 %2742
    %2744 = vrot.lane.b32.xlu0 %v2686, 12
    %v2745 = vpop.permute.xlu0 %2744
    %2746 = vrot.lane.b32.xlu0 %v2687, 12
    %v2747 = vpop.permute.xlu0 %2746
    %2748 = vrot.lane.b32.xlu0 %v2688, 12
    %v2749 = vpop.permute.xlu0 %2748
    %2750 = vrot.lane.b32.xlu0 %v2689, 12
    %v2751 = vpop.permute.xlu0 %2750
    %2752 = vrot.lane.b32.xlu0 %v2690, 12
    %v2753 = vpop.permute.xlu0 %2752
    %2754 = vrot.lane.b32.xlu0 %v2691, 12
    %v2755 = vpop.permute.xlu0 %2754
    %v2788 = vunpack.c.l.b16 %v1377
    %v2789 = vunpack.c.l.b16 %v1378
    %v2790 = vunpack.c.l.b16 %v1379
    %v2791 = vunpack.c.l.b16 %v1380
    %v2792 = vunpack.c.l.b16 %v1381
    %v2793 = vunpack.c.l.b16 %v1382
    %v2794 = vunpack.c.l.b16 %v1383
    %v2795 = vunpack.c.l.b16 %v1384
    %v2796 = vunpack.c.l.b16 %v1385
    %v2797 = vunpack.c.l.b16 %v1386
    %v2798 = vunpack.c.l.b16 %v1387
    %v2799 = vunpack.c.l.b16 %v1388
    %v2800 = vunpack.c.l.b16 %v1389
    %v2801 = vunpack.c.l.b16 %v1390
    %v2802 = vunpack.c.l.b16 %v1391
    %v2803 = vunpack.c.l.b16 %v1392
    %v2804 = vunpack.c.l.b16 %v1393
    %v2805 = vunpack.c.l.b16 %v1394
    %v2806 = vunpack.c.l.b16 %v1395
    %v2807 = vunpack.c.l.b16 %v1396
    %v2808 = vunpack.c.l.b16 %v1397
    %v2809 = vunpack.c.l.b16 %v1398
    %v2810 = vunpack.c.l.b16 %v1399
    %v2811 = vunpack.c.l.b16 %v1400
    %v2812 = vunpack.c.l.b16 %v1401
    %v2813 = vunpack.c.l.b16 %v1402
    %v2814 = vunpack.c.l.b16 %v1403
    %v2815 = vunpack.c.l.b16 %v1404
    %v2816 = vunpack.c.l.b16 %v1405
    %v2817 = vunpack.c.l.b16 %v1406
    %v2818 = vunpack.c.l.b16 %v1407
    %v2819 = vunpack.c.l.b16 %v1408
    %v2820 = vpack.c.b16 %v2788, %v2788
    %v2821 = vpack.c.b16 %v2789, %v2789
    %v2822 = vpack.c.b16 %v2790, %v2790
    %v2823 = vpack.c.b16 %v2791, %v2791
    %v2824 = vpack.c.b16 %v2792, %v2792
    %v2825 = vpack.c.b16 %v2793, %v2793
    %v2826 = vpack.c.b16 %v2794, %v2794
    %v2827 = vpack.c.b16 %v2795, %v2795
    %v2828 = vpack.c.b16 %v2796, %v2796
    %v2829 = vpack.c.b16 %v2797, %v2797
    %v2830 = vpack.c.b16 %v2798, %v2798
    %v2831 = vpack.c.b16 %v2799, %v2799
    %v2832 = vpack.c.b16 %v2800, %v2800
    %v2833 = vpack.c.b16 %v2801, %v2801
    %v2834 = vpack.c.b16 %v2802, %v2802
    %v2835 = vpack.c.b16 %v2803, %v2803
    %v2836 = vpack.c.b16 %v2804, %v2804
    %v2837 = vpack.c.b16 %v2805, %v2805
    %v2838 = vpack.c.b16 %v2806, %v2806
    %v2839 = vpack.c.b16 %v2807, %v2807
    %v2840 = vpack.c.b16 %v2808, %v2808
    %v2841 = vpack.c.b16 %v2809, %v2809
    %v2842 = vpack.c.b16 %v2810, %v2810
    %v2843 = vpack.c.b16 %v2811, %v2811
    %v2844 = vpack.c.b16 %v2812, %v2812
    %v2845 = vpack.c.b16 %v2813, %v2813
    %v2846 = vpack.c.b16 %v2814, %v2814
    %v2847 = vpack.c.b16 %v2815, %v2815
    %v2848 = vpack.c.b16 %v2816, %v2816
    %v2849 = vpack.c.b16 %v2817, %v2817
    %v2850 = vpack.c.b16 %v2818, %v2818
    %v2851 = vpack.c.b16 %v2819, %v2819
    %v2853 = vshrl.u32 %v2660, 16
    %v2855 = vshll.u32 %v2660, 16
    %v2857 = vrot.slane %v2855, 1
    %v2858 = vor.u32 %v2853, %v2857
    %v2860 = vshll.u32 %v2820, 16
    %v2862 = vrot.slane %v2860, 1
    %v2863 = vsel %vm1826, %v2858, %v2862
    %v2865 = vshrl.u32 %v2661, 16
    %v2867 = vshll.u32 %v2661, 16
    %v2869 = vrot.slane %v2867, 1
    %v2870 = vor.u32 %v2865, %v2869
    %v2872 = vshll.u32 %v2821, 16
    %v2874 = vrot.slane %v2872, 1
    %v2875 = vsel %vm1826, %v2870, %v2874
    %v2877 = vshrl.u32 %v2662, 16
    %v2879 = vshll.u32 %v2662, 16
    %v2881 = vrot.slane %v2879, 1
    %v2882 = vor.u32 %v2877, %v2881
    %v2884 = vshll.u32 %v2822, 16
    %v2886 = vrot.slane %v2884, 1
    %v2887 = vsel %vm1826, %v2882, %v2886
    %v2889 = vshrl.u32 %v2663, 16
    %v2891 = vshll.u32 %v2663, 16
    %v2893 = vrot.slane %v2891, 1
    %v2894 = vor.u32 %v2889, %v2893
    %v2896 = vshll.u32 %v2823, 16
    %v2898 = vrot.slane %v2896, 1
    %v2899 = vsel %vm1826, %v2894, %v2898
    %v2901 = vshrl.u32 %v2664, 16
    %v2903 = vshll.u32 %v2664, 16
    %v2905 = vrot.slane %v2903, 1
    %v2906 = vor.u32 %v2901, %v2905
    %v2908 = vshll.u32 %v2824, 16
    %v2910 = vrot.slane %v2908, 1
    %v2911 = vsel %vm1826, %v2906, %v2910
    %v2913 = vshrl.u32 %v2665, 16
    %v2915 = vshll.u32 %v2665, 16
    %v2917 = vrot.slane %v2915, 1
    %v2918 = vor.u32 %v2913, %v2917
    %v2920 = vshll.u32 %v2825, 16
    %v2922 = vrot.slane %v2920, 1
    %v2923 = vsel %vm1826, %v2918, %v2922
    %v2925 = vshrl.u32 %v2666, 16
    %v2927 = vshll.u32 %v2666, 16
    %v2929 = vrot.slane %v2927, 1
    %v2930 = vor.u32 %v2925, %v2929
    %v2932 = vshll.u32 %v2826, 16
    %v2934 = vrot.slane %v2932, 1
    %v2935 = vsel %vm1826, %v2930, %v2934
    %v2937 = vshrl.u32 %v2667, 16
    %v2939 = vshll.u32 %v2667, 16
    %v2941 = vrot.slane %v2939, 1
    %v2942 = vor.u32 %v2937, %v2941
    %v2944 = vshll.u32 %v2827, 16
    %v2946 = vrot.slane %v2944, 1
    %v2947 = vsel %vm1826, %v2942, %v2946
    %v2949 = vshrl.u32 %v2668, 16
    %v2951 = vshll.u32 %v2668, 16
    %v2953 = vrot.slane %v2951, 1
    %v2954 = vor.u32 %v2949, %v2953
    %v2956 = vshll.u32 %v2828, 16
    %v2958 = vrot.slane %v2956, 1
    %v2959 = vsel %vm1826, %v2954, %v2958
    %v2961 = vshrl.u32 %v2669, 16
    %v2963 = vshll.u32 %v2669, 16
    %v2965 = vrot.slane %v2963, 1
    %v2966 = vor.u32 %v2961, %v2965
    %v2968 = vshll.u32 %v2829, 16
    %v2970 = vrot.slane %v2968, 1
    %v2971 = vsel %vm1826, %v2966, %v2970
    %v2973 = vshrl.u32 %v2670, 16
    %v2975 = vshll.u32 %v2670, 16
    %v2977 = vrot.slane %v2975, 1
    %v2978 = vor.u32 %v2973, %v2977
    %v2980 = vshll.u32 %v2830, 16
    %v2982 = vrot.slane %v2980, 1
    %v2983 = vsel %vm1826, %v2978, %v2982
    %v2985 = vshrl.u32 %v2671, 16
    %v2987 = vshll.u32 %v2671, 16
    %v2989 = vrot.slane %v2987, 1
    %v2990 = vor.u32 %v2985, %v2989
    %v2992 = vshll.u32 %v2831, 16
    %v2994 = vrot.slane %v2992, 1
    %v2995 = vsel %vm1826, %v2990, %v2994
    %v2997 = vshrl.u32 %v2672, 16
    %v2999 = vshll.u32 %v2672, 16
    %v3001 = vrot.slane %v2999, 1
    %v3002 = vor.u32 %v2997, %v3001
    %v3004 = vshll.u32 %v2832, 16
    %v3006 = vrot.slane %v3004, 1
    %v3007 = vsel %vm1826, %v3002, %v3006
    %v3009 = vshrl.u32 %v2673, 16
    %v3011 = vshll.u32 %v2673, 16
    %v3013 = vrot.slane %v3011, 1
    %v3014 = vor.u32 %v3009, %v3013
    %v3016 = vshll.u32 %v2833, 16
    %v3018 = vrot.slane %v3016, 1
    %v3019 = vsel %vm1826, %v3014, %v3018
    %v3021 = vshrl.u32 %v2674, 16
    %v3023 = vshll.u32 %v2674, 16
    %v3025 = vrot.slane %v3023, 1
    %v3026 = vor.u32 %v3021, %v3025
    %v3028 = vshll.u32 %v2834, 16
    %v3030 = vrot.slane %v3028, 1
    %v3031 = vsel %vm1826, %v3026, %v3030
    %v3033 = vshrl.u32 %v2675, 16
    %v3035 = vshll.u32 %v2675, 16
    %v3037 = vrot.slane %v3035, 1
    %v3038 = vor.u32 %v3033, %v3037
    %v3040 = vshll.u32 %v2835, 16
    %v3042 = vrot.slane %v3040, 1
    %v3043 = vsel %vm1826, %v3038, %v3042
    %v3045 = vshrl.u32 %v2676, 16
    %v3047 = vshll.u32 %v2676, 16
    %v3049 = vrot.slane %v3047, 1
    %v3050 = vor.u32 %v3045, %v3049
    %v3052 = vshll.u32 %v2836, 16
    %v3054 = vrot.slane %v3052, 1
    %v3055 = vsel %vm1826, %v3050, %v3054
    %v3057 = vshrl.u32 %v2677, 16
    %v3059 = vshll.u32 %v2677, 16
    %v3061 = vrot.slane %v3059, 1
    %v3062 = vor.u32 %v3057, %v3061
    %v3064 = vshll.u32 %v2837, 16
    %v3066 = vrot.slane %v3064, 1
    %v3067 = vsel %vm1826, %v3062, %v3066
    %v3069 = vshrl.u32 %v2678, 16
    %v3071 = vshll.u32 %v2678, 16
    %v3073 = vrot.slane %v3071, 1
    %v3074 = vor.u32 %v3069, %v3073
    %v3076 = vshll.u32 %v2838, 16
    %v3078 = vrot.slane %v3076, 1
    %v3079 = vsel %vm1826, %v3074, %v3078
    %v3081 = vshrl.u32 %v2679, 16
    %v3083 = vshll.u32 %v2679, 16
    %v3085 = vrot.slane %v3083, 1
    %v3086 = vor.u32 %v3081, %v3085
    %v3088 = vshll.u32 %v2839, 16
    %v3090 = vrot.slane %v3088, 1
    %v3091 = vsel %vm1826, %v3086, %v3090
    %v3093 = vshrl.u32 %v2680, 16
    %v3095 = vshll.u32 %v2680, 16
    %v3097 = vrot.slane %v3095, 1
    %v3098 = vor.u32 %v3093, %v3097
    %v3100 = vshll.u32 %v2840, 16
    %v3102 = vrot.slane %v3100, 1
    %v3103 = vsel %vm1826, %v3098, %v3102
    %v3105 = vshrl.u32 %v2681, 16
    %v3107 = vshll.u32 %v2681, 16
    %v3109 = vrot.slane %v3107, 1
    %v3110 = vor.u32 %v3105, %v3109
    %v3112 = vshll.u32 %v2841, 16
    %v3114 = vrot.slane %v3112, 1
    %v3115 = vsel %vm1826, %v3110, %v3114
    %v3117 = vshrl.u32 %v2682, 16
    %v3119 = vshll.u32 %v2682, 16
    %v3121 = vrot.slane %v3119, 1
    %v3122 = vor.u32 %v3117, %v3121
    %v3124 = vshll.u32 %v2842, 16
    %v3126 = vrot.slane %v3124, 1
    %v3127 = vsel %vm1826, %v3122, %v3126
    %v3129 = vshrl.u32 %v2683, 16
    %v3131 = vshll.u32 %v2683, 16
    %v3133 = vrot.slane %v3131, 1
    %v3134 = vor.u32 %v3129, %v3133
    %v3136 = vshll.u32 %v2843, 16
    %v3138 = vrot.slane %v3136, 1
    %v3139 = vsel %vm1826, %v3134, %v3138
    %v3141 = vshrl.u32 %v2684, 16
    %v3143 = vshll.u32 %v2684, 16
    %v3145 = vrot.slane %v3143, 1
    %v3146 = vor.u32 %v3141, %v3145
    %v3148 = vshll.u32 %v2844, 16
    %v3150 = vrot.slane %v3148, 1
    %v3151 = vsel %vm1826, %v3146, %v3150
    %v3153 = vshrl.u32 %v2685, 16
    %v3155 = vshll.u32 %v2685, 16
    %v3157 = vrot.slane %v3155, 1
    %v3158 = vor.u32 %v3153, %v3157
    %v3160 = vshll.u32 %v2845, 16
    %v3162 = vrot.slane %v3160, 1
    %v3163 = vsel %vm1826, %v3158, %v3162
    %v3165 = vshrl.u32 %v2686, 16
    %v3167 = vshll.u32 %v2686, 16
    %v3169 = vrot.slane %v3167, 1
    %v3170 = vor.u32 %v3165, %v3169
    %v3172 = vshll.u32 %v2846, 16
    %v3174 = vrot.slane %v3172, 1
    %v3175 = vsel %vm1826, %v3170, %v3174
    %v3177 = vshrl.u32 %v2687, 16
    %v3179 = vshll.u32 %v2687, 16
    %v3181 = vrot.slane %v3179, 1
    %v3182 = vor.u32 %v3177, %v3181
    %v3184 = vshll.u32 %v2847, 16
    %v3186 = vrot.slane %v3184, 1
    %v3187 = vsel %vm1826, %v3182, %v3186
    %v3189 = vshrl.u32 %v2688, 16
    %v3191 = vshll.u32 %v2688, 16
    %v3193 = vrot.slane %v3191, 1
    %v3194 = vor.u32 %v3189, %v3193
    %v3196 = vshll.u32 %v2848, 16
    %v3198 = vrot.slane %v3196, 1
    %v3199 = vsel %vm1826, %v3194, %v3198
    %v3201 = vshrl.u32 %v2689, 16
    %v3203 = vshll.u32 %v2689, 16
    %v3205 = vrot.slane %v3203, 1
    %v3206 = vor.u32 %v3201, %v3205
    %v3208 = vshll.u32 %v2849, 16
    %v3210 = vrot.slane %v3208, 1
    %v3211 = vsel %vm1826, %v3206, %v3210
    %v3213 = vshrl.u32 %v2690, 16
    %v3215 = vshll.u32 %v2690, 16
    %v3217 = vrot.slane %v3215, 1
    %v3218 = vor.u32 %v3213, %v3217
    %v3220 = vshll.u32 %v2850, 16
    %v3222 = vrot.slane %v3220, 1
    %v3223 = vsel %vm1826, %v3218, %v3222
    %v3225 = vshrl.u32 %v2691, 16
    %v3227 = vshll.u32 %v2691, 16
    %v3229 = vrot.slane %v3227, 1
    %v3230 = vor.u32 %v3225, %v3229
    %v3232 = vshll.u32 %v2851, 16
    %v3234 = vrot.slane %v3232, 1
    %v3235 = vsel %vm1826, %v3230, %v3234
    %3236 = vrot.lane.b32.xlu0 %v2863, 16
    %v3237 = vpop.permute.xlu0 %3236
    %3238 = vrot.lane.b32.xlu0 %v2875, 16
    %v3239 = vpop.permute.xlu0 %3238
    %3240 = vrot.lane.b32.xlu0 %v2887, 16
    %v3241 = vpop.permute.xlu0 %3240
    %3242 = vrot.lane.b32.xlu0 %v2899, 16
    %v3243 = vpop.permute.xlu0 %3242
    %3244 = vrot.lane.b32.xlu0 %v2911, 16
    %v3245 = vpop.permute.xlu0 %3244
    %3246 = vrot.lane.b32.xlu0 %v2923, 16
    %v3247 = vpop.permute.xlu0 %3246
    %3248 = vrot.lane.b32.xlu0 %v2935, 16
    %v3249 = vpop.permute.xlu0 %3248
    %3250 = vrot.lane.b32.xlu0 %v2947, 16
    %v3251 = vpop.permute.xlu0 %3250
    %3252 = vrot.lane.b32.xlu0 %v2959, 16
    %v3253 = vpop.permute.xlu0 %3252
    %3254 = vrot.lane.b32.xlu0 %v2971, 16
    %v3255 = vpop.permute.xlu0 %3254
    %3256 = vrot.lane.b32.xlu0 %v2983, 16
    %v3257 = vpop.permute.xlu0 %3256
    %3258 = vrot.lane.b32.xlu0 %v2995, 16
    %v3259 = vpop.permute.xlu0 %3258
    %3260 = vrot.lane.b32.xlu0 %v3007, 16
    %v3261 = vpop.permute.xlu0 %3260
    %3262 = vrot.lane.b32.xlu0 %v3019, 16
    %v3263 = vpop.permute.xlu0 %3262
    %3264 = vrot.lane.b32.xlu0 %v3031, 16
    %v3265 = vpop.permute.xlu0 %3264
    %3266 = vrot.lane.b32.xlu0 %v3043, 16
    %v3267 = vpop.permute.xlu0 %3266
    %3268 = vrot.lane.b32.xlu0 %v3055, 16
    %v3269 = vpop.permute.xlu0 %3268
    %3270 = vrot.lane.b32.xlu0 %v3067, 16
    %v3271 = vpop.permute.xlu0 %3270
    %3272 = vrot.lane.b32.xlu0 %v3079, 16
    %v3273 = vpop.permute.xlu0 %3272
    %3274 = vrot.lane.b32.xlu0 %v3091, 16
    %v3275 = vpop.permute.xlu0 %3274
    %3276 = vrot.lane.b32.xlu0 %v3103, 16
    %v3277 = vpop.permute.xlu0 %3276
    %3278 = vrot.lane.b32.xlu0 %v3115, 16
    %v3279 = vpop.permute.xlu0 %3278
    %3280 = vrot.lane.b32.xlu0 %v3127, 16
    %v3281 = vpop.permute.xlu0 %3280
    %3282 = vrot.lane.b32.xlu0 %v3139, 16
    %v3283 = vpop.permute.xlu0 %3282
    %3284 = vrot.lane.b32.xlu0 %v3151, 16
    %v3285 = vpop.permute.xlu0 %3284
    %3286 = vrot.lane.b32.xlu0 %v3163, 16
    %v3287 = vpop.permute.xlu0 %3286
    %3288 = vrot.lane.b32.xlu0 %v3175, 16
    %v3289 = vpop.permute.xlu0 %3288
    %3290 = vrot.lane.b32.xlu0 %v3187, 16
    %v3291 = vpop.permute.xlu0 %3290
    %3292 = vrot.lane.b32.xlu0 %v3199, 16
    %v3293 = vpop.permute.xlu0 %3292
    %3294 = vrot.lane.b32.xlu0 %v3211, 16
    %v3295 = vpop.permute.xlu0 %3294
    %3296 = vrot.lane.b32.xlu0 %v3223, 16
    %v3297 = vpop.permute.xlu0 %3296
    %3298 = vrot.lane.b32.xlu0 %v3235, 16
    %v3299 = vpop.permute.xlu0 %3298
    %v3332 = vunpack.c.l.b16 %v1409
    %v3333 = vunpack.c.l.b16 %v1410
    %v3334 = vunpack.c.l.b16 %v1411
    %v3335 = vunpack.c.l.b16 %v1412
    %v3336 = vunpack.c.l.b16 %v1413
    %v3337 = vunpack.c.l.b16 %v1414
    %v3338 = vunpack.c.l.b16 %v1415
    %v3339 = vunpack.c.l.b16 %v1416
    %v3340 = vunpack.c.l.b16 %v1417
    %v3341 = vunpack.c.l.b16 %v1418
    %v3342 = vunpack.c.l.b16 %v1419
    %v3343 = vunpack.c.l.b16 %v1420
    %v3344 = vunpack.c.l.b16 %v1421
    %v3345 = vunpack.c.l.b16 %v1422
    %v3346 = vunpack.c.l.b16 %v1423
    %v3347 = vunpack.c.l.b16 %v1424
    %v3348 = vunpack.c.l.b16 %v1425
    %v3349 = vunpack.c.l.b16 %v1426
    %v3350 = vunpack.c.l.b16 %v1427
    %v3351 = vunpack.c.l.b16 %v1428
    %v3352 = vunpack.c.l.b16 %v1429
    %v3353 = vunpack.c.l.b16 %v1430
    %v3354 = vunpack.c.l.b16 %v1431
    %v3355 = vunpack.c.l.b16 %v1432
    %v3356 = vunpack.c.l.b16 %v1433
    %v3357 = vunpack.c.l.b16 %v1434
    %v3358 = vunpack.c.l.b16 %v1435
    %v3359 = vunpack.c.l.b16 %v1436
    %v3360 = vunpack.c.l.b16 %v1437
    %v3361 = vunpack.c.l.b16 %v1438
    %v3362 = vunpack.c.l.b16 %v1439
    %v3363 = vunpack.c.l.b16 %v1440
    %v3364 = vpack.c.b16 %v2597, %v3332
    %v3365 = vpack.c.b16 %v2599, %v3333
    %v3366 = vpack.c.b16 %v2601, %v3334
    %v3367 = vpack.c.b16 %v2603, %v3335
    %v3368 = vpack.c.b16 %v2605, %v3336
    %v3369 = vpack.c.b16 %v2607, %v3337
    %v3370 = vpack.c.b16 %v2609, %v3338
    %v3371 = vpack.c.b16 %v2611, %v3339
    %v3372 = vpack.c.b16 %v2613, %v3340
    %v3373 = vpack.c.b16 %v2615, %v3341
    %v3374 = vpack.c.b16 %v2617, %v3342
    %v3375 = vpack.c.b16 %v2619, %v3343
    %v3376 = vpack.c.b16 %v2621, %v3344
    %v3377 = vpack.c.b16 %v2623, %v3345
    %v3378 = vpack.c.b16 %v2625, %v3346
    %v3379 = vpack.c.b16 %v2627, %v3347
    %v3380 = vpack.c.b16 %v2629, %v3348
    %v3381 = vpack.c.b16 %v2631, %v3349
    %v3382 = vpack.c.b16 %v2633, %v3350
    %v3383 = vpack.c.b16 %v2635, %v3351
    %v3384 = vpack.c.b16 %v2637, %v3352
    %v3385 = vpack.c.b16 %v2639, %v3353
    %v3386 = vpack.c.b16 %v2641, %v3354
    %v3387 = vpack.c.b16 %v2643, %v3355
    %v3388 = vpack.c.b16 %v2645, %v3356
    %v3389 = vpack.c.b16 %v2647, %v3357
    %v3390 = vpack.c.b16 %v2649, %v3358
    %v3391 = vpack.c.b16 %v2651, %v3359
    %v3392 = vpack.c.b16 %v2653, %v3360
    %v3393 = vpack.c.b16 %v2655, %v3361
    %v3394 = vpack.c.b16 %v2657, %v3362
    %v3395 = vpack.c.b16 %v2659, %v3363
    %v3396 = vrot.slane %v3364, 1
    %v3397 = vrot.slane %v2820, 1
    %v3398 = vsel %vm2371, %v3396, %v3397
    %v3399 = vrot.slane %v3365, 1
    %v3400 = vrot.slane %v2821, 1
    %v3401 = vsel %vm2371, %v3399, %v3400
    %v3402 = vrot.slane %v3366, 1
    %v3403 = vrot.slane %v2822, 1
    %v3404 = vsel %vm2371, %v3402, %v3403
    %v3405 = vrot.slane %v3367, 1
    %v3406 = vrot.slane %v2823, 1
    %v3407 = vsel %vm2371, %v3405, %v3406
    %v3408 = vrot.slane %v3368, 1
    %v3409 = vrot.slane %v2824, 1
    %v3410 = vsel %vm2371, %v3408, %v3409
    %v3411 = vrot.slane %v3369, 1
    %v3412 = vrot.slane %v2825, 1
    %v3413 = vsel %vm2371, %v3411, %v3412
    %v3414 = vrot.slane %v3370, 1
    %v3415 = vrot.slane %v2826, 1
    %v3416 = vsel %vm2371, %v3414, %v3415
    %v3417 = vrot.slane %v3371, 1
    %v3418 = vrot.slane %v2827, 1
    %v3419 = vsel %vm2371, %v3417, %v3418
    %v3420 = vrot.slane %v3372, 1
    %v3421 = vrot.slane %v2828, 1
    %v3422 = vsel %vm2371, %v3420, %v3421
    %v3423 = vrot.slane %v3373, 1
    %v3424 = vrot.slane %v2829, 1
    %v3425 = vsel %vm2371, %v3423, %v3424
    %v3426 = vrot.slane %v3374, 1
    %v3427 = vrot.slane %v2830, 1
    %v3428 = vsel %vm2371, %v3426, %v3427
    %v3429 = vrot.slane %v3375, 1
    %v3430 = vrot.slane %v2831, 1
    %v3431 = vsel %vm2371, %v3429, %v3430
    %v3432 = vrot.slane %v3376, 1
    %v3433 = vrot.slane %v2832, 1
    %v3434 = vsel %vm2371, %v3432, %v3433
    %v3435 = vrot.slane %v3377, 1
    %v3436 = vrot.slane %v2833, 1
    %v3437 = vsel %vm2371, %v3435, %v3436
    %v3438 = vrot.slane %v3378, 1
    %v3439 = vrot.slane %v2834, 1
    %v3440 = vsel %vm2371, %v3438, %v3439
    %v3441 = vrot.slane %v3379, 1
    %v3442 = vrot.slane %v2835, 1
    %v3443 = vsel %vm2371, %v3441, %v3442
    %v3444 = vrot.slane %v3380, 1
    %v3445 = vrot.slane %v2836, 1
    %v3446 = vsel %vm2371, %v3444, %v3445
    %v3447 = vrot.slane %v3381, 1
    %v3448 = vrot.slane %v2837, 1
    %v3449 = vsel %vm2371, %v3447, %v3448
    %v3450 = vrot.slane %v3382, 1
    %v3451 = vrot.slane %v2838, 1
    %v3452 = vsel %vm2371, %v3450, %v3451
    %v3453 = vrot.slane %v3383, 1
    %v3454 = vrot.slane %v2839, 1
    %v3455 = vsel %vm2371, %v3453, %v3454
    %v3456 = vrot.slane %v3384, 1
    %v3457 = vrot.slane %v2840, 1
    %v3458 = vsel %vm2371, %v3456, %v3457
    %v3459 = vrot.slane %v3385, 1
    %v3460 = vrot.slane %v2841, 1
    %v3461 = vsel %vm2371, %v3459, %v3460
    %v3462 = vrot.slane %v3386, 1
    %v3463 = vrot.slane %v2842, 1
    %v3464 = vsel %vm2371, %v3462, %v3463
    %v3465 = vrot.slane %v3387, 1
    %v3466 = vrot.slane %v2843, 1
    %v3467 = vsel %vm2371, %v3465, %v3466
    %v3468 = vrot.slane %v3388, 1
    %v3469 = vrot.slane %v2844, 1
    %v3470 = vsel %vm2371, %v3468, %v3469
    %v3471 = vrot.slane %v3389, 1
    %v3472 = vrot.slane %v2845, 1
    %v3473 = vsel %vm2371, %v3471, %v3472
    %v3474 = vrot.slane %v3390, 1
    %v3475 = vrot.slane %v2846, 1
    %v3476 = vsel %vm2371, %v3474, %v3475
    %v3477 = vrot.slane %v3391, 1
    %v3478 = vrot.slane %v2847, 1
    %v3479 = vsel %vm2371, %v3477, %v3478
    %v3480 = vrot.slane %v3392, 1
    %v3481 = vrot.slane %v2848, 1
    %v3482 = vsel %vm2371, %v3480, %v3481
    %v3483 = vrot.slane %v3393, 1
    %v3484 = vrot.slane %v2849, 1
    %v3485 = vsel %vm2371, %v3483, %v3484
    %v3486 = vrot.slane %v3394, 1
    %v3487 = vrot.slane %v2850, 1
    %v3488 = vsel %vm2371, %v3486, %v3487
    %v3489 = vrot.slane %v3395, 1
    %v3490 = vrot.slane %v2851, 1
    %v3491 = vsel %vm2371, %v3489, %v3490
    %3492 = vrot.lane.b32.xlu0 %v3398, 20
    %v3493 = vpop.permute.xlu0 %3492
    %3494 = vrot.lane.b32.xlu0 %v3401, 20
    %v3495 = vpop.permute.xlu0 %3494
    %3496 = vrot.lane.b32.xlu0 %v3404, 20
    %v3497 = vpop.permute.xlu0 %3496
    %3498 = vrot.lane.b32.xlu0 %v3407, 20
    %v3499 = vpop.permute.xlu0 %3498
    %3500 = vrot.lane.b32.xlu0 %v3410, 20
    %v3501 = vpop.permute.xlu0 %3500
    %3502 = vrot.lane.b32.xlu0 %v3413, 20
    %v3503 = vpop.permute.xlu0 %3502
    %3504 = vrot.lane.b32.xlu0 %v3416, 20
    %v3505 = vpop.permute.xlu0 %3504
    %3506 = vrot.lane.b32.xlu0 %v3419, 20
    %v3507 = vpop.permute.xlu0 %3506
    %3508 = vrot.lane.b32.xlu0 %v3422, 20
    %v3509 = vpop.permute.xlu0 %3508
    %3510 = vrot.lane.b32.xlu0 %v3425, 20
    %v3511 = vpop.permute.xlu0 %3510
    %3512 = vrot.lane.b32.xlu0 %v3428, 20
    %v3513 = vpop.permute.xlu0 %3512
    %3514 = vrot.lane.b32.xlu0 %v3431, 20
    %v3515 = vpop.permute.xlu0 %3514
    %3516 = vrot.lane.b32.xlu0 %v3434, 20
    %v3517 = vpop.permute.xlu0 %3516
    %3518 = vrot.lane.b32.xlu0 %v3437, 20
    %v3519 = vpop.permute.xlu0 %3518
    %3520 = vrot.lane.b32.xlu0 %v3440, 20
    %v3521 = vpop.permute.xlu0 %3520
    %3522 = vrot.lane.b32.xlu0 %v3443, 20
    %v3523 = vpop.permute.xlu0 %3522
    %3524 = vrot.lane.b32.xlu0 %v3446, 20
    %v3525 = vpop.permute.xlu0 %3524
    %3526 = vrot.lane.b32.xlu0 %v3449, 20
    %v3527 = vpop.permute.xlu0 %3526
    %3528 = vrot.lane.b32.xlu0 %v3452, 20
    %v3529 = vpop.permute.xlu0 %3528
    %3530 = vrot.lane.b32.xlu0 %v3455, 20
    %v3531 = vpop.permute.xlu0 %3530
    %3532 = vrot.lane.b32.xlu0 %v3458, 20
    %v3533 = vpop.permute.xlu0 %3532
    %3534 = vrot.lane.b32.xlu0 %v3461, 20
    %v3535 = vpop.permute.xlu0 %3534
    %3536 = vrot.lane.b32.xlu0 %v3464, 20
    %v3537 = vpop.permute.xlu0 %3536
    %3538 = vrot.lane.b32.xlu0 %v3467, 20
    %v3539 = vpop.permute.xlu0 %3538
    %3540 = vrot.lane.b32.xlu0 %v3470, 20
    %v3541 = vpop.permute.xlu0 %3540
    %3542 = vrot.lane.b32.xlu0 %v3473, 20
    %v3543 = vpop.permute.xlu0 %3542
    %3544 = vrot.lane.b32.xlu0 %v3476, 20
    %v3545 = vpop.permute.xlu0 %3544
    %3546 = vrot.lane.b32.xlu0 %v3479, 20
    %v3547 = vpop.permute.xlu0 %3546
    %3548 = vrot.lane.b32.xlu0 %v3482, 20
    %v3549 = vpop.permute.xlu0 %3548
    %3550 = vrot.lane.b32.xlu0 %v3485, 20
    %v3551 = vpop.permute.xlu0 %3550
    %3552 = vrot.lane.b32.xlu0 %v3488, 20
    %v3553 = vpop.permute.xlu0 %3552
    %3554 = vrot.lane.b32.xlu0 %v3491, 20
    %v3555 = vpop.permute.xlu0 %3554
    %v3620 = vunpack.c.l.b16 %v1442
    %v3621 = vunpack.c.l.b16 %v1443
    %v3622 = vunpack.c.l.b16 %v1444
    %v3623 = vunpack.c.l.b16 %v1445
    %v3624 = vunpack.c.l.b16 %v1446
    %v3625 = vunpack.c.l.b16 %v1447
    %v3626 = vunpack.c.l.b16 %v1448
    %v3627 = vunpack.c.l.b16 %v1449
    %v3628 = vunpack.c.l.b16 %v1450
    %v3629 = vunpack.c.l.b16 %v1451
    %v3630 = vunpack.c.l.b16 %v1452
    %v3631 = vunpack.c.l.b16 %v1453
    %v3632 = vunpack.c.l.b16 %v1454
    %v3633 = vunpack.c.l.b16 %v1455
    %v3634 = vunpack.c.l.b16 %v1456
    %v3635 = vunpack.c.l.b16 %v1457
    %v3636 = vunpack.c.l.b16 %v1458
    %v3637 = vunpack.c.l.b16 %v1459
    %v3638 = vunpack.c.l.b16 %v1460
    %v3639 = vunpack.c.l.b16 %v1461
    %v3640 = vunpack.c.l.b16 %v1462
    %v3641 = vunpack.c.l.b16 %v1463
    %v3642 = vunpack.c.l.b16 %v1464
    %v3643 = vunpack.c.l.b16 %v1465
    %v3644 = vunpack.c.l.b16 %v1466
    %v3645 = vunpack.c.l.b16 %v1467
    %v3646 = vunpack.c.l.b16 %v1468
    %v3647 = vunpack.c.l.b16 %v1469
    %v3648 = vunpack.c.l.b16 %v1470
    %v3649 = vunpack.c.l.b16 %v1471
    %v3650 = vunpack.c.l.b16 %v1472
    %v3651 = vunpack.c.l.b16 %v1473
    %v3652 = vunpack.c.l.b16 %v1474
    %v3653 = vunpack.c.l.b16 %v1475
    %v3654 = vunpack.c.l.b16 %v1476
    %v3655 = vunpack.c.l.b16 %v1477
    %v3656 = vunpack.c.l.b16 %v1478
    %v3657 = vunpack.c.l.b16 %v1479
    %v3658 = vunpack.c.l.b16 %v1480
    %v3659 = vunpack.c.l.b16 %v1481
    %v3660 = vunpack.c.l.b16 %v1482
    %v3661 = vunpack.c.l.b16 %v1483
    %v3662 = vunpack.c.l.b16 %v1484
    %v3663 = vunpack.c.l.b16 %v1485
    %v3664 = vunpack.c.l.b16 %v1486
    %v3665 = vunpack.c.l.b16 %v1487
    %v3666 = vunpack.c.l.b16 %v1488
    %v3667 = vunpack.c.l.b16 %v1489
    %v3668 = vunpack.c.l.b16 %v1490
    %v3669 = vunpack.c.l.b16 %v1491
    %v3670 = vunpack.c.l.b16 %v1492
    %v3671 = vunpack.c.l.b16 %v1493
    %v3672 = vunpack.c.l.b16 %v1494
    %v3673 = vunpack.c.l.b16 %v1495
    %v3674 = vunpack.c.l.b16 %v1496
    %v3675 = vunpack.c.l.b16 %v1497
    %v3676 = vunpack.c.l.b16 %v1498
    %v3677 = vunpack.c.l.b16 %v1499
    %v3678 = vunpack.c.l.b16 %v1500
    %v3679 = vunpack.c.l.b16 %v1501
    %v3680 = vunpack.c.l.b16 %v1502
    %v3681 = vunpack.c.l.b16 %v1503
    %v3682 = vunpack.c.l.b16 %v1504
    %v3683 = vunpack.c.l.b16 %v1505
    %v3684 = vpack.c.b16 %v3621, %v3620
    %v3685 = vpack.c.b16 %v3623, %v3622
    %v3686 = vpack.c.b16 %v3625, %v3624
    %v3687 = vpack.c.b16 %v3627, %v3626
    %v3688 = vpack.c.b16 %v3629, %v3628
    %v3689 = vpack.c.b16 %v3631, %v3630
    %v3690 = vpack.c.b16 %v3633, %v3632
    %v3691 = vpack.c.b16 %v3635, %v3634
    %v3692 = vpack.c.b16 %v3637, %v3636
    %v3693 = vpack.c.b16 %v3639, %v3638
    %v3694 = vpack.c.b16 %v3641, %v3640
    %v3695 = vpack.c.b16 %v3643, %v3642
    %v3696 = vpack.c.b16 %v3645, %v3644
    %v3697 = vpack.c.b16 %v3647, %v3646
    %v3698 = vpack.c.b16 %v3649, %v3648
    %v3699 = vpack.c.b16 %v3651, %v3650
    %v3700 = vpack.c.b16 %v3653, %v3652
    %v3701 = vpack.c.b16 %v3655, %v3654
    %v3702 = vpack.c.b16 %v3657, %v3656
    %v3703 = vpack.c.b16 %v3659, %v3658
    %v3704 = vpack.c.b16 %v3661, %v3660
    %v3705 = vpack.c.b16 %v3663, %v3662
    %v3706 = vpack.c.b16 %v3665, %v3664
    %v3707 = vpack.c.b16 %v3667, %v3666
    %v3708 = vpack.c.b16 %v3669, %v3668
    %v3709 = vpack.c.b16 %v3671, %v3670
    %v3710 = vpack.c.b16 %v3673, %v3672
    %v3711 = vpack.c.b16 %v3675, %v3674
    %v3712 = vpack.c.b16 %v3677, %v3676
    %v3713 = vpack.c.b16 %v3679, %v3678
    %v3714 = vpack.c.b16 %v3681, %v3680
    %v3715 = vpack.c.b16 %v3683, %v3682
    %3716 = vrot.lane.b32.xlu0 %v3684, 24
    %v3717 = vpop.permute.xlu0 %3716
    %3718 = vrot.lane.b32.xlu0 %v3685, 24
    %v3719 = vpop.permute.xlu0 %3718
    %3720 = vrot.lane.b32.xlu0 %v3686, 24
    %v3721 = vpop.permute.xlu0 %3720
    %3722 = vrot.lane.b32.xlu0 %v3687, 24
    %v3723 = vpop.permute.xlu0 %3722
    %3724 = vrot.lane.b32.xlu0 %v3688, 24
    %v3725 = vpop.permute.xlu0 %3724
    %3726 = vrot.lane.b32.xlu0 %v3689, 24
    %v3727 = vpop.permute.xlu0 %3726
    %3728 = vrot.lane.b32.xlu0 %v3690, 24
    %v3729 = vpop.permute.xlu0 %3728
    %3730 = vrot.lane.b32.xlu0 %v3691, 24
    %v3731 = vpop.permute.xlu0 %3730
    %3732 = vrot.lane.b32.xlu0 %v3692, 24
    %v3733 = vpop.permute.xlu0 %3732
    %3734 = vrot.lane.b32.xlu0 %v3693, 24
    %v3735 = vpop.permute.xlu0 %3734
    %3736 = vrot.lane.b32.xlu0 %v3694, 24
    %v3737 = vpop.permute.xlu0 %3736
    %3738 = vrot.lane.b32.xlu0 %v3695, 24
    %v3739 = vpop.permute.xlu0 %3738
    %3740 = vrot.lane.b32.xlu0 %v3696, 24
    %v3741 = vpop.permute.xlu0 %3740
    %3742 = vrot.lane.b32.xlu0 %v3697, 24
    %v3743 = vpop.permute.xlu0 %3742
    %3744 = vrot.lane.b32.xlu0 %v3698, 24
    %v3745 = vpop.permute.xlu0 %3744
    %3746 = vrot.lane.b32.xlu0 %v3699, 24
    %v3747 = vpop.permute.xlu0 %3746
    %3748 = vrot.lane.b32.xlu0 %v3700, 24
    %v3749 = vpop.permute.xlu0 %3748
    %3750 = vrot.lane.b32.xlu0 %v3701, 24
    %v3751 = vpop.permute.xlu0 %3750
    %3752 = vrot.lane.b32.xlu0 %v3702, 24
    %v3753 = vpop.permute.xlu0 %3752
    %3754 = vrot.lane.b32.xlu0 %v3703, 24
    %v3755 = vpop.permute.xlu0 %3754
    %3756 = vrot.lane.b32.xlu0 %v3704, 24
    %v3757 = vpop.permute.xlu0 %3756
    %3758 = vrot.lane.b32.xlu0 %v3705, 24
    %v3759 = vpop.permute.xlu0 %3758
    %3760 = vrot.lane.b32.xlu0 %v3706, 24
    %v3761 = vpop.permute.xlu0 %3760
    %3762 = vrot.lane.b32.xlu0 %v3707, 24
    %v3763 = vpop.permute.xlu0 %3762
    %3764 = vrot.lane.b32.xlu0 %v3708, 24
    %v3765 = vpop.permute.xlu0 %3764
    %3766 = vrot.lane.b32.xlu0 %v3709, 24
    %v3767 = vpop.permute.xlu0 %3766
    %3768 = vrot.lane.b32.xlu0 %v3710, 24
    %v3769 = vpop.permute.xlu0 %3768
    %3770 = vrot.lane.b32.xlu0 %v3711, 24
    %v3771 = vpop.permute.xlu0 %3770
    %3772 = vrot.lane.b32.xlu0 %v3712, 24
    %v3773 = vpop.permute.xlu0 %3772
    %3774 = vrot.lane.b32.xlu0 %v3713, 24
    %v3775 = vpop.permute.xlu0 %3774
    %3776 = vrot.lane.b32.xlu0 %v3714, 24
    %v3777 = vpop.permute.xlu0 %3776
    %3778 = vrot.lane.b32.xlu0 %v3715, 24
    %v3779 = vpop.permute.xlu0 %3778
    %v3812 = vunpack.c.l.b16 %v1506
    %v3813 = vunpack.c.l.b16 %v1507
    %v3814 = vunpack.c.l.b16 %v1508
    %v3815 = vunpack.c.l.b16 %v1509
    %v3816 = vunpack.c.l.b16 %v1510
    %v3817 = vunpack.c.l.b16 %v1511
    %v3818 = vunpack.c.l.b16 %v1512
    %v3819 = vunpack.c.l.b16 %v1513
    %v3820 = vunpack.c.l.b16 %v1514
    %v3821 = vunpack.c.l.b16 %v1515
    %v3822 = vunpack.c.l.b16 %v1516
    %v3823 = vunpack.c.l.b16 %v1517
    %v3824 = vunpack.c.l.b16 %v1518
    %v3825 = vunpack.c.l.b16 %v1519
    %v3826 = vunpack.c.l.b16 %v1520
    %v3827 = vunpack.c.l.b16 %v1521
    %v3828 = vunpack.c.l.b16 %v1522
    %v3829 = vunpack.c.l.b16 %v1523
    %v3830 = vunpack.c.l.b16 %v1524
    %v3831 = vunpack.c.l.b16 %v1525
    %v3832 = vunpack.c.l.b16 %v1526
    %v3833 = vunpack.c.l.b16 %v1527
    %v3834 = vunpack.c.l.b16 %v1528
    %v3835 = vunpack.c.l.b16 %v1529
    %v3836 = vunpack.c.l.b16 %v1530
    %v3837 = vunpack.c.l.b16 %v1531
    %v3838 = vunpack.c.l.b16 %v1532
    %v3839 = vunpack.c.l.b16 %v1533
    %v3840 = vunpack.c.l.b16 %v1534
    %v3841 = vunpack.c.l.b16 %v1535
    %v3842 = vunpack.c.l.b16 %v1536
    %v3843 = vunpack.c.l.b16 %v1537
    %v3844 = vpack.c.b16 %v3812, %v3812
    %v3845 = vpack.c.b16 %v3813, %v3813
    %v3846 = vpack.c.b16 %v3814, %v3814
    %v3847 = vpack.c.b16 %v3815, %v3815
    %v3848 = vpack.c.b16 %v3816, %v3816
    %v3849 = vpack.c.b16 %v3817, %v3817
    %v3850 = vpack.c.b16 %v3818, %v3818
    %v3851 = vpack.c.b16 %v3819, %v3819
    %v3852 = vpack.c.b16 %v3820, %v3820
    %v3853 = vpack.c.b16 %v3821, %v3821
    %v3854 = vpack.c.b16 %v3822, %v3822
    %v3855 = vpack.c.b16 %v3823, %v3823
    %v3856 = vpack.c.b16 %v3824, %v3824
    %v3857 = vpack.c.b16 %v3825, %v3825
    %v3858 = vpack.c.b16 %v3826, %v3826
    %v3859 = vpack.c.b16 %v3827, %v3827
    %v3860 = vpack.c.b16 %v3828, %v3828
    %v3861 = vpack.c.b16 %v3829, %v3829
    %v3862 = vpack.c.b16 %v3830, %v3830
    %v3863 = vpack.c.b16 %v3831, %v3831
    %v3864 = vpack.c.b16 %v3832, %v3832
    %v3865 = vpack.c.b16 %v3833, %v3833
    %v3866 = vpack.c.b16 %v3834, %v3834
    %v3867 = vpack.c.b16 %v3835, %v3835
    %v3868 = vpack.c.b16 %v3836, %v3836
    %v3869 = vpack.c.b16 %v3837, %v3837
    %v3870 = vpack.c.b16 %v3838, %v3838
    %v3871 = vpack.c.b16 %v3839, %v3839
    %v3872 = vpack.c.b16 %v3840, %v3840
    %v3873 = vpack.c.b16 %v3841, %v3841
    %v3874 = vpack.c.b16 %v3842, %v3842
    %v3875 = vpack.c.b16 %v3843, %v3843
    %v3877 = vshrl.u32 %v3684, 16
    %v3879 = vshll.u32 %v3684, 16
    %v3881 = vrot.slane %v3879, 1
    %v3882 = vor.u32 %v3877, %v3881
    %v3884 = vshll.u32 %v3844, 16
    %v3886 = vrot.slane %v3884, 1
    %v3887 = vsel %vm1826, %v3882, %v3886
    %v3889 = vshrl.u32 %v3685, 16
    %v3891 = vshll.u32 %v3685, 16
    %v3893 = vrot.slane %v3891, 1
    %v3894 = vor.u32 %v3889, %v3893
    %v3896 = vshll.u32 %v3845, 16
    %v3898 = vrot.slane %v3896, 1
    %v3899 = vsel %vm1826, %v3894, %v3898
    %v3901 = vshrl.u32 %v3686, 16
    %v3903 = vshll.u32 %v3686, 16
    %v3905 = vrot.slane %v3903, 1
    %v3906 = vor.u32 %v3901, %v3905
    %v3908 = vshll.u32 %v3846, 16
    %v3910 = vrot.slane %v3908, 1
    %v3911 = vsel %vm1826, %v3906, %v3910
    %v3913 = vshrl.u32 %v3687, 16
    %v3915 = vshll.u32 %v3687, 16
    %v3917 = vrot.slane %v3915, 1
    %v3918 = vor.u32 %v3913, %v3917
    %v3920 = vshll.u32 %v3847, 16
    %v3922 = vrot.slane %v3920, 1
    %v3923 = vsel %vm1826, %v3918, %v3922
    %v3925 = vshrl.u32 %v3688, 16
    %v3927 = vshll.u32 %v3688, 16
    %v3929 = vrot.slane %v3927, 1
    %v3930 = vor.u32 %v3925, %v3929
    %v3932 = vshll.u32 %v3848, 16
    %v3934 = vrot.slane %v3932, 1
    %v3935 = vsel %vm1826, %v3930, %v3934
    %v3937 = vshrl.u32 %v3689, 16
    %v3939 = vshll.u32 %v3689, 16
    %v3941 = vrot.slane %v3939, 1
    %v3942 = vor.u32 %v3937, %v3941
    %v3944 = vshll.u32 %v3849, 16
    %v3946 = vrot.slane %v3944, 1
    %v3947 = vsel %vm1826, %v3942, %v3946
    %v3949 = vshrl.u32 %v3690, 16
    %v3951 = vshll.u32 %v3690, 16
    %v3953 = vrot.slane %v3951, 1
    %v3954 = vor.u32 %v3949, %v3953
    %v3956 = vshll.u32 %v3850, 16
    %v3958 = vrot.slane %v3956, 1
    %v3959 = vsel %vm1826, %v3954, %v3958
    %v3961 = vshrl.u32 %v3691, 16
    %v3963 = vshll.u32 %v3691, 16
    %v3965 = vrot.slane %v3963, 1
    %v3966 = vor.u32 %v3961, %v3965
    %v3968 = vshll.u32 %v3851, 16
    %v3970 = vrot.slane %v3968, 1
    %v3971 = vsel %vm1826, %v3966, %v3970
    %v3973 = vshrl.u32 %v3692, 16
    %v3975 = vshll.u32 %v3692, 16
    %v3977 = vrot.slane %v3975, 1
    %v3978 = vor.u32 %v3973, %v3977
    %v3980 = vshll.u32 %v3852, 16
    %v3982 = vrot.slane %v3980, 1
    %v3983 = vsel %vm1826, %v3978, %v3982
    %v3985 = vshrl.u32 %v3693, 16
    %v3987 = vshll.u32 %v3693, 16
    %v3989 = vrot.slane %v3987, 1
    %v3990 = vor.u32 %v3985, %v3989
    %v3992 = vshll.u32 %v3853, 16
    %v3994 = vrot.slane %v3992, 1
    %v3995 = vsel %vm1826, %v3990, %v3994
    %v3997 = vshrl.u32 %v3694, 16
    %v3999 = vshll.u32 %v3694, 16
    %v4001 = vrot.slane %v3999, 1
    %v4002 = vor.u32 %v3997, %v4001
    %v4004 = vshll.u32 %v3854, 16
    %v4006 = vrot.slane %v4004, 1
    %v4007 = vsel %vm1826, %v4002, %v4006
    %v4009 = vshrl.u32 %v3695, 16
    %v4011 = vshll.u32 %v3695, 16
    %v4013 = vrot.slane %v4011, 1
    %v4014 = vor.u32 %v4009, %v4013
    %v4016 = vshll.u32 %v3855, 16
    %v4018 = vrot.slane %v4016, 1
    %v4019 = vsel %vm1826, %v4014, %v4018
    %v4021 = vshrl.u32 %v3696, 16
    %v4023 = vshll.u32 %v3696, 16
    %v4025 = vrot.slane %v4023, 1
    %v4026 = vor.u32 %v4021, %v4025
    %v4028 = vshll.u32 %v3856, 16
    %v4030 = vrot.slane %v4028, 1
    %v4031 = vsel %vm1826, %v4026, %v4030
    %v4033 = vshrl.u32 %v3697, 16
    %v4035 = vshll.u32 %v3697, 16
    %v4037 = vrot.slane %v4035, 1
    %v4038 = vor.u32 %v4033, %v4037
    %v4040 = vshll.u32 %v3857, 16
    %v4042 = vrot.slane %v4040, 1
    %v4043 = vsel %vm1826, %v4038, %v4042
    %v4045 = vshrl.u32 %v3698, 16
    %v4047 = vshll.u32 %v3698, 16
    %v4049 = vrot.slane %v4047, 1
    %v4050 = vor.u32 %v4045, %v4049
    %v4052 = vshll.u32 %v3858, 16
    %v4054 = vrot.slane %v4052, 1
    %v4055 = vsel %vm1826, %v4050, %v4054
    %v4057 = vshrl.u32 %v3699, 16
    %v4059 = vshll.u32 %v3699, 16
    %v4061 = vrot.slane %v4059, 1
    %v4062 = vor.u32 %v4057, %v4061
    %v4064 = vshll.u32 %v3859, 16
    %v4066 = vrot.slane %v4064, 1
    %v4067 = vsel %vm1826, %v4062, %v4066
    %v4069 = vshrl.u32 %v3700, 16
    %v4071 = vshll.u32 %v3700, 16
    %v4073 = vrot.slane %v4071, 1
    %v4074 = vor.u32 %v4069, %v4073
    %v4076 = vshll.u32 %v3860, 16
    %v4078 = vrot.slane %v4076, 1
    %v4079 = vsel %vm1826, %v4074, %v4078
    %v4081 = vshrl.u32 %v3701, 16
    %v4083 = vshll.u32 %v3701, 16
    %v4085 = vrot.slane %v4083, 1
    %v4086 = vor.u32 %v4081, %v4085
    %v4088 = vshll.u32 %v3861, 16
    %v4090 = vrot.slane %v4088, 1
    %v4091 = vsel %vm1826, %v4086, %v4090
    %v4093 = vshrl.u32 %v3702, 16
    %v4095 = vshll.u32 %v3702, 16
    %v4097 = vrot.slane %v4095, 1
    %v4098 = vor.u32 %v4093, %v4097
    %v4100 = vshll.u32 %v3862, 16
    %v4102 = vrot.slane %v4100, 1
    %v4103 = vsel %vm1826, %v4098, %v4102
    %v4105 = vshrl.u32 %v3703, 16
    %v4107 = vshll.u32 %v3703, 16
    %v4109 = vrot.slane %v4107, 1
    %v4110 = vor.u32 %v4105, %v4109
    %v4112 = vshll.u32 %v3863, 16
    %v4114 = vrot.slane %v4112, 1
    %v4115 = vsel %vm1826, %v4110, %v4114
    %v4117 = vshrl.u32 %v3704, 16
    %v4119 = vshll.u32 %v3704, 16
    %v4121 = vrot.slane %v4119, 1
    %v4122 = vor.u32 %v4117, %v4121
    %v4124 = vshll.u32 %v3864, 16
    %v4126 = vrot.slane %v4124, 1
    %v4127 = vsel %vm1826, %v4122, %v4126
    %v4129 = vshrl.u32 %v3705, 16
    %v4131 = vshll.u32 %v3705, 16
    %v4133 = vrot.slane %v4131, 1
    %v4134 = vor.u32 %v4129, %v4133
    %v4136 = vshll.u32 %v3865, 16
    %v4138 = vrot.slane %v4136, 1
    %v4139 = vsel %vm1826, %v4134, %v4138
    %v4141 = vshrl.u32 %v3706, 16
    %v4143 = vshll.u32 %v3706, 16
    %v4145 = vrot.slane %v4143, 1
    %v4146 = vor.u32 %v4141, %v4145
    %v4148 = vshll.u32 %v3866, 16
    %v4150 = vrot.slane %v4148, 1
    %v4151 = vsel %vm1826, %v4146, %v4150
    %v4153 = vshrl.u32 %v3707, 16
    %v4155 = vshll.u32 %v3707, 16
    %v4157 = vrot.slane %v4155, 1
    %v4158 = vor.u32 %v4153, %v4157
    %v4160 = vshll.u32 %v3867, 16
    %v4162 = vrot.slane %v4160, 1
    %v4163 = vsel %vm1826, %v4158, %v4162
    %v4165 = vshrl.u32 %v3708, 16
    %v4167 = vshll.u32 %v3708, 16
    %v4169 = vrot.slane %v4167, 1
    %v4170 = vor.u32 %v4165, %v4169
    %v4172 = vshll.u32 %v3868, 16
    %v4174 = vrot.slane %v4172, 1
    %v4175 = vsel %vm1826, %v4170, %v4174
    %v4177 = vshrl.u32 %v3709, 16
    %v4179 = vshll.u32 %v3709, 16
    %v4181 = vrot.slane %v4179, 1
    %v4182 = vor.u32 %v4177, %v4181
    %v4184 = vshll.u32 %v3869, 16
    %v4186 = vrot.slane %v4184, 1
    %v4187 = vsel %vm1826, %v4182, %v4186
    %v4189 = vshrl.u32 %v3710, 16
    %v4191 = vshll.u32 %v3710, 16
    %v4193 = vrot.slane %v4191, 1
    %v4194 = vor.u32 %v4189, %v4193
    %v4196 = vshll.u32 %v3870, 16
    %v4198 = vrot.slane %v4196, 1
    %v4199 = vsel %vm1826, %v4194, %v4198
    %v4201 = vshrl.u32 %v3711, 16
    %v4203 = vshll.u32 %v3711, 16
    %v4205 = vrot.slane %v4203, 1
    %v4206 = vor.u32 %v4201, %v4205
    %v4208 = vshll.u32 %v3871, 16
    %v4210 = vrot.slane %v4208, 1
    %v4211 = vsel %vm1826, %v4206, %v4210
    %v4213 = vshrl.u32 %v3712, 16
    %v4215 = vshll.u32 %v3712, 16
    %v4217 = vrot.slane %v4215, 1
    %v4218 = vor.u32 %v4213, %v4217
    %v4220 = vshll.u32 %v3872, 16
    %v4222 = vrot.slane %v4220, 1
    %v4223 = vsel %vm1826, %v4218, %v4222
    %v4225 = vshrl.u32 %v3713, 16
    %v4227 = vshll.u32 %v3713, 16
    %v4229 = vrot.slane %v4227, 1
    %v4230 = vor.u32 %v4225, %v4229
    %v4232 = vshll.u32 %v3873, 16
    %v4234 = vrot.slane %v4232, 1
    %v4235 = vsel %vm1826, %v4230, %v4234
    %v4237 = vshrl.u32 %v3714, 16
    %v4239 = vshll.u32 %v3714, 16
    %v4241 = vrot.slane %v4239, 1
    %v4242 = vor.u32 %v4237, %v4241
    %v4244 = vshll.u32 %v3874, 16
    %v4246 = vrot.slane %v4244, 1
    %v4247 = vsel %vm1826, %v4242, %v4246
    %v4249 = vshrl.u32 %v3715, 16
    %v4251 = vshll.u32 %v3715, 16
    %v4253 = vrot.slane %v4251, 1
    %v4254 = vor.u32 %v4249, %v4253
    %v4256 = vshll.u32 %v3875, 16
    %v4258 = vrot.slane %v4256, 1
    %v4259 = vsel %vm1826, %v4254, %v4258
    %4260 = vrot.lane.b32.xlu0 %v3887, 28
    %v4261 = vpop.permute.xlu0 %4260
    %4262 = vrot.lane.b32.xlu0 %v3899, 28
    %v4263 = vpop.permute.xlu0 %4262
    %4264 = vrot.lane.b32.xlu0 %v3911, 28
    %v4265 = vpop.permute.xlu0 %4264
    %4266 = vrot.lane.b32.xlu0 %v3923, 28
    %v4267 = vpop.permute.xlu0 %4266
    %4268 = vrot.lane.b32.xlu0 %v3935, 28
    %v4269 = vpop.permute.xlu0 %4268
    %4270 = vrot.lane.b32.xlu0 %v3947, 28
    %v4271 = vpop.permute.xlu0 %4270
    %4272 = vrot.lane.b32.xlu0 %v3959, 28
    %v4273 = vpop.permute.xlu0 %4272
    %4274 = vrot.lane.b32.xlu0 %v3971, 28
    %v4275 = vpop.permute.xlu0 %4274
    %4276 = vrot.lane.b32.xlu0 %v3983, 28
    %v4277 = vpop.permute.xlu0 %4276
    %4278 = vrot.lane.b32.xlu0 %v3995, 28
    %v4279 = vpop.permute.xlu0 %4278
    %4280 = vrot.lane.b32.xlu0 %v4007, 28
    %v4281 = vpop.permute.xlu0 %4280
    %4282 = vrot.lane.b32.xlu0 %v4019, 28
    %v4283 = vpop.permute.xlu0 %4282
    %4284 = vrot.lane.b32.xlu0 %v4031, 28
    %v4285 = vpop.permute.xlu0 %4284
    %4286 = vrot.lane.b32.xlu0 %v4043, 28
    %v4287 = vpop.permute.xlu0 %4286
    %4288 = vrot.lane.b32.xlu0 %v4055, 28
    %v4289 = vpop.permute.xlu0 %4288
    %4290 = vrot.lane.b32.xlu0 %v4067, 28
    %v4291 = vpop.permute.xlu0 %4290
    %4292 = vrot.lane.b32.xlu0 %v4079, 28
    %v4293 = vpop.permute.xlu0 %4292
    %4294 = vrot.lane.b32.xlu0 %v4091, 28
    %v4295 = vpop.permute.xlu0 %4294
    %4296 = vrot.lane.b32.xlu0 %v4103, 28
    %v4297 = vpop.permute.xlu0 %4296
    %4298 = vrot.lane.b32.xlu0 %v4115, 28
    %v4299 = vpop.permute.xlu0 %4298
    %4300 = vrot.lane.b32.xlu0 %v4127, 28
    %v4301 = vpop.permute.xlu0 %4300
    %4302 = vrot.lane.b32.xlu0 %v4139, 28
    %v4303 = vpop.permute.xlu0 %4302
    %4304 = vrot.lane.b32.xlu0 %v4151, 28
    %v4305 = vpop.permute.xlu0 %4304
    %4306 = vrot.lane.b32.xlu0 %v4163, 28
    %v4307 = vpop.permute.xlu0 %4306
    %4308 = vrot.lane.b32.xlu0 %v4175, 28
    %v4309 = vpop.permute.xlu0 %4308
    %4310 = vrot.lane.b32.xlu0 %v4187, 28
    %v4311 = vpop.permute.xlu0 %4310
    %4312 = vrot.lane.b32.xlu0 %v4199, 28
    %v4313 = vpop.permute.xlu0 %4312
    %4314 = vrot.lane.b32.xlu0 %v4211, 28
    %v4315 = vpop.permute.xlu0 %4314
    %4316 = vrot.lane.b32.xlu0 %v4223, 28
    %v4317 = vpop.permute.xlu0 %4316
    %4318 = vrot.lane.b32.xlu0 %v4235, 28
    %v4319 = vpop.permute.xlu0 %4318
    %4320 = vrot.lane.b32.xlu0 %v4247, 28
    %v4321 = vpop.permute.xlu0 %4320
    %4322 = vrot.lane.b32.xlu0 %v4259, 28
    %v4323 = vpop.permute.xlu0 %4322
    %v4356 = vunpack.c.l.b16 %v1538
    %v4357 = vunpack.c.l.b16 %v1539
    %v4358 = vunpack.c.l.b16 %v1540
    %v4359 = vunpack.c.l.b16 %v1541
    %v4360 = vunpack.c.l.b16 %v1542
    %v4361 = vunpack.c.l.b16 %v1543
    %v4362 = vunpack.c.l.b16 %v1544
    %v4363 = vunpack.c.l.b16 %v1545
    %v4364 = vunpack.c.l.b16 %v1546
    %v4365 = vunpack.c.l.b16 %v1547
    %v4366 = vunpack.c.l.b16 %v1548
    %v4367 = vunpack.c.l.b16 %v1549
    %v4368 = vunpack.c.l.b16 %v1550
    %v4369 = vunpack.c.l.b16 %v1551
    %v4370 = vunpack.c.l.b16 %v1552
    %v4371 = vunpack.c.l.b16 %v1553
    %v4372 = vunpack.c.l.b16 %v1554
    %v4373 = vunpack.c.l.b16 %v1555
    %v4374 = vunpack.c.l.b16 %v1556
    %v4375 = vunpack.c.l.b16 %v1557
    %v4376 = vunpack.c.l.b16 %v1558
    %v4377 = vunpack.c.l.b16 %v1559
    %v4378 = vunpack.c.l.b16 %v1560
    %v4379 = vunpack.c.l.b16 %v1561
    %v4380 = vunpack.c.l.b16 %v1562
    %v4381 = vunpack.c.l.b16 %v1563
    %v4382 = vunpack.c.l.b16 %v1564
    %v4383 = vunpack.c.l.b16 %v1565
    %v4384 = vunpack.c.l.b16 %v1566
    %v4385 = vunpack.c.l.b16 %v1567
    %v4386 = vunpack.c.l.b16 %v1568
    %v4387 = vunpack.c.l.b16 %v1569
    %v4388 = vpack.c.b16 %v3621, %v4356
    %v4389 = vpack.c.b16 %v3623, %v4357
    %v4390 = vpack.c.b16 %v3625, %v4358
    %v4391 = vpack.c.b16 %v3627, %v4359
    %v4392 = vpack.c.b16 %v3629, %v4360
    %v4393 = vpack.c.b16 %v3631, %v4361
    %v4394 = vpack.c.b16 %v3633, %v4362
    %v4395 = vpack.c.b16 %v3635, %v4363
    %v4396 = vpack.c.b16 %v3637, %v4364
    %v4397 = vpack.c.b16 %v3639, %v4365
    %v4398 = vpack.c.b16 %v3641, %v4366
    %v4399 = vpack.c.b16 %v3643, %v4367
    %v4400 = vpack.c.b16 %v3645, %v4368
    %v4401 = vpack.c.b16 %v3647, %v4369
    %v4402 = vpack.c.b16 %v3649, %v4370
    %v4403 = vpack.c.b16 %v3651, %v4371
    %v4404 = vpack.c.b16 %v3653, %v4372
    %v4405 = vpack.c.b16 %v3655, %v4373
    %v4406 = vpack.c.b16 %v3657, %v4374
    %v4407 = vpack.c.b16 %v3659, %v4375
    %v4408 = vpack.c.b16 %v3661, %v4376
    %v4409 = vpack.c.b16 %v3663, %v4377
    %v4410 = vpack.c.b16 %v3665, %v4378
    %v4411 = vpack.c.b16 %v3667, %v4379
    %v4412 = vpack.c.b16 %v3669, %v4380
    %v4413 = vpack.c.b16 %v3671, %v4381
    %v4414 = vpack.c.b16 %v3673, %v4382
    %v4415 = vpack.c.b16 %v3675, %v4383
    %v4416 = vpack.c.b16 %v3677, %v4384
    %v4417 = vpack.c.b16 %v3679, %v4385
    %v4418 = vpack.c.b16 %v3681, %v4386
    %v4419 = vpack.c.b16 %v3683, %v4387
    %v4420 = vrot.slane %v4388, 1
    %v4421 = vrot.slane %v3844, 1
    %v4422 = vsel %vm2371, %v4420, %v4421
    %v4423 = vrot.slane %v4389, 1
    %v4424 = vrot.slane %v3845, 1
    %v4425 = vsel %vm2371, %v4423, %v4424
    %v4426 = vrot.slane %v4390, 1
    %v4427 = vrot.slane %v3846, 1
    %v4428 = vsel %vm2371, %v4426, %v4427
    %v4429 = vrot.slane %v4391, 1
    %v4430 = vrot.slane %v3847, 1
    %v4431 = vsel %vm2371, %v4429, %v4430
    %v4432 = vrot.slane %v4392, 1
    %v4433 = vrot.slane %v3848, 1
    %v4434 = vsel %vm2371, %v4432, %v4433
    %v4435 = vrot.slane %v4393, 1
    %v4436 = vrot.slane %v3849, 1
    %v4437 = vsel %vm2371, %v4435, %v4436
    %v4438 = vrot.slane %v4394, 1
    %v4439 = vrot.slane %v3850, 1
    %v4440 = vsel %vm2371, %v4438, %v4439
    %v4441 = vrot.slane %v4395, 1
    %v4442 = vrot.slane %v3851, 1
    %v4443 = vsel %vm2371, %v4441, %v4442
    %v4444 = vrot.slane %v4396, 1
    %v4445 = vrot.slane %v3852, 1
    %v4446 = vsel %vm2371, %v4444, %v4445
    %v4447 = vrot.slane %v4397, 1
    %v4448 = vrot.slane %v3853, 1
    %v4449 = vsel %vm2371, %v4447, %v4448
    %v4450 = vrot.slane %v4398, 1
    %v4451 = vrot.slane %v3854, 1
    %v4452 = vsel %vm2371, %v4450, %v4451
    %v4453 = vrot.slane %v4399, 1
    %v4454 = vrot.slane %v3855, 1
    %v4455 = vsel %vm2371, %v4453, %v4454
    %v4456 = vrot.slane %v4400, 1
    %v4457 = vrot.slane %v3856, 1
    %v4458 = vsel %vm2371, %v4456, %v4457
    %v4459 = vrot.slane %v4401, 1
    %v4460 = vrot.slane %v3857, 1
    %v4461 = vsel %vm2371, %v4459, %v4460
    %v4462 = vrot.slane %v4402, 1
    %v4463 = vrot.slane %v3858, 1
    %v4464 = vsel %vm2371, %v4462, %v4463
    %v4465 = vrot.slane %v4403, 1
    %v4466 = vrot.slane %v3859, 1
    %v4467 = vsel %vm2371, %v4465, %v4466
    %v4468 = vrot.slane %v4404, 1
    %v4469 = vrot.slane %v3860, 1
    %v4470 = vsel %vm2371, %v4468, %v4469
    %v4471 = vrot.slane %v4405, 1
    %v4472 = vrot.slane %v3861, 1
    %v4473 = vsel %vm2371, %v4471, %v4472
    %v4474 = vrot.slane %v4406, 1
    %v4475 = vrot.slane %v3862, 1
    %v4476 = vsel %vm2371, %v4474, %v4475
    %v4477 = vrot.slane %v4407, 1
    %v4478 = vrot.slane %v3863, 1
    %v4479 = vsel %vm2371, %v4477, %v4478
    %v4480 = vrot.slane %v4408, 1
    %v4481 = vrot.slane %v3864, 1
    %v4482 = vsel %vm2371, %v4480, %v4481
    %v4483 = vrot.slane %v4409, 1
    %v4484 = vrot.slane %v3865, 1
    %v4485 = vsel %vm2371, %v4483, %v4484
    %v4486 = vrot.slane %v4410, 1
    %v4487 = vrot.slane %v3866, 1
    %v4488 = vsel %vm2371, %v4486, %v4487
    %v4489 = vrot.slane %v4411, 1
    %v4490 = vrot.slane %v3867, 1
    %v4491 = vsel %vm2371, %v4489, %v4490
    %v4492 = vrot.slane %v4412, 1
    %v4493 = vrot.slane %v3868, 1
    %v4494 = vsel %vm2371, %v4492, %v4493
    %v4495 = vrot.slane %v4413, 1
    %v4496 = vrot.slane %v3869, 1
    %v4497 = vsel %vm2371, %v4495, %v4496
    %v4498 = vrot.slane %v4414, 1
    %v4499 = vrot.slane %v3870, 1
    %v4500 = vsel %vm2371, %v4498, %v4499
    %v4501 = vrot.slane %v4415, 1
    %v4502 = vrot.slane %v3871, 1
    %v4503 = vsel %vm2371, %v4501, %v4502
    %v4504 = vrot.slane %v4416, 1
    %v4505 = vrot.slane %v3872, 1
    %v4506 = vsel %vm2371, %v4504, %v4505
    %v4507 = vrot.slane %v4417, 1
    %v4508 = vrot.slane %v3873, 1
    %v4509 = vsel %vm2371, %v4507, %v4508
    %v4510 = vrot.slane %v4418, 1
    %v4511 = vrot.slane %v3874, 1
    %v4512 = vsel %vm2371, %v4510, %v4511
    %v4513 = vrot.slane %v4419, 1
    %v4514 = vrot.slane %v3875, 1
    %v4515 = vsel %vm2371, %v4513, %v4514
    %4516 = vrot.lane.b32.xlu0 %v4422, 32
    %v4517 = vpop.permute.xlu0 %4516
    %4518 = vrot.lane.b32.xlu0 %v4425, 32
    %v4519 = vpop.permute.xlu0 %4518
    %4520 = vrot.lane.b32.xlu0 %v4428, 32
    %v4521 = vpop.permute.xlu0 %4520
    %4522 = vrot.lane.b32.xlu0 %v4431, 32
    %v4523 = vpop.permute.xlu0 %4522
    %4524 = vrot.lane.b32.xlu0 %v4434, 32
    %v4525 = vpop.permute.xlu0 %4524
    %4526 = vrot.lane.b32.xlu0 %v4437, 32
    %v4527 = vpop.permute.xlu0 %4526
    %4528 = vrot.lane.b32.xlu0 %v4440, 32
    %v4529 = vpop.permute.xlu0 %4528
    %4530 = vrot.lane.b32.xlu0 %v4443, 32
    %v4531 = vpop.permute.xlu0 %4530
    %4532 = vrot.lane.b32.xlu0 %v4446, 32
    %v4533 = vpop.permute.xlu0 %4532
    %4534 = vrot.lane.b32.xlu0 %v4449, 32
    %v4535 = vpop.permute.xlu0 %4534
    %4536 = vrot.lane.b32.xlu0 %v4452, 32
    %v4537 = vpop.permute.xlu0 %4536
    %4538 = vrot.lane.b32.xlu0 %v4455, 32
    %v4539 = vpop.permute.xlu0 %4538
    %4540 = vrot.lane.b32.xlu0 %v4458, 32
    %v4541 = vpop.permute.xlu0 %4540
    %4542 = vrot.lane.b32.xlu0 %v4461, 32
    %v4543 = vpop.permute.xlu0 %4542
    %4544 = vrot.lane.b32.xlu0 %v4464, 32
    %v4545 = vpop.permute.xlu0 %4544
    %4546 = vrot.lane.b32.xlu0 %v4467, 32
    %v4547 = vpop.permute.xlu0 %4546
    %4548 = vrot.lane.b32.xlu0 %v4470, 32
    %v4549 = vpop.permute.xlu0 %4548
    %4550 = vrot.lane.b32.xlu0 %v4473, 32
    %v4551 = vpop.permute.xlu0 %4550
    %4552 = vrot.lane.b32.xlu0 %v4476, 32
    %v4553 = vpop.permute.xlu0 %4552
    %4554 = vrot.lane.b32.xlu0 %v4479, 32
    %v4555 = vpop.permute.xlu0 %4554
    %4556 = vrot.lane.b32.xlu0 %v4482, 32
    %v4557 = vpop.permute.xlu0 %4556
    %4558 = vrot.lane.b32.xlu0 %v4485, 32
    %v4559 = vpop.permute.xlu0 %4558
    %4560 = vrot.lane.b32.xlu0 %v4488, 32
    %v4561 = vpop.permute.xlu0 %4560
    %4562 = vrot.lane.b32.xlu0 %v4491, 32
    %v4563 = vpop.permute.xlu0 %4562
    %4564 = vrot.lane.b32.xlu0 %v4494, 32
    %v4565 = vpop.permute.xlu0 %4564
    %4566 = vrot.lane.b32.xlu0 %v4497, 32
    %v4567 = vpop.permute.xlu0 %4566
    %4568 = vrot.lane.b32.xlu0 %v4500, 32
    %v4569 = vpop.permute.xlu0 %4568
    %4570 = vrot.lane.b32.xlu0 %v4503, 32
    %v4571 = vpop.permute.xlu0 %4570
    %4572 = vrot.lane.b32.xlu0 %v4506, 32
    %v4573 = vpop.permute.xlu0 %4572
    %4574 = vrot.lane.b32.xlu0 %v4509, 32
    %v4575 = vpop.permute.xlu0 %4574
    %4576 = vrot.lane.b32.xlu0 %v4512, 32
    %v4577 = vpop.permute.xlu0 %4576
    %4578 = vrot.lane.b32.xlu0 %v4515, 32
    %v4579 = vpop.permute.xlu0 %4578
    %vm4580 = vcmask 31744
    %v4582 = vsel %vm4580, %v1698, %v2212
    %v4584 = vsel %vm4580, %v1699, %v2214
    %v4586 = vsel %vm4580, %v1700, %v2216
    %v4588 = vsel %vm4580, %v1701, %v2218
    %v4590 = vsel %vm4580, %v1702, %v2220
    %v4592 = vsel %vm4580, %v1703, %v2222
    %v4594 = vsel %vm4580, %v1704, %v2224
    %v4596 = vsel %vm4580, %v1705, %v2226
    %v4598 = vsel %vm4580, %v1706, %v2228
    %v4600 = vsel %vm4580, %v1707, %v2230
    %v4602 = vsel %vm4580, %v1708, %v2232
    %v4604 = vsel %vm4580, %v1709, %v2234
    %v4606 = vsel %vm4580, %v1710, %v2236
    %v4608 = vsel %vm4580, %v1711, %v2238
    %v4610 = vsel %vm4580, %v1712, %v2240
    %v4612 = vsel %vm4580, %v1713, %v2242
    %v4614 = vsel %vm4580, %v1714, %v2244
    %v4616 = vsel %vm4580, %v1715, %v2246
    %v4618 = vsel %vm4580, %v1716, %v2248
    %v4620 = vsel %vm4580, %v1717, %v2250
    %v4622 = vsel %vm4580, %v1718, %v2252
    %v4624 = vsel %vm4580, %v1719, %v2254
    %v4626 = vsel %vm4580, %v1720, %v2256
    %v4628 = vsel %vm4580, %v1721, %v2258
    %v4630 = vsel %vm4580, %v1722, %v2260
    %v4632 = vsel %vm4580, %v1723, %v2262
    %v4634 = vsel %vm4580, %v1724, %v2264
    %v4636 = vsel %vm4580, %v1725, %v2266
    %v4638 = vsel %vm4580, %v1726, %v2268
    %v4640 = vsel %vm4580, %v1727, %v2270
    %v4642 = vsel %vm4580, %v1728, %v2272
    %v4644 = vsel %vm4580, %v1729, %v2274
    %vm4645 = vcmask 64512
    %v4647 = vsel %vm4645, %v4582, %v2469
    %v4649 = vsel %vm4645, %v4584, %v2471
    %v4651 = vsel %vm4645, %v4586, %v2473
    %v4653 = vsel %vm4645, %v4588, %v2475
    %v4655 = vsel %vm4645, %v4590, %v2477
    %v4657 = vsel %vm4645, %v4592, %v2479
    %v4659 = vsel %vm4645, %v4594, %v2481
    %v4661 = vsel %vm4645, %v4596, %v2483
    %v4663 = vsel %vm4645, %v4598, %v2485
    %v4665 = vsel %vm4645, %v4600, %v2487
    %v4667 = vsel %vm4645, %v4602, %v2489
    %v4669 = vsel %vm4645, %v4604, %v2491
    %v4671 = vsel %vm4645, %v4606, %v2493
    %v4673 = vsel %vm4645, %v4608, %v2495
    %v4675 = vsel %vm4645, %v4610, %v2497
    %v4677 = vsel %vm4645, %v4612, %v2499
    %v4679 = vsel %vm4645, %v4614, %v2501
    %v4681 = vsel %vm4645, %v4616, %v2503
    %v4683 = vsel %vm4645, %v4618, %v2505
    %v4685 = vsel %vm4645, %v4620, %v2507
    %v4687 = vsel %vm4645, %v4622, %v2509
    %v4689 = vsel %vm4645, %v4624, %v2511
    %v4691 = vsel %vm4645, %v4626, %v2513
    %v4693 = vsel %vm4645, %v4628, %v2515
    %v4695 = vsel %vm4645, %v4630, %v2517
    %v4697 = vsel %vm4645, %v4632, %v2519
    %v4699 = vsel %vm4645, %v4634, %v2521
    %v4701 = vsel %vm4645, %v4636, %v2523
    %v4703 = vsel %vm4645, %v4638, %v2525
    %v4705 = vsel %vm4645, %v4640, %v2527
    %v4707 = vsel %vm4645, %v4642, %v2529
    %v4709 = vsel %vm4645, %v4644, %v2531
    %vm4710 = vcmask 97280
    %v4712 = vsel %vm4710, %v4647, %v2693
    %v4714 = vsel %vm4710, %v4649, %v2695
    %v4716 = vsel %vm4710, %v4651, %v2697
    %v4718 = vsel %vm4710, %v4653, %v2699
    %v4720 = vsel %vm4710, %v4655, %v2701
    %v4722 = vsel %vm4710, %v4657, %v2703
    %v4724 = vsel %vm4710, %v4659, %v2705
    %v4726 = vsel %vm4710, %v4661, %v2707
    %v4728 = vsel %vm4710, %v4663, %v2709
    %v4730 = vsel %vm4710, %v4665, %v2711
    %v4732 = vsel %vm4710, %v4667, %v2713
    %v4734 = vsel %vm4710, %v4669, %v2715
    %v4736 = vsel %vm4710, %v4671, %v2717
    %v4738 = vsel %vm4710, %v4673, %v2719
    %v4740 = vsel %vm4710, %v4675, %v2721
    %v4742 = vsel %vm4710, %v4677, %v2723
    %v4744 = vsel %vm4710, %v4679, %v2725
    %v4746 = vsel %vm4710, %v4681, %v2727
    %v4748 = vsel %vm4710, %v4683, %v2729
    %v4750 = vsel %vm4710, %v4685, %v2731
    %v4752 = vsel %vm4710, %v4687, %v2733
    %v4754 = vsel %vm4710, %v4689, %v2735
    %v4756 = vsel %vm4710, %v4691, %v2737
    %v4758 = vsel %vm4710, %v4693, %v2739
    %v4760 = vsel %vm4710, %v4695, %v2741
    %v4762 = vsel %vm4710, %v4697, %v2743
    %v4764 = vsel %vm4710, %v4699, %v2745
    %v4766 = vsel %vm4710, %v4701, %v2747
    %v4768 = vsel %vm4710, %v4703, %v2749
    %v4770 = vsel %vm4710, %v4705, %v2751
    %v4772 = vsel %vm4710, %v4707, %v2753
    %v4774 = vsel %vm4710, %v4709, %v2755
    %vm4775 = vcmask 130048
    %v4777 = vsel %vm4775, %v4712, %v3237
    %v4779 = vsel %vm4775, %v4714, %v3239
    %v4781 = vsel %vm4775, %v4716, %v3241
    %v4783 = vsel %vm4775, %v4718, %v3243
    %v4785 = vsel %vm4775, %v4720, %v3245
    %v4787 = vsel %vm4775, %v4722, %v3247
    %v4789 = vsel %vm4775, %v4724, %v3249
    %v4791 = vsel %vm4775, %v4726, %v3251
    %v4793 = vsel %vm4775, %v4728, %v3253
    %v4795 = vsel %vm4775, %v4730, %v3255
    %v4797 = vsel %vm4775, %v4732, %v3257
    %v4799 = vsel %vm4775, %v4734, %v3259
    %v4801 = vsel %vm4775, %v4736, %v3261
    %v4803 = vsel %vm4775, %v4738, %v3263
    %v4805 = vsel %vm4775, %v4740, %v3265
    %v4807 = vsel %vm4775, %v4742, %v3267
    %v4809 = vsel %vm4775, %v4744, %v3269
    %v4811 = vsel %vm4775, %v4746, %v3271
    %v4813 = vsel %vm4775, %v4748, %v3273
    %v4815 = vsel %vm4775, %v4750, %v3275
    %v4817 = vsel %vm4775, %v4752, %v3277
    %v4819 = vsel %vm4775, %v4754, %v3279
    %v4821 = vsel %vm4775, %v4756, %v3281
    %v4823 = vsel %vm4775, %v4758, %v3283
    %v4825 = vsel %vm4775, %v4760, %v3285
    %v4827 = vsel %vm4775, %v4762, %v3287
    %v4829 = vsel %vm4775, %v4764, %v3289
    %v4831 = vsel %vm4775, %v4766, %v3291
    %v4833 = vsel %vm4775, %v4768, %v3293
    %v4835 = vsel %vm4775, %v4770, %v3295
    %v4837 = vsel %vm4775, %v4772, %v3297
    %v4839 = vsel %vm4775, %v4774, %v3299
    %vm4840 = vcmask 162816
    %v4842 = vsel %vm4840, %v4777, %v3493
    %v4844 = vsel %vm4840, %v4779, %v3495
    %v4846 = vsel %vm4840, %v4781, %v3497
    %v4848 = vsel %vm4840, %v4783, %v3499
    %v4850 = vsel %vm4840, %v4785, %v3501
    %v4852 = vsel %vm4840, %v4787, %v3503
    %v4854 = vsel %vm4840, %v4789, %v3505
    %v4856 = vsel %vm4840, %v4791, %v3507
    %v4858 = vsel %vm4840, %v4793, %v3509
    %v4860 = vsel %vm4840, %v4795, %v3511
    %v4862 = vsel %vm4840, %v4797, %v3513
    %v4864 = vsel %vm4840, %v4799, %v3515
    %v4866 = vsel %vm4840, %v4801, %v3517
    %v4868 = vsel %vm4840, %v4803, %v3519
    %v4870 = vsel %vm4840, %v4805, %v3521
    %v4872 = vsel %vm4840, %v4807, %v3523
    %v4874 = vsel %vm4840, %v4809, %v3525
    %v4876 = vsel %vm4840, %v4811, %v3527
    %v4878 = vsel %vm4840, %v4813, %v3529
    %v4880 = vsel %vm4840, %v4815, %v3531
    %v4882 = vsel %vm4840, %v4817, %v3533
    %v4884 = vsel %vm4840, %v4819, %v3535
    %v4886 = vsel %vm4840, %v4821, %v3537
    %v4888 = vsel %vm4840, %v4823, %v3539
    %v4890 = vsel %vm4840, %v4825, %v3541
    %v4892 = vsel %vm4840, %v4827, %v3543
    %v4894 = vsel %vm4840, %v4829, %v3545
    %v4896 = vsel %vm4840, %v4831, %v3547
    %v4898 = vsel %vm4840, %v4833, %v3549
    %v4900 = vsel %vm4840, %v4835, %v3551
    %v4902 = vsel %vm4840, %v4837, %v3553
    %v4904 = vsel %vm4840, %v4839, %v3555
    %vm4905 = vcmask 195584
    %v4907 = vsel %vm4905, %v4842, %v3717
    %v4909 = vsel %vm4905, %v4844, %v3719
    %v4911 = vsel %vm4905, %v4846, %v3721
    %v4913 = vsel %vm4905, %v4848, %v3723
    %v4915 = vsel %vm4905, %v4850, %v3725
    %v4917 = vsel %vm4905, %v4852, %v3727
    %v4919 = vsel %vm4905, %v4854, %v3729
    %v4921 = vsel %vm4905, %v4856, %v3731
    %v4923 = vsel %vm4905, %v4858, %v3733
    %v4925 = vsel %vm4905, %v4860, %v3735
    %v4927 = vsel %vm4905, %v4862, %v3737
    %v4929 = vsel %vm4905, %v4864, %v3739
    %v4931 = vsel %vm4905, %v4866, %v3741
    %v4933 = vsel %vm4905, %v4868, %v3743
    %v4935 = vsel %vm4905, %v4870, %v3745
    %v4937 = vsel %vm4905, %v4872, %v3747
    %v4939 = vsel %vm4905, %v4874, %v3749
    %v4941 = vsel %vm4905, %v4876, %v3751
    %v4943 = vsel %vm4905, %v4878, %v3753
    %v4945 = vsel %vm4905, %v4880, %v3755
    %v4947 = vsel %vm4905, %v4882, %v3757
    %v4949 = vsel %vm4905, %v4884, %v3759
    %v4951 = vsel %vm4905, %v4886, %v3761
    %v4953 = vsel %vm4905, %v4888, %v3763
    %v4955 = vsel %vm4905, %v4890, %v3765
    %v4957 = vsel %vm4905, %v4892, %v3767
    %v4959 = vsel %vm4905, %v4894, %v3769
    %v4961 = vsel %vm4905, %v4896, %v3771
    %v4963 = vsel %vm4905, %v4898, %v3773
    %v4965 = vsel %vm4905, %v4900, %v3775
    %v4967 = vsel %vm4905, %v4902, %v3777
    %v4969 = vsel %vm4905, %v4904, %v3779
    %vm4970 = vcmask 228352
    %v4972 = vsel %vm4970, %v4907, %v4261
    %v4974 = vsel %vm4970, %v4909, %v4263
    %v4976 = vsel %vm4970, %v4911, %v4265
    %v4978 = vsel %vm4970, %v4913, %v4267
    %v4980 = vsel %vm4970, %v4915, %v4269
    %v4982 = vsel %vm4970, %v4917, %v4271
    %v4984 = vsel %vm4970, %v4919, %v4273
    %v4986 = vsel %vm4970, %v4921, %v4275
    %v4988 = vsel %vm4970, %v4923, %v4277
    %v4990 = vsel %vm4970, %v4925, %v4279
    %v4992 = vsel %vm4970, %v4927, %v4281
    %v4994 = vsel %vm4970, %v4929, %v4283
    %v4996 = vsel %vm4970, %v4931, %v4285
    %v4998 = vsel %vm4970, %v4933, %v4287
    %v5000 = vsel %vm4970, %v4935, %v4289
    %v5002 = vsel %vm4970, %v4937, %v4291
    %v5004 = vsel %vm4970, %v4939, %v4293
    %v5006 = vsel %vm4970, %v4941, %v4295
    %v5008 = vsel %vm4970, %v4943, %v4297
    %v5010 = vsel %vm4970, %v4945, %v4299
    %v5012 = vsel %vm4970, %v4947, %v4301
    %v5014 = vsel %vm4970, %v4949, %v4303
    %v5016 = vsel %vm4970, %v4951, %v4305
    %v5018 = vsel %vm4970, %v4953, %v4307
    %v5020 = vsel %vm4970, %v4955, %v4309
    %v5022 = vsel %vm4970, %v4957, %v4311
    %v5024 = vsel %vm4970, %v4959, %v4313
    %v5026 = vsel %vm4970, %v4961, %v4315
    %v5028 = vsel %vm4970, %v4963, %v4317
    %v5030 = vsel %vm4970, %v4965, %v4319
    %v5032 = vsel %vm4970, %v4967, %v4321
    %v5034 = vsel %vm4970, %v4969, %v4323
    %vm5035 = vcmask 261120
    %v5037 = vsel %vm5035, %v4972, %v4517
    %v5039 = vsel %vm5035, %v4974, %v4519
    %v5041 = vsel %vm5035, %v4976, %v4521
    %v5043 = vsel %vm5035, %v4978, %v4523
    %v5045 = vsel %vm5035, %v4980, %v4525
    %v5047 = vsel %vm5035, %v4982, %v4527
    %v5049 = vsel %vm5035, %v4984, %v4529
    %v5051 = vsel %vm5035, %v4986, %v4531
    %v5053 = vsel %vm5035, %v4988, %v4533
    %v5055 = vsel %vm5035, %v4990, %v4535
    %v5057 = vsel %vm5035, %v4992, %v4537
    %v5059 = vsel %vm5035, %v4994, %v4539
    %v5061 = vsel %vm5035, %v4996, %v4541
    %v5063 = vsel %vm5035, %v4998, %v4543
    %v5065 = vsel %vm5035, %v5000, %v4545
    %v5067 = vsel %vm5035, %v5002, %v4547
    %v5069 = vsel %vm5035, %v5004, %v4549
    %v5071 = vsel %vm5035, %v5006, %v4551
    %v5073 = vsel %vm5035, %v5008, %v4553
    %v5075 = vsel %vm5035, %v5010, %v4555
    %v5077 = vsel %vm5035, %v5012, %v4557
    %v5079 = vsel %vm5035, %v5014, %v4559
    %v5081 = vsel %vm5035, %v5016, %v4561
    %v5083 = vsel %vm5035, %v5018, %v4563
    %v5085 = vsel %vm5035, %v5020, %v4565
    %v5087 = vsel %vm5035, %v5022, %v4567
    %v5089 = vsel %vm5035, %v5024, %v4569
    %v5091 = vsel %vm5035, %v5026, %v4571
    %v5093 = vsel %vm5035, %v5028, %v4573
    %v5095 = vsel %vm5035, %v5030, %v4575
    %v5097 = vsel %vm5035, %v5032, %v4577
    %v5099 = vsel %vm5035, %v5034, %v4579
    %v5100 = vld [vmem:[%s1] sm:$0xf]
    %v5101 = vld [vmem:[%s1 + $0x4] sm:$0xf]
    %v5102 = vld [vmem:[%s1 + $0x8] sm:$0xf]
    %v5103 = vld [vmem:[%s1 + $0xc] sm:$0xf]
    %v5104 = vld [vmem:[%s1 + $0x10] sm:$0x3]
    %v5105 = vld [vmem:[%s2] sm:$0x1]
    %v5107 = vperm.slane %v5105, 0
    %v5114 = vunpack.c.l.b16 %v5100
    %v5115 = vunpack.c.l.b16 %v5101
    %v5116 = vunpack.c.l.b16 %v5102
    %v5117 = vunpack.c.l.b16 %v5103
    %v5118 = vunpack.c.l.b16 %v5104
    %v5119 = vpack.c.b16 %v5115, %v5114
    %v5120 = vpack.c.b16 %v5117, %v5116
    %v5121 = vpack.c.b16 %v5118, %v5118
    %vm5124 = vcmask 293888
    %v5125 = vsel %vm5124, %v5037, 0
    %v5127 = vsel %vm5124, %v5039, 0
    %v5129 = vsel %vm5124, %v5041, 0
    %v5131 = vsel %vm5124, %v5043, 0
    %v5133 = vsel %vm5124, %v5045, 0
    %v5135 = vsel %vm5124, %v5047, 0
    %v5137 = vsel %vm5124, %v5049, 0
    %v5139 = vsel %vm5124, %v5051, 0
    %v5141 = vsel %vm5124, %v5053, 0
    %v5143 = vsel %vm5124, %v5055, 0
    %v5145 = vsel %vm5124, %v5057, 0
    %v5147 = vsel %vm5124, %v5059, 0
    %v5149 = vsel %vm5124, %v5061, 0
    %v5151 = vsel %vm5124, %v5063, 0
    %v5153 = vsel %vm5124, %v5065, 0
    %v5155 = vsel %vm5124, %v5067, 0
    %v5157 = vsel %vm5124, %v5069, 0
    %v5159 = vsel %vm5124, %v5071, 0
    %v5161 = vsel %vm5124, %v5073, 0
    %v5163 = vsel %vm5124, %v5075, 0
    %v5165 = vsel %vm5124, %v5077, 0
    %v5167 = vsel %vm5124, %v5079, 0
    %v5169 = vsel %vm5124, %v5081, 0
    %v5171 = vsel %vm5124, %v5083, 0
    %v5173 = vsel %vm5124, %v5085, 0
    %v5175 = vsel %vm5124, %v5087, 0
    %v5177 = vsel %vm5124, %v5089, 0
    %v5179 = vsel %vm5124, %v5091, 0
    %v5181 = vsel %vm5124, %v5093, 0
    %v5183 = vsel %vm5124, %v5095, 0
    %v5185 = vsel %vm5124, %v5097, 0
    %v5187 = vsel %vm5124, %v5099, 0
    %vm5189 = vcmask 1041408
    %v5191 = vsel %vm5189, %v5121, 0
    %5193 = vmatpush.bf16.msra.mxu0 0
    %5194 = vmatpush.bf16.msra.mxu0 0
    %5195 = vmatpush.bf16.msra.mxu0 0
    %5196 = vmatpush.bf16.msra.mxu0 0
    %5197 = vmatpush.bf16.msra.mxu0 0
    %5198 = vmatpush.bf16.msra.mxu0 %v5191
    %5199 = vmatpush.bf16.msra.mxu0 %v5120
    %5200 = vmatpush.bf16.msra.mxu0 %v5119
    %5201 = vmatmul.bf16.gmra.mxu0 %v5125
    %v5202 = vpop.f32.mrf.mxu0
    %v5203 = vadd.f32 %v5107, %v5202
    %v5204 = vpop.f32.mrf.mxu0
    %v5205 = vadd.f32 %v5107, %v5204
    %5206 = vmatmul.bf16.gmra.mxu0 %v5127
    %v5207 = vpop.f32.mrf.mxu0
    %v5208 = vadd.f32 %v5107, %v5207
    %v5209 = vpop.f32.mrf.mxu0
    %v5210 = vadd.f32 %v5107, %v5209
    %5211 = vmatmul.bf16.gmra.mxu0 %v5129
    %v5212 = vpop.f32.mrf.mxu0
    %v5213 = vadd.f32 %v5107, %v5212
    %v5214 = vpop.f32.mrf.mxu0
    %v5215 = vadd.f32 %v5107, %v5214
    %5216 = vmatmul.bf16.gmra.mxu0 %v5131
    %v5217 = vpop.f32.mrf.mxu0
    %v5218 = vadd.f32 %v5107, %v5217
    %v5219 = vpop.f32.mrf.mxu0
    %v5220 = vadd.f32 %v5107, %v5219
    %5221 = vmatmul.bf16.gmra.mxu0 %v5133
    %v5222 = vpop.f32.mrf.mxu0
    %v5223 = vadd.f32 %v5107, %v5222
    %v5224 = vpop.f32.mrf.mxu0
    %v5225 = vadd.f32 %v5107, %v5224
    %5226 = vmatmul.bf16.gmra.mxu0 %v5135
    %v5227 = vpop.f32.mrf.mxu0
    %v5228 = vadd.f32 %v5107, %v5227
    %v5229 = vpop.f32.mrf.mxu0
    %v5230 = vadd.f32 %v5107, %v5229
    %5231 = vmatmul.bf16.gmra.mxu0 %v5137
    %v5232 = vpop.f32.mrf.mxu0
    %v5233 = vadd.f32 %v5107, %v5232
    %v5234 = vpop.f32.mrf.mxu0
    %v5235 = vadd.f32 %v5107, %v5234
    %5236 = vmatmul.bf16.gmra.mxu0 %v5139
    %v5237 = vpop.f32.mrf.mxu0
    %v5238 = vadd.f32 %v5107, %v5237
    %v5239 = vpop.f32.mrf.mxu0
    %v5240 = vadd.f32 %v5107, %v5239
    %5241 = vmatmul.bf16.gmra.mxu0 %v5141
    %v5242 = vpop.f32.mrf.mxu0
    %v5243 = vadd.f32 %v5107, %v5242
    %v5244 = vpop.f32.mrf.mxu0
    %v5245 = vadd.f32 %v5107, %v5244
    %5246 = vmatmul.bf16.gmra.mxu0 %v5143
    %v5247 = vpop.f32.mrf.mxu0
    %v5248 = vadd.f32 %v5107, %v5247
    %v5249 = vpop.f32.mrf.mxu0
    %v5250 = vadd.f32 %v5107, %v5249
    %5251 = vmatmul.bf16.gmra.mxu0 %v5145
    %v5252 = vpop.f32.mrf.mxu0
    %v5253 = vadd.f32 %v5107, %v5252
    %v5254 = vpop.f32.mrf.mxu0
    %v5255 = vadd.f32 %v5107, %v5254
    %5256 = vmatmul.bf16.gmra.mxu0 %v5147
    %v5257 = vpop.f32.mrf.mxu0
    %v5258 = vadd.f32 %v5107, %v5257
    %v5259 = vpop.f32.mrf.mxu0
    %v5260 = vadd.f32 %v5107, %v5259
    %5261 = vmatmul.bf16.gmra.mxu0 %v5149
    %v5262 = vpop.f32.mrf.mxu0
    %v5263 = vadd.f32 %v5107, %v5262
    %v5264 = vpop.f32.mrf.mxu0
    %v5265 = vadd.f32 %v5107, %v5264
    %5266 = vmatmul.bf16.gmra.mxu0 %v5151
    %v5267 = vpop.f32.mrf.mxu0
    %v5268 = vadd.f32 %v5107, %v5267
    %v5269 = vpop.f32.mrf.mxu0
    %v5270 = vadd.f32 %v5107, %v5269
    %5271 = vmatmul.bf16.gmra.mxu0 %v5153
    %v5272 = vpop.f32.mrf.mxu0
    %v5273 = vadd.f32 %v5107, %v5272
    %v5274 = vpop.f32.mrf.mxu0
    %v5275 = vadd.f32 %v5107, %v5274
    %5276 = vmatmul.bf16.gmra.mxu0 %v5155
    %v5277 = vpop.f32.mrf.mxu0
    %v5278 = vadd.f32 %v5107, %v5277
    %v5279 = vpop.f32.mrf.mxu0
    %v5280 = vadd.f32 %v5107, %v5279
    %5281 = vmatmul.bf16.gmra.mxu0 %v5157
    %v5282 = vpop.f32.mrf.mxu0
    %v5283 = vadd.f32 %v5107, %v5282
    %v5284 = vpop.f32.mrf.mxu0
    %v5285 = vadd.f32 %v5107, %v5284
    %5286 = vmatmul.bf16.gmra.mxu0 %v5159
    %v5287 = vpop.f32.mrf.mxu0
    %v5288 = vadd.f32 %v5107, %v5287
    %v5289 = vpop.f32.mrf.mxu0
    %v5290 = vadd.f32 %v5107, %v5289
    %5291 = vmatmul.bf16.gmra.mxu0 %v5161
    %v5292 = vpop.f32.mrf.mxu0
    %v5293 = vadd.f32 %v5107, %v5292
    %v5294 = vpop.f32.mrf.mxu0
    %v5295 = vadd.f32 %v5107, %v5294
    %5296 = vmatmul.bf16.gmra.mxu0 %v5163
    %v5297 = vpop.f32.mrf.mxu0
    %v5298 = vadd.f32 %v5107, %v5297
    %v5299 = vpop.f32.mrf.mxu0
    %v5300 = vadd.f32 %v5107, %v5299
    %5301 = vmatmul.bf16.gmra.mxu0 %v5165
    %v5302 = vpop.f32.mrf.mxu0
    %v5303 = vadd.f32 %v5107, %v5302
    %v5304 = vpop.f32.mrf.mxu0
    %v5305 = vadd.f32 %v5107, %v5304
    %5306 = vmatmul.bf16.gmra.mxu0 %v5167
    %v5307 = vpop.f32.mrf.mxu0
    %v5308 = vadd.f32 %v5107, %v5307
    %v5309 = vpop.f32.mrf.mxu0
    %v5310 = vadd.f32 %v5107, %v5309
    %5311 = vmatmul.bf16.gmra.mxu0 %v5169
    %v5312 = vpop.f32.mrf.mxu0
    %v5313 = vadd.f32 %v5107, %v5312
    %v5314 = vpop.f32.mrf.mxu0
    %v5315 = vadd.f32 %v5107, %v5314
    %5316 = vmatmul.bf16.gmra.mxu0 %v5171
    %v5317 = vpop.f32.mrf.mxu0
    %v5318 = vadd.f32 %v5107, %v5317
    %v5319 = vpop.f32.mrf.mxu0
    %v5320 = vadd.f32 %v5107, %v5319
    %5321 = vmatmul.bf16.gmra.mxu0 %v5173
    %v5322 = vpop.f32.mrf.mxu0
    %v5323 = vadd.f32 %v5107, %v5322
    %v5324 = vpop.f32.mrf.mxu0
    %v5325 = vadd.f32 %v5107, %v5324
    %5326 = vmatmul.bf16.gmra.mxu0 %v5175
    %v5327 = vpop.f32.mrf.mxu0
    %v5328 = vadd.f32 %v5107, %v5327
    %v5329 = vpop.f32.mrf.mxu0
    %v5330 = vadd.f32 %v5107, %v5329
    %5331 = vmatmul.bf16.gmra.mxu0 %v5177
    %v5332 = vpop.f32.mrf.mxu0
    %v5333 = vadd.f32 %v5107, %v5332
    %v5334 = vpop.f32.mrf.mxu0
    %v5335 = vadd.f32 %v5107, %v5334
    %5336 = vmatmul.bf16.gmra.mxu0 %v5179
    %v5337 = vpop.f32.mrf.mxu0
    %v5338 = vadd.f32 %v5107, %v5337
    %v5339 = vpop.f32.mrf.mxu0
    %v5340 = vadd.f32 %v5107, %v5339
    %5341 = vmatmul.bf16.gmra.mxu0 %v5181
    %v5342 = vpop.f32.mrf.mxu0
    %v5343 = vadd.f32 %v5107, %v5342
    %v5344 = vpop.f32.mrf.mxu0
    %v5345 = vadd.f32 %v5107, %v5344
    %5346 = vmatmul.bf16.gmra.mxu0 %v5183
    %v5347 = vpop.f32.mrf.mxu0
    %v5348 = vadd.f32 %v5107, %v5347
    %v5349 = vpop.f32.mrf.mxu0
    %v5350 = vadd.f32 %v5107, %v5349
    %5351 = vmatmul.bf16.gmra.mxu0 %v5185
    %v5352 = vpop.f32.mrf.mxu0
    %v5353 = vadd.f32 %v5107, %v5352
    %v5354 = vpop.f32.mrf.mxu0
    %v5355 = vadd.f32 %v5107, %v5354
    %5356 = vmatmul.bf16.gmra.mxu0 %v5187
    %v5357 = vpop.f32.mrf.mxu0
    %v5358 = vadd.f32 %v5107, %v5357
    %v5359 = vpop.f32.mrf.mxu0
    %v5360 = vadd.f32 %v5107, %v5359
    %5361 = vdwg.mxu0
    %v5362 = vmax.f32 %v5203, 0.0
    %v5363 = vmax.f32 %v5205, 0.0
    %v5364 = vmax.f32 %v5208, 0.0
    %v5365 = vmax.f32 %v5210, 0.0
    %v5366 = vmax.f32 %v5213, 0.0
    %v5367 = vmax.f32 %v5215, 0.0
    %v5368 = vmax.f32 %v5218, 0.0
    %v5369 = vmax.f32 %v5220, 0.0
    %v5370 = vmax.f32 %v5223, 0.0
    %v5371 = vmax.f32 %v5225, 0.0
    %v5372 = vmax.f32 %v5228, 0.0
    %v5373 = vmax.f32 %v5230, 0.0
    %v5374 = vmax.f32 %v5233, 0.0
    %v5375 = vmax.f32 %v5235, 0.0
    %v5376 = vmax.f32 %v5238, 0.0
    %v5377 = vmax.f32 %v5240, 0.0
    %v5378 = vmax.f32 %v5243, 0.0
    %v5379 = vmax.f32 %v5245, 0.0
    %v5380 = vmax.f32 %v5248, 0.0
    %v5381 = vmax.f32 %v5250, 0.0
    %v5382 = vmax.f32 %v5253, 0.0
    %v5383 = vmax.f32 %v5255, 0.0
    %v5384 = vmax.f32 %v5258, 0.0
    %v5385 = vmax.f32 %v5260, 0.0
    %v5386 = vmax.f32 %v5263, 0.0
    %v5387 = vmax.f32 %v5265, 0.0
    %v5388 = vmax.f32 %v5268, 0.0
    %v5389 = vmax.f32 %v5270, 0.0
    %v5390 = vmax.f32 %v5273, 0.0
    %v5391 = vmax.f32 %v5275, 0.0
    %v5392 = vmax.f32 %v5278, 0.0
    %v5393 = vmax.f32 %v5280, 0.0
    %v5394 = vmax.f32 %v5283, 0.0
    %v5395 = vmax.f32 %v5285, 0.0
    %v5396 = vmax.f32 %v5288, 0.0
    %v5397 = vmax.f32 %v5290, 0.0
    %v5398 = vmax.f32 %v5293, 0.0
    %v5399 = vmax.f32 %v5295, 0.0
    %v5400 = vmax.f32 %v5298, 0.0
    %v5401 = vmax.f32 %v5300, 0.0
    %v5402 = vmax.f32 %v5303, 0.0
    %v5403 = vmax.f32 %v5305, 0.0
    %v5404 = vmax.f32 %v5308, 0.0
    %v5405 = vmax.f32 %v5310, 0.0
    %v5406 = vmax.f32 %v5313, 0.0
    %v5407 = vmax.f32 %v5315, 0.0
    %v5408 = vmax.f32 %v5318, 0.0
    %v5409 = vmax.f32 %v5320, 0.0
    %v5410 = vmax.f32 %v5323, 0.0
    %v5411 = vmax.f32 %v5325, 0.0
    %v5412 = vmax.f32 %v5328, 0.0
    %v5413 = vmax.f32 %v5330, 0.0
    %v5414 = vmax.f32 %v5333, 0.0
    %v5415 = vmax.f32 %v5335, 0.0
    %v5416 = vmax.f32 %v5338, 0.0
    %v5417 = vmax.f32 %v5340, 0.0
    %v5418 = vmax.f32 %v5343, 0.0
    %v5419 = vmax.f32 %v5345, 0.0
    %v5420 = vmax.f32 %v5348, 0.0
    %v5421 = vmax.f32 %v5350, 0.0
    %v5422 = vmax.f32 %v5353, 0.0
    %v5423 = vmax.f32 %v5355, 0.0
    %v5424 = vmax.f32 %v5358, 0.0
    %v5425 = vmax.f32 %v5360, 0.0
    %v5490 = vrot.slane %v5362, 2
    %v5491 = vrot.slane %v5362, 4
    %v5492 = vrot.slane %v5362, 6
    %v5493 = vrot.slane %v5363, 2
    %v5494 = vrot.slane %v5363, 4
    %v5495 = vrot.slane %v5363, 6
    %v5496 = vrot.slane %v5364, 2
    %v5497 = vrot.slane %v5364, 4
    %v5498 = vrot.slane %v5364, 6
    %v5499 = vrot.slane %v5365, 2
    %v5500 = vrot.slane %v5365, 4
    %v5501 = vrot.slane %v5365, 6
    %v5502 = vrot.slane %v5366, 2
    %v5503 = vrot.slane %v5366, 4
    %v5504 = vrot.slane %v5366, 6
    %v5505 = vrot.slane %v5367, 2
    %v5506 = vrot.slane %v5367, 4
    %v5507 = vrot.slane %v5367, 6
    %v5508 = vrot.slane %v5368, 2
    %v5509 = vrot.slane %v5368, 4
    %v5510 = vrot.slane %v5368, 6
    %v5511 = vrot.slane %v5369, 2
    %v5512 = vrot.slane %v5369, 4
    %v5513 = vrot.slane %v5369, 6
    %v5514 = vrot.slane %v5370, 2
    %v5515 = vrot.slane %v5370, 4
    %v5516 = vrot.slane %v5370, 6
    %v5517 = vrot.slane %v5371, 2
    %v5518 = vrot.slane %v5371, 4
    %v5519 = vrot.slane %v5371, 6
    %v5520 = vrot.slane %v5372, 2
    %v5521 = vrot.slane %v5372, 4
    %v5522 = vrot.slane %v5372, 6
    %v5523 = vrot.slane %v5373, 2
    %v5524 = vrot.slane %v5373, 4
    %v5525 = vrot.slane %v5373, 6
    %v5526 = vrot.slane %v5374, 2
    %v5527 = vrot.slane %v5374, 4
    %v5528 = vrot.slane %v5374, 6
    %v5529 = vrot.slane %v5375, 2
    %v5530 = vrot.slane %v5375, 4
    %v5531 = vrot.slane %v5375, 6
    %v5532 = vrot.slane %v5376, 2
    %v5533 = vrot.slane %v5376, 4
    %v5534 = vrot.slane %v5376, 6
    %v5535 = vrot.slane %v5377, 2
    %v5536 = vrot.slane %v5377, 4
    %v5537 = vrot.slane %v5377, 6
    %v5538 = vrot.slane %v5378, 2
    %v5539 = vrot.slane %v5378, 4
    %v5540 = vrot.slane %v5378, 6
    %v5541 = vrot.slane %v5379, 2
    %v5542 = vrot.slane %v5379, 4
    %v5543 = vrot.slane %v5379, 6
    %v5544 = vrot.slane %v5380, 2
    %v5545 = vrot.slane %v5380, 4
    %v5546 = vrot.slane %v5380, 6
    %v5547 = vrot.slane %v5381, 2
    %v5548 = vrot.slane %v5381, 4
    %v5549 = vrot.slane %v5381, 6
    %v5550 = vrot.slane %v5382, 2
    %v5551 = vrot.slane %v5382, 4
    %v5552 = vrot.slane %v5382, 6
    %v5553 = vrot.slane %v5383, 2
    %v5554 = vrot.slane %v5383, 4
    %v5555 = vrot.slane %v5383, 6
    %v5556 = vrot.slane %v5384, 2
    %v5557 = vrot.slane %v5384, 4
    %v5558 = vrot.slane %v5384, 6
    %v5559 = vrot.slane %v5385, 2
    %v5560 = vrot.slane %v5385, 4
    %v5561 = vrot.slane %v5385, 6
    %v5562 = vrot.slane %v5386, 2
    %v5563 = vrot.slane %v5386, 4
    %v5564 = vrot.slane %v5386, 6
    %v5565 = vrot.slane %v5387, 2
    %v5566 = vrot.slane %v5387, 4
    %v5567 = vrot.slane %v5387, 6
    %v5568 = vrot.slane %v5388, 2
    %v5569 = vrot.slane %v5388, 4
    %v5570 = vrot.slane %v5388, 6
    %v5571 = vrot.slane %v5389, 2
    %v5572 = vrot.slane %v5389, 4
    %v5573 = vrot.slane %v5389, 6
    %v5574 = vrot.slane %v5390, 2
    %v5575 = vrot.slane %v5390, 4
    %v5576 = vrot.slane %v5390, 6
    %v5577 = vrot.slane %v5391, 2
    %v5578 = vrot.slane %v5391, 4
    %v5579 = vrot.slane %v5391, 6
    %v5580 = vrot.slane %v5392, 2
    %v5581 = vrot.slane %v5392, 4
    %v5582 = vrot.slane %v5392, 6
    %v5583 = vrot.slane %v5393, 2
    %v5584 = vrot.slane %v5393, 4
    %v5585 = vrot.slane %v5393, 6
    %v5586 = vrot.slane %v5394, 2
    %v5587 = vrot.slane %v5394, 4
    %v5588 = vrot.slane %v5394, 6
    %v5589 = vrot.slane %v5395, 2
    %v5590 = vrot.slane %v5395, 4
    %v5591 = vrot.slane %v5395, 6
    %v5592 = vrot.slane %v5396, 2
    %v5593 = vrot.slane %v5396, 4
    %v5594 = vrot.slane %v5396, 6
    %v5595 = vrot.slane %v5397, 2
    %v5596 = vrot.slane %v5397, 4
    %v5597 = vrot.slane %v5397, 6
    %v5598 = vrot.slane %v5398, 2
    %v5599 = vrot.slane %v5398, 4
    %v5600 = vrot.slane %v5398, 6
    %v5601 = vrot.slane %v5399, 2
    %v5602 = vrot.slane %v5399, 4
    %v5603 = vrot.slane %v5399, 6
    %v5604 = vrot.slane %v5400, 2
    %v5605 = vrot.slane %v5400, 4
    %v5606 = vrot.slane %v5400, 6
    %v5607 = vrot.slane %v5401, 2
    %v5608 = vrot.slane %v5401, 4
    %v5609 = vrot.slane %v5401, 6
    %v5610 = vrot.slane %v5402, 2
    %v5611 = vrot.slane %v5402, 4
    %v5612 = vrot.slane %v5402, 6
    %v5613 = vrot.slane %v5403, 2
    %v5614 = vrot.slane %v5403, 4
    %v5615 = vrot.slane %v5403, 6
    %v5616 = vrot.slane %v5404, 2
    %v5617 = vrot.slane %v5404, 4
    %v5618 = vrot.slane %v5404, 6
    %v5619 = vrot.slane %v5405, 2
    %v5620 = vrot.slane %v5405, 4
    %v5621 = vrot.slane %v5405, 6
    %v5622 = vrot.slane %v5406, 2
    %v5623 = vrot.slane %v5406, 4
    %v5624 = vrot.slane %v5406, 6
    %v5625 = vrot.slane %v5407, 2
    %v5626 = vrot.slane %v5407, 4
    %v5627 = vrot.slane %v5407, 6
    %v5628 = vrot.slane %v5408, 2
    %v5629 = vrot.slane %v5408, 4
    %v5630 = vrot.slane %v5408, 6
    %v5631 = vrot.slane %v5409, 2
    %v5632 = vrot.slane %v5409, 4
    %v5633 = vrot.slane %v5409, 6
    %v5634 = vrot.slane %v5410, 2
    %v5635 = vrot.slane %v5410, 4
    %v5636 = vrot.slane %v5410, 6
    %v5637 = vrot.slane %v5411, 2
    %v5638 = vrot.slane %v5411, 4
    %v5639 = vrot.slane %v5411, 6
    %v5640 = vrot.slane %v5412, 2
    %v5641 = vrot.slane %v5412, 4
    %v5642 = vrot.slane %v5412, 6
    %v5643 = vrot.slane %v5413, 2
    %v5644 = vrot.slane %v5413, 4
    %v5645 = vrot.slane %v5413, 6
    %v5646 = vrot.slane %v5414, 2
    %v5647 = vrot.slane %v5414, 4
    %v5648 = vrot.slane %v5414, 6
    %v5649 = vrot.slane %v5415, 2
    %v5650 = vrot.slane %v5415, 4
    %v5651 = vrot.slane %v5415, 6
    %v5652 = vrot.slane %v5416, 2
    %v5653 = vrot.slane %v5416, 4
    %v5654 = vrot.slane %v5416, 6
    %v5655 = vrot.slane %v5417, 2
    %v5656 = vrot.slane %v5417, 4
    %v5657 = vrot.slane %v5417, 6
    %v5658 = vrot.slane %v5418, 2
    %v5659 = vrot.slane %v5418, 4
    %v5660 = vrot.slane %v5418, 6
    %v5661 = vrot.slane %v5419, 2
    %v5662 = vrot.slane %v5419, 4
    %v5663 = vrot.slane %v5419, 6
    %v5664 = vrot.slane %v5420, 2
    %v5665 = vrot.slane %v5420, 4
    %v5666 = vrot.slane %v5420, 6
    %v5667 = vrot.slane %v5421, 2
    %v5668 = vrot.slane %v5421, 4
    %v5669 = vrot.slane %v5421, 6
    %v5670 = vrot.slane %v5422, 2
    %v5671 = vrot.slane %v5422, 4
    %v5672 = vrot.slane %v5422, 6
    %v5673 = vrot.slane %v5423, 2
    %v5674 = vrot.slane %v5423, 4
    %v5675 = vrot.slane %v5423, 6
    %v5676 = vrot.slane %v5424, 2
    %v5677 = vrot.slane %v5424, 4
    %v5678 = vrot.slane %v5424, 6
    %v5679 = vrot.slane %v5425, 2
    %v5680 = vrot.slane %v5425, 4
    %v5681 = vrot.slane %v5425, 6
    %v5874 = vmax.f32 %v5362, %v5364
    %v5875 = vmax.f32 %v5490, %v5496
    %v5876 = vmax.f32 %v5491, %v5497
    %v5877 = vmax.f32 %v5492, %v5498
    %v5878 = vmax.f32 %v5363, %v5365
    %v5879 = vmax.f32 %v5493, %v5499
    %v5880 = vmax.f32 %v5494, %v5500
    %v5881 = vmax.f32 %v5495, %v5501
    %v5882 = vmax.f32 %v5366, %v5368
    %v5883 = vmax.f32 %v5502, %v5508
    %v5884 = vmax.f32 %v5503, %v5509
    %v5885 = vmax.f32 %v5504, %v5510
    %v5886 = vmax.f32 %v5367, %v5369
    %v5887 = vmax.f32 %v5505, %v5511
    %v5888 = vmax.f32 %v5506, %v5512
    %v5889 = vmax.f32 %v5507, %v5513
    %v5890 = vmax.f32 %v5370, %v5372
    %v5891 = vmax.f32 %v5514, %v5520
    %v5892 = vmax.f32 %v5515, %v5521
    %v5893 = vmax.f32 %v5516, %v5522
    %v5894 = vmax.f32 %v5371, %v5373
    %v5895 = vmax.f32 %v5517, %v5523
    %v5896 = vmax.f32 %v5518, %v5524
    %v5897 = vmax.f32 %v5519, %v5525
    %v5898 = vmax.f32 %v5374, %v5376
    %v5899 = vmax.f32 %v5526, %v5532
    %v5900 = vmax.f32 %v5527, %v5533
    %v5901 = vmax.f32 %v5528, %v5534
    %v5902 = vmax.f32 %v5375, %v5377
    %v5903 = vmax.f32 %v5529, %v5535
    %v5904 = vmax.f32 %v5530, %v5536
    %v5905 = vmax.f32 %v5531, %v5537
    %v5906 = vmax.f32 %v5378, %v5380
    %v5907 = vmax.f32 %v5538, %v5544
    %v5908 = vmax.f32 %v5539, %v5545
    %v5909 = vmax.f32 %v5540, %v5546
    %v5910 = vmax.f32 %v5379, %v5381
    %v5911 = vmax.f32 %v5541, %v5547
    %v5912 = vmax.f32 %v5542, %v5548
    %v5913 = vmax.f32 %v5543, %v5549
    %v5914 = vmax.f32 %v5382, %v5384
    %v5915 = vmax.f32 %v5550, %v5556
    %v5916 = vmax.f32 %v5551, %v5557
    %v5917 = vmax.f32 %v5552, %v5558
    %v5918 = vmax.f32 %v5383, %v5385
    %v5919 = vmax.f32 %v5553, %v5559
    %v5920 = vmax.f32 %v5554, %v5560
    %v5921 = vmax.f32 %v5555, %v5561
    %v5922 = vmax.f32 %v5386, %v5388
    %v5923 = vmax.f32 %v5562, %v5568
    %v5924 = vmax.f32 %v5563, %v5569
    %v5925 = vmax.f32 %v5564, %v5570
    %v5926 = vmax.f32 %v5387, %v5389
    %v5927 = vmax.f32 %v5565, %v5571
    %v5928 = vmax.f32 %v5566, %v5572
    %v5929 = vmax.f32 %v5567, %v5573
    %v5930 = vmax.f32 %v5390, %v5392
    %v5931 = vmax.f32 %v5574, %v5580
    %v5932 = vmax.f32 %v5575, %v5581
    %v5933 = vmax.f32 %v5576, %v5582
    %v5934 = vmax.f32 %v5391, %v5393
    %v5935 = vmax.f32 %v5577, %v5583
    %v5936 = vmax.f32 %v5578, %v5584
    %v5937 = vmax.f32 %v5579, %v5585
    %v5938 = vmax.f32 %v5394, %v5396
    %v5939 = vmax.f32 %v5586, %v5592
    %v5940 = vmax.f32 %v5587, %v5593
    %v5941 = vmax.f32 %v5588, %v5594
    %v5942 = vmax.f32 %v5395, %v5397
    %v5943 = vmax.f32 %v5589, %v5595
    %v5944 = vmax.f32 %v5590, %v5596
    %v5945 = vmax.f32 %v5591, %v5597
    %v5946 = vmax.f32 %v5398, %v5400
    %v5947 = vmax.f32 %v5598, %v5604
    %v5948 = vmax.f32 %v5599, %v5605
    %v5949 = vmax.f32 %v5600, %v5606
    %v5950 = vmax.f32 %v5399, %v5401
    %v5951 = vmax.f32 %v5601, %v5607
    %v5952 = vmax.f32 %v5602, %v5608
    %v5953 = vmax.f32 %v5603, %v5609
    %v5954 = vmax.f32 %v5402, %v5404
    %v5955 = vmax.f32 %v5610, %v5616
    %v5956 = vmax.f32 %v5611, %v5617
    %v5957 = vmax.f32 %v5612, %v5618
    %v5958 = vmax.f32 %v5403, %v5405
    %v5959 = vmax.f32 %v5613, %v5619
    %v5960 = vmax.f32 %v5614, %v5620
    %v5961 = vmax.f32 %v5615, %v5621
    %v5962 = vmax.f32 %v5406, %v5408
    %v5963 = vmax.f32 %v5622, %v5628
    %v5964 = vmax.f32 %v5623, %v5629
    %v5965 = vmax.f32 %v5624, %v5630
    %v5966 = vmax.f32 %v5407, %v5409
    %v5967 = vmax.f32 %v5625, %v5631
    %v5968 = vmax.f32 %v5626, %v5632
    %v5969 = vmax.f32 %v5627, %v5633
    %v5970 = vmax.f32 %v5410, %v5412
    %v5971 = vmax.f32 %v5634, %v5640
    %v5972 = vmax.f32 %v5635, %v5641
    %v5973 = vmax.f32 %v5636, %v5642
    %v5974 = vmax.f32 %v5411, %v5413
    %v5975 = vmax.f32 %v5637, %v5643
    %v5976 = vmax.f32 %v5638, %v5644
    %v5977 = vmax.f32 %v5639, %v5645
    %v5978 = vmax.f32 %v5414, %v5416
    %v5979 = vmax.f32 %v5646, %v5652
    %v5980 = vmax.f32 %v5647, %v5653
    %v5981 = vmax.f32 %v5648, %v5654
    %v5982 = vmax.f32 %v5415, %v5417
    %v5983 = vmax.f32 %v5649, %v5655
    %v5984 = vmax.f32 %v5650, %v5656
    %v5985 = vmax.f32 %v5651, %v5657
    %v5986 = vmax.f32 %v5418, %v5420
    %v5987 = vmax.f32 %v5658, %v5664
    %v5988 = vmax.f32 %v5659, %v5665
    %v5989 = vmax.f32 %v5660, %v5666
    %v5990 = vmax.f32 %v5419, %v5421
    %v5991 = vmax.f32 %v5661, %v5667
    %v5992 = vmax.f32 %v5662, %v5668
    %v5993 = vmax.f32 %v5663, %v5669
    %v5994 = vmax.f32 %v5422, %v5424
    %v5995 = vmax.f32 %v5670, %v5676
    %v5996 = vmax.f32 %v5671, %v5677
    %v5997 = vmax.f32 %v5672, %v5678
    %v5998 = vmax.f32 %v5423, %v5425
    %v5999 = vmax.f32 %v5673, %v5679
    %v6000 = vmax.f32 %v5674, %v5680
    %v6001 = vmax.f32 %v5675, %v5681
    %v6130 = vrot.slane %v5874, 7
    %v6131 = vrot.slane %v6130, 2
    %v6132 = vrot.slane %v5875, 7
    %v6133 = vrot.slane %v6132, 2
    %v6134 = vrot.slane %v5876, 7
    %v6135 = vrot.slane %v6134, 2
    %v6136 = vrot.slane %v5877, 7
    %v6137 = vrot.slane %v6136, 2
    %v6138 = vrot.slane %v5878, 7
    %v6139 = vrot.slane %v6138, 2
    %v6140 = vrot.slane %v5879, 7
    %v6141 = vrot.slane %v6140, 2
    %v6142 = vrot.slane %v5880, 7
    %v6143 = vrot.slane %v6142, 2
    %v6144 = vrot.slane %v5881, 7
    %v6145 = vrot.slane %v6144, 2
    %v6146 = vrot.slane %v5882, 7
    %v6147 = vrot.slane %v6146, 2
    %v6148 = vrot.slane %v5883, 7
    %v6149 = vrot.slane %v6148, 2
    %v6150 = vrot.slane %v5884, 7
    %v6151 = vrot.slane %v6150, 2
    %v6152 = vrot.slane %v5885, 7
    %v6153 = vrot.slane %v6152, 2
    %v6154 = vrot.slane %v5886, 7
    %v6155 = vrot.slane %v6154, 2
    %v6156 = vrot.slane %v5887, 7
    %v6157 = vrot.slane %v6156, 2
    %v6158 = vrot.slane %v5888, 7
    %v6159 = vrot.slane %v6158, 2
    %v6160 = vrot.slane %v5889, 7
    %v6161 = vrot.slane %v6160, 2
    %v6162 = vrot.slane %v5890, 7
    %v6163 = vrot.slane %v6162, 2
    %v6164 = vrot.slane %v5891, 7
    %v6165 = vrot.slane %v6164, 2
    %v6166 = vrot.slane %v5892, 7
    %v6167 = vrot.slane %v6166, 2
    %v6168 = vrot.slane %v5893, 7
    %v6169 = vrot.slane %v6168, 2
    %v6170 = vrot.slane %v5894, 7
    %v6171 = vrot.slane %v6170, 2
    %v6172 = vrot.slane %v5895, 7
    %v6173 = vrot.slane %v6172, 2
    %v6174 = vrot.slane %v5896, 7
    %v6175 = vrot.slane %v6174, 2
    %v6176 = vrot.slane %v5897, 7
    %v6177 = vrot.slane %v6176, 2
    %v6178 = vrot.slane %v5898, 7
    %v6179 = vrot.slane %v6178, 2
    %v6180 = vrot.slane %v5899, 7
    %v6181 = vrot.slane %v6180, 2
    %v6182 = vrot.slane %v5900, 7
    %v6183 = vrot.slane %v6182, 2
    %v6184 = vrot.slane %v5901, 7
    %v6185 = vrot.slane %v6184, 2
    %v6186 = vrot.slane %v5902, 7
    %v6187 = vrot.slane %v6186, 2
    %v6188 = vrot.slane %v5903, 7
    %v6189 = vrot.slane %v6188, 2
    %v6190 = vrot.slane %v5904, 7
    %v6191 = vrot.slane %v6190, 2
    %v6192 = vrot.slane %v5905, 7
    %v6193 = vrot.slane %v6192, 2
    %v6194 = vrot.slane %v5906, 7
    %v6195 = vrot.slane %v6194, 2
    %v6196 = vrot.slane %v5907, 7
    %v6197 = vrot.slane %v6196, 2
    %v6198 = vrot.slane %v5908, 7
    %v6199 = vrot.slane %v6198, 2
    %v6200 = vrot.slane %v5909, 7
    %v6201 = vrot.slane %v6200, 2
    %v6202 = vrot.slane %v5910, 7
    %v6203 = vrot.slane %v6202, 2
    %v6204 = vrot.slane %v5911, 7
    %v6205 = vrot.slane %v6204, 2
    %v6206 = vrot.slane %v5912, 7
    %v6207 = vrot.slane %v6206, 2
    %v6208 = vrot.slane %v5913, 7
    %v6209 = vrot.slane %v6208, 2
    %v6210 = vrot.slane %v5914, 7
    %v6211 = vrot.slane %v6210, 2
    %v6212 = vrot.slane %v5915, 7
    %v6213 = vrot.slane %v6212, 2
    %v6214 = vrot.slane %v5916, 7
    %v6215 = vrot.slane %v6214, 2
    %v6216 = vrot.slane %v5917, 7
    %v6217 = vrot.slane %v6216, 2
    %v6218 = vrot.slane %v5918, 7
    %v6219 = vrot.slane %v6218, 2
    %v6220 = vrot.slane %v5919, 7
    %v6221 = vrot.slane %v6220, 2
    %v6222 = vrot.slane %v5920, 7
    %v6223 = vrot.slane %v6222, 2
    %v6224 = vrot.slane %v5921, 7
    %v6225 = vrot.slane %v6224, 2
    %v6226 = vrot.slane %v5922, 7
    %v6227 = vrot.slane %v6226, 2
    %v6228 = vrot.slane %v5923, 7
    %v6229 = vrot.slane %v6228, 2
    %v6230 = vrot.slane %v5924, 7
    %v6231 = vrot.slane %v6230, 2
    %v6232 = vrot.slane %v5925, 7
    %v6233 = vrot.slane %v6232, 2
    %v6234 = vrot.slane %v5926, 7
    %v6235 = vrot.slane %v6234, 2
    %v6236 = vrot.slane %v5927, 7
    %v6237 = vrot.slane %v6236, 2
    %v6238 = vrot.slane %v5928, 7
    %v6239 = vrot.slane %v6238, 2
    %v6240 = vrot.slane %v5929, 7
    %v6241 = vrot.slane %v6240, 2
    %v6242 = vrot.slane %v5930, 7
    %v6243 = vrot.slane %v6242, 2
    %v6244 = vrot.slane %v5931, 7
    %v6245 = vrot.slane %v6244, 2
    %v6246 = vrot.slane %v5932, 7
    %v6247 = vrot.slane %v6246, 2
    %v6248 = vrot.slane %v5933, 7
    %v6249 = vrot.slane %v6248, 2
    %v6250 = vrot.slane %v5934, 7
    %v6251 = vrot.slane %v6250, 2
    %v6252 = vrot.slane %v5935, 7
    %v6253 = vrot.slane %v6252, 2
    %v6254 = vrot.slane %v5936, 7
    %v6255 = vrot.slane %v6254, 2
    %v6256 = vrot.slane %v5937, 7
    %v6257 = vrot.slane %v6256, 2
    %v6258 = vrot.slane %v5938, 7
    %v6259 = vrot.slane %v6258, 2
    %v6260 = vrot.slane %v5939, 7
    %v6261 = vrot.slane %v6260, 2
    %v6262 = vrot.slane %v5940, 7
    %v6263 = vrot.slane %v6262, 2
    %v6264 = vrot.slane %v5941, 7
    %v6265 = vrot.slane %v6264, 2
    %v6266 = vrot.slane %v5942, 7
    %v6267 = vrot.slane %v6266, 2
    %v6268 = vrot.slane %v5943, 7
    %v6269 = vrot.slane %v6268, 2
    %v6270 = vrot.slane %v5944, 7
    %v6271 = vrot.slane %v6270, 2
    %v6272 = vrot.slane %v5945, 7
    %v6273 = vrot.slane %v6272, 2
    %v6274 = vrot.slane %v5946, 7
    %v6275 = vrot.slane %v6274, 2
    %v6276 = vrot.slane %v5947, 7
    %v6277 = vrot.slane %v6276, 2
    %v6278 = vrot.slane %v5948, 7
    %v6279 = vrot.slane %v6278, 2
    %v6280 = vrot.slane %v5949, 7
    %v6281 = vrot.slane %v6280, 2
    %v6282 = vrot.slane %v5950, 7
    %v6283 = vrot.slane %v6282, 2
    %v6284 = vrot.slane %v5951, 7
    %v6285 = vrot.slane %v6284, 2
    %v6286 = vrot.slane %v5952, 7
    %v6287 = vrot.slane %v6286, 2
    %v6288 = vrot.slane %v5953, 7
    %v6289 = vrot.slane %v6288, 2
    %v6290 = vrot.slane %v5954, 7
    %v6291 = vrot.slane %v6290, 2
    %v6292 = vrot.slane %v5955, 7
    %v6293 = vrot.slane %v6292, 2
    %v6294 = vrot.slane %v5956, 7
    %v6295 = vrot.slane %v6294, 2
    %v6296 = vrot.slane %v5957, 7
    %v6297 = vrot.slane %v6296, 2
    %v6298 = vrot.slane %v5958, 7
    %v6299 = vrot.slane %v6298, 2
    %v6300 = vrot.slane %v5959, 7
    %v6301 = vrot.slane %v6300, 2
    %v6302 = vrot.slane %v5960, 7
    %v6303 = vrot.slane %v6302, 2
    %v6304 = vrot.slane %v5961, 7
    %v6305 = vrot.slane %v6304, 2
    %v6306 = vrot.slane %v5962, 7
    %v6307 = vrot.slane %v6306, 2
    %v6308 = vrot.slane %v5963, 7
    %v6309 = vrot.slane %v6308, 2
    %v6310 = vrot.slane %v5964, 7
    %v6311 = vrot.slane %v6310, 2
    %v6312 = vrot.slane %v5965, 7
    %v6313 = vrot.slane %v6312, 2
    %v6314 = vrot.slane %v5966, 7
    %v6315 = vrot.slane %v6314, 2
    %v6316 = vrot.slane %v5967, 7
    %v6317 = vrot.slane %v6316, 2
    %v6318 = vrot.slane %v5968, 7
    %v6319 = vrot.slane %v6318, 2
    %v6320 = vrot.slane %v5969, 7
    %v6321 = vrot.slane %v6320, 2
    %v6322 = vrot.slane %v5970, 7
    %v6323 = vrot.slane %v6322, 2
    %v6324 = vrot.slane %v5971, 7
    %v6325 = vrot.slane %v6324, 2
    %v6326 = vrot.slane %v5972, 7
    %v6327 = vrot.slane %v6326, 2
    %v6328 = vrot.slane %v5973, 7
    %v6329 = vrot.slane %v6328, 2
    %v6330 = vrot.slane %v5974, 7
    %v6331 = vrot.slane %v6330, 2
    %v6332 = vrot.slane %v5975, 7
    %v6333 = vrot.slane %v6332, 2
    %v6334 = vrot.slane %v5976, 7
    %v6335 = vrot.slane %v6334, 2
    %v6336 = vrot.slane %v5977, 7
    %v6337 = vrot.slane %v6336, 2
    %v6338 = vrot.slane %v5978, 7
    %v6339 = vrot.slane %v6338, 2
    %v6340 = vrot.slane %v5979, 7
    %v6341 = vrot.slane %v6340, 2
    %v6342 = vrot.slane %v5980, 7
    %v6343 = vrot.slane %v6342, 2
    %v6344 = vrot.slane %v5981, 7
    %v6345 = vrot.slane %v6344, 2
    %v6346 = vrot.slane %v5982, 7
    %v6347 = vrot.slane %v6346, 2
    %v6348 = vrot.slane %v5983, 7
    %v6349 = vrot.slane %v6348, 2
    %v6350 = vrot.slane %v5984, 7
    %v6351 = vrot.slane %v6350, 2
    %v6352 = vrot.slane %v5985, 7
    %v6353 = vrot.slane %v6352, 2
    %v6354 = vrot.slane %v5986, 7
    %v6355 = vrot.slane %v6354, 2
    %v6356 = vrot.slane %v5987, 7
    %v6357 = vrot.slane %v6356, 2
    %v6358 = vrot.slane %v5988, 7
    %v6359 = vrot.slane %v6358, 2
    %v6360 = vrot.slane %v5989, 7
    %v6361 = vrot.slane %v6360, 2
    %v6362 = vrot.slane %v5990, 7
    %v6363 = vrot.slane %v6362, 2
    %v6364 = vrot.slane %v5991, 7
    %v6365 = vrot.slane %v6364, 2
    %v6366 = vrot.slane %v5992, 7
    %v6367 = vrot.slane %v6366, 2
    %v6368 = vrot.slane %v5993, 7
    %v6369 = vrot.slane %v6368, 2
    %v6370 = vrot.slane %v5994, 7
    %v6371 = vrot.slane %v6370, 2
    %v6372 = vrot.slane %v5995, 7
    %v6373 = vrot.slane %v6372, 2
    %v6374 = vrot.slane %v5996, 7
    %v6375 = vrot.slane %v6374, 2
    %v6376 = vrot.slane %v5997, 7
    %v6377 = vrot.slane %v6376, 2
    %v6378 = vrot.slane %v5998, 7
    %v6379 = vrot.slane %v6378, 2
    %v6380 = vrot.slane %v5999, 7
    %v6381 = vrot.slane %v6380, 2
    %v6382 = vrot.slane %v6000, 7
    %v6383 = vrot.slane %v6382, 2
    %v6384 = vrot.slane %v6001, 7
    %v6385 = vrot.slane %v6384, 2
    %v6514 = vmax.f32 %v5874, %v6131
    %v6515 = vmax.f32 %v5875, %v6133
    %v6516 = vmax.f32 %v5876, %v6135
    %v6517 = vmax.f32 %v5877, %v6137
    %v6518 = vmax.f32 %v5878, %v6139
    %v6519 = vmax.f32 %v5879, %v6141
    %v6520 = vmax.f32 %v5880, %v6143
    %v6521 = vmax.f32 %v5881, %v6145
    %v6522 = vmax.f32 %v5882, %v6147
    %v6523 = vmax.f32 %v5883, %v6149
    %v6524 = vmax.f32 %v5884, %v6151
    %v6525 = vmax.f32 %v5885, %v6153
    %v6526 = vmax.f32 %v5886, %v6155
    %v6527 = vmax.f32 %v5887, %v6157
    %v6528 = vmax.f32 %v5888, %v6159
    %v6529 = vmax.f32 %v5889, %v6161
    %v6530 = vmax.f32 %v5890, %v6163
    %v6531 = vmax.f32 %v5891, %v6165
    %v6532 = vmax.f32 %v5892, %v6167
    %v6533 = vmax.f32 %v5893, %v6169
    %v6534 = vmax.f32 %v5894, %v6171
    %v6535 = vmax.f32 %v5895, %v6173
    %v6536 = vmax.f32 %v5896, %v6175
    %v6537 = vmax.f32 %v5897, %v6177
    %v6538 = vmax.f32 %v5898, %v6179
    %v6539 = vmax.f32 %v5899, %v6181
    %v6540 = vmax.f32 %v5900, %v6183
    %v6541 = vmax.f32 %v5901, %v6185
    %v6542 = vmax.f32 %v5902, %v6187
    %v6543 = vmax.f32 %v5903, %v6189
    %v6544 = vmax.f32 %v5904, %v6191
    %v6545 = vmax.f32 %v5905, %v6193
    %v6546 = vmax.f32 %v5906, %v6195
    %v6547 = vmax.f32 %v5907, %v6197
    %v6548 = vmax.f32 %v5908, %v6199
    %v6549 = vmax.f32 %v5909, %v6201
    %v6550 = vmax.f32 %v5910, %v6203
    %v6551 = vmax.f32 %v5911, %v6205
    %v6552 = vmax.f32 %v5912, %v6207
    %v6553 = vmax.f32 %v5913, %v6209
    %v6554 = vmax.f32 %v5914, %v6211
    %v6555 = vmax.f32 %v5915, %v6213
    %v6556 = vmax.f32 %v5916, %v6215
    %v6557 = vmax.f32 %v5917, %v6217
    %v6558 = vmax.f32 %v5918, %v6219
    %v6559 = vmax.f32 %v5919, %v6221
    %v6560 = vmax.f32 %v5920, %v6223
    %v6561 = vmax.f32 %v5921, %v6225
    %v6562 = vmax.f32 %v5922, %v6227
    %v6563 = vmax.f32 %v5923, %v6229
    %v6564 = vmax.f32 %v5924, %v6231
    %v6565 = vmax.f32 %v5925, %v6233
    %v6566 = vmax.f32 %v5926, %v6235
    %v6567 = vmax.f32 %v5927, %v6237
    %v6568 = vmax.f32 %v5928, %v6239
    %v6569 = vmax.f32 %v5929, %v6241
    %v6570 = vmax.f32 %v5930, %v6243
    %v6571 = vmax.f32 %v5931, %v6245
    %v6572 = vmax.f32 %v5932, %v6247
    %v6573 = vmax.f32 %v5933, %v6249
    %v6574 = vmax.f32 %v5934, %v6251
    %v6575 = vmax.f32 %v5935, %v6253
    %v6576 = vmax.f32 %v5936, %v6255
    %v6577 = vmax.f32 %v5937, %v6257
    %v6578 = vmax.f32 %v5938, %v6259
    %v6579 = vmax.f32 %v5939, %v6261
    %v6580 = vmax.f32 %v5940, %v6263
    %v6581 = vmax.f32 %v5941, %v6265
    %v6582 = vmax.f32 %v5942, %v6267
    %v6583 = vmax.f32 %v5943, %v6269
    %v6584 = vmax.f32 %v5944, %v6271
    %v6585 = vmax.f32 %v5945, %v6273
    %v6586 = vmax.f32 %v5946, %v6275
    %v6587 = vmax.f32 %v5947, %v6277
    %v6588 = vmax.f32 %v5948, %v6279
    %v6589 = vmax.f32 %v5949, %v6281
    %v6590 = vmax.f32 %v5950, %v6283
    %v6591 = vmax.f32 %v5951, %v6285
    %v6592 = vmax.f32 %v5952, %v6287
    %v6593 = vmax.f32 %v5953, %v6289
    %v6594 = vmax.f32 %v5954, %v6291
    %v6595 = vmax.f32 %v5955, %v6293
    %v6596 = vmax.f32 %v5956, %v6295
    %v6597 = vmax.f32 %v5957, %v6297
    %v6598 = vmax.f32 %v5958, %v6299
    %v6599 = vmax.f32 %v5959, %v6301
    %v6600 = vmax.f32 %v5960, %v6303
    %v6601 = vmax.f32 %v5961, %v6305
    %v6602 = vmax.f32 %v5962, %v6307
    %v6603 = vmax.f32 %v5963, %v6309
    %v6604 = vmax.f32 %v5964, %v6311
    %v6605 = vmax.f32 %v5965, %v6313
    %v6606 = vmax.f32 %v5966, %v6315
    %v6607 = vmax.f32 %v5967, %v6317
    %v6608 = vmax.f32 %v5968, %v6319
    %v6609 = vmax.f32 %v5969, %v6321
    %v6610 = vmax.f32 %v5970, %v6323
    %v6611 = vmax.f32 %v5971, %v6325
    %v6612 = vmax.f32 %v5972, %v6327
    %v6613 = vmax.f32 %v5973, %v6329
    %v6614 = vmax.f32 %v5974, %v6331
    %v6615 = vmax.f32 %v5975, %v6333
    %v6616 = vmax.f32 %v5976, %v6335
    %v6617 = vmax.f32 %v5977, %v6337
    %v6618 = vmax.f32 %v5978, %v6339
    %v6619 = vmax.f32 %v5979, %v6341
    %v6620 = vmax.f32 %v5980, %v6343
    %v6621 = vmax.f32 %v5981, %v6345
    %v6622 = vmax.f32 %v5982, %v6347
    %v6623 = vmax.f32 %v5983, %v6349
    %v6624 = vmax.f32 %v5984, %v6351
    %v6625 = vmax.f32 %v5985, %v6353
    %v6626 = vmax.f32 %v5986, %v6355
    %v6627 = vmax.f32 %v5987, %v6357
    %v6628 = vmax.f32 %v5988, %v6359
    %v6629 = vmax.f32 %v5989, %v6361
    %v6630 = vmax.f32 %v5990, %v6363
    %v6631 = vmax.f32 %v5991, %v6365
    %v6632 = vmax.f32 %v5992, %v6367
    %v6633 = vmax.f32 %v5993, %v6369
    %v6634 = vmax.f32 %v5994, %v6371
    %v6635 = vmax.f32 %v5995, %v6373
    %v6636 = vmax.f32 %v5996, %v6375
    %v6637 = vmax.f32 %v5997, %v6377
    %v6638 = vmax.f32 %v5998, %v6379
    %v6639 = vmax.f32 %v5999, %v6381
    %v6640 = vmax.f32 %v6000, %v6383
    %v6641 = vmax.f32 %v6001, %v6385
    %v6658 = vperm.slane %v6514, 0
    %v6659 = vperm.slane %v6522, 0
    %v6660 = vperm.slane %v6530, 0
    %v6661 = vperm.slane %v6538, 0
    %v6662 = vperm.slane %v6546, 0
    %v6663 = vperm.slane %v6554, 0
    %v6664 = vperm.slane %v6562, 0
    %v6665 = vperm.slane %v6570, 0
    %v6666 = vperm.slane %v6578, 0
    %v6667 = vperm.slane %v6586, 0
    %v6668 = vperm.slane %v6594, 0
    %v6669 = vperm.slane %v6602, 0
    %v6670 = vperm.slane %v6610, 0
    %v6671 = vperm.slane %v6618, 0
    %v6672 = vperm.slane %v6626, 0
    %v6673 = vperm.slane %v6634, 0
    %vm6674 = vcmask 1041409
    %v6675 = vsel %vm6674, %v6659, %v6658
    %vm6676 = vcmask 1042434
    %v6677 = vsel %vm6676, %v6660, %v6675
    %vm6678 = vcmask 1043459
    %v6679 = vsel %vm6678, %v6661, %v6677
    %vm6680 = vcmask 1044484
    %v6681 = vsel %vm6680, %v6662, %v6679
    %vm6682 = vcmask 1045509
    %v6683 = vsel %vm6682, %v6663, %v6681
    %vm6684 = vcmask 1046534
    %v6685 = vsel %vm6684, %v6664, %v6683
    %vm6686 = vcmask 1047559
    %v6687 = vsel %vm6686, %v6665, %v6685
    %v6688 = vsel %vm6674, %v6667, %v6666
    %v6689 = vsel %vm6676, %v6668, %v6688
    %v6690 = vsel %vm6678, %v6669, %v6689
    %v6691 = vsel %vm6680, %v6670, %v6690
    %v6692 = vsel %vm6682, %v6671, %v6691
    %v6693 = vsel %vm6684, %v6672, %v6692
    %v6694 = vsel %vm6686, %v6673, %v6693
    %v6713 = vperm.slane %v6515, 0
    %v6714 = vperm.slane %v6523, 0
    %v6715 = vperm.slane %v6531, 0
    %v6716 = vperm.slane %v6539, 0
    %v6717 = vperm.slane %v6547, 0
    %v6718 = vperm.slane %v6555, 0
    %v6719 = vperm.slane %v6563, 0
    %v6720 = vperm.slane %v6571, 0
    %v6721 = vperm.slane %v6579, 0
    %v6722 = vperm.slane %v6587, 0
    %v6723 = vperm.slane %v6595, 0
    %v6724 = vperm.slane %v6603, 0
    %v6725 = vperm.slane %v6611, 0
    %v6726 = vperm.slane %v6619, 0
    %v6727 = vperm.slane %v6627, 0
    %v6728 = vperm.slane %v6635, 0
    %v6729 = vsel %vm6674, %v6714, %v6713
    %v6730 = vsel %vm6676, %v6715, %v6729
    %v6731 = vsel %vm6678, %v6716, %v6730
    %v6732 = vsel %vm6680, %v6717, %v6731
    %v6733 = vsel %vm6682, %v6718, %v6732
    %v6734 = vsel %vm6684, %v6719, %v6733
    %v6735 = vsel %vm6686, %v6720, %v6734
    %v6736 = vsel %vm6674, %v6722, %v6721
    %v6737 = vsel %vm6676, %v6723, %v6736
    %v6738 = vsel %vm6678, %v6724, %v6737
    %v6739 = vsel %vm6680, %v6725, %v6738
    %v6740 = vsel %vm6682, %v6726, %v6739
    %v6741 = vsel %vm6684, %v6727, %v6740
    %v6742 = vsel %vm6686, %v6728, %v6741
    %6743 = vrot.lane.b32.xlu0 %v6735, 8
    %v6744 = vpop.permute.xlu0 %6743
    %6745 = vrot.lane.b32.xlu0 %v6742, 8
    %v6746 = vpop.permute.xlu0 %6745
    %v6765 = vperm.slane %v6516, 0
    %v6766 = vperm.slane %v6524, 0
    %v6767 = vperm.slane %v6532, 0
    %v6768 = vperm.slane %v6540, 0
    %v6769 = vperm.slane %v6548, 0
    %v6770 = vperm.slane %v6556, 0
    %v6771 = vperm.slane %v6564, 0
    %v6772 = vperm.slane %v6572, 0
    %v6773 = vperm.slane %v6580, 0
    %v6774 = vperm.slane %v6588, 0
    %v6775 = vperm.slane %v6596, 0
    %v6776 = vperm.slane %v6604, 0
    %v6777 = vperm.slane %v6612, 0
    %v6778 = vperm.slane %v6620, 0
    %v6779 = vperm.slane %v6628, 0
    %v6780 = vperm.slane %v6636, 0
    %v6781 = vsel %vm6674, %v6766, %v6765
    %v6782 = vsel %vm6676, %v6767, %v6781
    %v6783 = vsel %vm6678, %v6768, %v6782
    %v6784 = vsel %vm6680, %v6769, %v6783
    %v6785 = vsel %vm6682, %v6770, %v6784
    %v6786 = vsel %vm6684, %v6771, %v6785
    %v6787 = vsel %vm6686, %v6772, %v6786
    %v6788 = vsel %vm6674, %v6774, %v6773
    %v6789 = vsel %vm6676, %v6775, %v6788
    %v6790 = vsel %vm6678, %v6776, %v6789
    %v6791 = vsel %vm6680, %v6777, %v6790
    %v6792 = vsel %vm6682, %v6778, %v6791
    %v6793 = vsel %vm6684, %v6779, %v6792
    %v6794 = vsel %vm6686, %v6780, %v6793
    %6795 = vrot.lane.b32.xlu0 %v6787, 16
    %v6796 = vpop.permute.xlu0 %6795
    %6797 = vrot.lane.b32.xlu0 %v6794, 16
    %v6798 = vpop.permute.xlu0 %6797
    %v6817 = vperm.slane %v6517, 0
    %v6818 = vperm.slane %v6525, 0
    %v6819 = vperm.slane %v6533, 0
    %v6820 = vperm.slane %v6541, 0
    %v6821 = vperm.slane %v6549, 0
    %v6822 = vperm.slane %v6557, 0
    %v6823 = vperm.slane %v6565, 0
    %v6824 = vperm.slane %v6573, 0
    %v6825 = vperm.slane %v6581, 0
    %v6826 = vperm.slane %v6589, 0
    %v6827 = vperm.slane %v6597, 0
    %v6828 = vperm.slane %v6605, 0
    %v6829 = vperm.slane %v6613, 0
    %v6830 = vperm.slane %v6621, 0
    %v6831 = vperm.slane %v6629, 0
    %v6832 = vperm.slane %v6637, 0
    %v6833 = vsel %vm6674, %v6818, %v6817
    %v6834 = vsel %vm6676, %v6819, %v6833
    %v6835 = vsel %vm6678, %v6820, %v6834
    %v6836 = vsel %vm6680, %v6821, %v6835
    %v6837 = vsel %vm6682, %v6822, %v6836
    %v6838 = vsel %vm6684, %v6823, %v6837
    %v6839 = vsel %vm6686, %v6824, %v6838
    %v6840 = vsel %vm6674, %v6826, %v6825
    %v6841 = vsel %vm6676, %v6827, %v6840
    %v6842 = vsel %vm6678, %v6828, %v6841
    %v6843 = vsel %vm6680, %v6829, %v6842
    %v6844 = vsel %vm6682, %v6830, %v6843
    %v6845 = vsel %vm6684, %v6831, %v6844
    %v6846 = vsel %vm6686, %v6832, %v6845
    %6847 = vrot.lane.b32.xlu0 %v6839, 24
    %v6848 = vpop.permute.xlu0 %6847
    %6849 = vrot.lane.b32.xlu0 %v6846, 24
    %v6850 = vpop.permute.xlu0 %6849
    %v6869 = vperm.slane %v6518, 0
    %v6870 = vperm.slane %v6526, 0
    %v6871 = vperm.slane %v6534, 0
    %v6872 = vperm.slane %v6542, 0
    %v6873 = vperm.slane %v6550, 0
    %v6874 = vperm.slane %v6558, 0
    %v6875 = vperm.slane %v6566, 0
    %v6876 = vperm.slane %v6574, 0
    %v6877 = vperm.slane %v6582, 0
    %v6878 = vperm.slane %v6590, 0
    %v6879 = vperm.slane %v6598, 0
    %v6880 = vperm.slane %v6606, 0
    %v6881 = vperm.slane %v6614, 0
    %v6882 = vperm.slane %v6622, 0
    %v6883 = vperm.slane %v6630, 0
    %v6884 = vperm.slane %v6638, 0
    %v6885 = vsel %vm6674, %v6870, %v6869
    %v6886 = vsel %vm6676, %v6871, %v6885
    %v6887 = vsel %vm6678, %v6872, %v6886
    %v6888 = vsel %vm6680, %v6873, %v6887
    %v6889 = vsel %vm6682, %v6874, %v6888
    %v6890 = vsel %vm6684, %v6875, %v6889
    %v6891 = vsel %vm6686, %v6876, %v6890
    %v6892 = vsel %vm6674, %v6878, %v6877
    %v6893 = vsel %vm6676, %v6879, %v6892
    %v6894 = vsel %vm6678, %v6880, %v6893
    %v6895 = vsel %vm6680, %v6881, %v6894
    %v6896 = vsel %vm6682, %v6882, %v6895
    %v6897 = vsel %vm6684, %v6883, %v6896
    %v6898 = vsel %vm6686, %v6884, %v6897
    %6899 = vrot.lane.b32.xlu0 %v6891, 32
    %v6900 = vpop.permute.xlu0 %6899
    %6901 = vrot.lane.b32.xlu0 %v6898, 32
    %v6902 = vpop.permute.xlu0 %6901
    %v6921 = vperm.slane %v6519, 0
    %v6922 = vperm.slane %v6527, 0
    %v6923 = vperm.slane %v6535, 0
    %v6924 = vperm.slane %v6543, 0
    %v6925 = vperm.slane %v6551, 0
    %v6926 = vperm.slane %v6559, 0
    %v6927 = vperm.slane %v6567, 0
    %v6928 = vperm.slane %v6575, 0
    %v6929 = vperm.slane %v6583, 0
    %v6930 = vperm.slane %v6591, 0
    %v6931 = vperm.slane %v6599, 0
    %v6932 = vperm.slane %v6607, 0
    %v6933 = vperm.slane %v6615, 0
    %v6934 = vperm.slane %v6623, 0
    %v6935 = vperm.slane %v6631, 0
    %v6936 = vperm.slane %v6639, 0
    %v6937 = vsel %vm6674, %v6922, %v6921
    %v6938 = vsel %vm6676, %v6923, %v6937
    %v6939 = vsel %vm6678, %v6924, %v6938
    %v6940 = vsel %vm6680, %v6925, %v6939
    %v6941 = vsel %vm6682, %v6926, %v6940
    %v6942 = vsel %vm6684, %v6927, %v6941
    %v6943 = vsel %vm6686, %v6928, %v6942
    %v6944 = vsel %vm6674, %v6930, %v6929
    %v6945 = vsel %vm6676, %v6931, %v6944
    %v6946 = vsel %vm6678, %v6932, %v6945
    %v6947 = vsel %vm6680, %v6933, %v6946
    %v6948 = vsel %vm6682, %v6934, %v6947
    %v6949 = vsel %vm6684, %v6935, %v6948
    %v6950 = vsel %vm6686, %v6936, %v6949
    %6951 = vrot.lane.b32.xlu0 %v6943, 40
    %v6952 = vpop.permute.xlu0 %6951
    %6953 = vrot.lane.b32.xlu0 %v6950, 40
    %v6954 = vpop.permute.xlu0 %6953
    %v6973 = vperm.slane %v6520, 0
    %v6974 = vperm.slane %v6528, 0
    %v6975 = vperm.slane %v6536, 0
    %v6976 = vperm.slane %v6544, 0
    %v6977 = vperm.slane %v6552, 0
    %v6978 = vperm.slane %v6560, 0
    %v6979 = vperm.slane %v6568, 0
    %v6980 = vperm.slane %v6576, 0
    %v6981 = vperm.slane %v6584, 0
    %v6982 = vperm.slane %v6592, 0
    %v6983 = vperm.slane %v6600, 0
    %v6984 = vperm.slane %v6608, 0
    %v6985 = vperm.slane %v6616, 0
    %v6986 = vperm.slane %v6624, 0
    %v6987 = vperm.slane %v6632, 0
    %v6988 = vperm.slane %v6640, 0
    %v6989 = vsel %vm6674, %v6974, %v6973
    %v6990 = vsel %vm6676, %v6975, %v6989
    %v6991 = vsel %vm6678, %v6976, %v6990
    %v6992 = vsel %vm6680, %v6977, %v6991
    %v6993 = vsel %vm6682, %v6978, %v6992
    %v6994 = vsel %vm6684, %v6979, %v6993
    %v6995 = vsel %vm6686, %v6980, %v6994
    %v6996 = vsel %vm6674, %v6982, %v6981
    %v6997 = vsel %vm6676, %v6983, %v6996
    %v6998 = vsel %vm6678, %v6984, %v6997
    %v6999 = vsel %vm6680, %v6985, %v6998
    %v7000 = vsel %vm6682, %v6986, %v6999
    %v7001 = vsel %vm6684, %v6987, %v7000
    %v7002 = vsel %vm6686, %v6988, %v7001
    %7003 = vrot.lane.b32.xlu0 %v6995, 48
    %v7004 = vpop.permute.xlu0 %7003
    %7005 = vrot.lane.b32.xlu0 %v7002, 48
    %v7006 = vpop.permute.xlu0 %7005
    %v7025 = vperm.slane %v6521, 0
    %v7026 = vperm.slane %v6529, 0
    %v7027 = vperm.slane %v6537, 0
    %v7028 = vperm.slane %v6545, 0
    %v7029 = vperm.slane %v6553, 0
    %v7030 = vperm.slane %v6561, 0
    %v7031 = vperm.slane %v6569, 0
    %v7032 = vperm.slane %v6577, 0
    %v7033 = vperm.slane %v6585, 0
    %v7034 = vperm.slane %v6593, 0
    %v7035 = vperm.slane %v6601, 0
    %v7036 = vperm.slane %v6609, 0
    %v7037 = vperm.slane %v6617, 0
    %v7038 = vperm.slane %v6625, 0
    %v7039 = vperm.slane %v6633, 0
    %v7040 = vperm.slane %v6641, 0
    %v7041 = vsel %vm6674, %v7026, %v7025
    %v7042 = vsel %vm6676, %v7027, %v7041
    %v7043 = vsel %vm6678, %v7028, %v7042
    %v7044 = vsel %vm6680, %v7029, %v7043
    %v7045 = vsel %vm6682, %v7030, %v7044
    %v7046 = vsel %vm6684, %v7031, %v7045
    %v7047 = vsel %vm6686, %v7032, %v7046
    %v7048 = vsel %vm6674, %v7034, %v7033
    %v7049 = vsel %vm6676, %v7035, %v7048
    %v7050 = vsel %vm6678, %v7036, %v7049
    %v7051 = vsel %vm6680, %v7037, %v7050
    %v7052 = vsel %vm6682, %v7038, %v7051
    %v7053 = vsel %vm6684, %v7039, %v7052
    %v7054 = vsel %vm6686, %v7040, %v7053
    %7055 = vrot.lane.b32.xlu0 %v7047, 56
    %v7056 = vpop.permute.xlu0 %7055
    %7057 = vrot.lane.b32.xlu0 %v7054, 56
    %v7058 = vpop.permute.xlu0 %7057
    %v7061 = vsel %vm4645, %v6687, %v6744
    %v7062 = vsel %vm4645, %v6694, %v6746
    %v7063 = vsel %vm4775, %v7061, %v6796
    %v7064 = vsel %vm4775, %v7062, %v6798
    %v7065 = vsel %vm4905, %v7063, %v6848
    %v7066 = vsel %vm4905, %v7064, %v6850
    %v7067 = vsel %vm5035, %v7065, %v6900
    %v7068 = vsel %vm5035, %v7066, %v6902
    %vm7069 = vcmask 326656
    %v7070 = vsel %vm7069, %v7067, %v6952
    %v7071 = vsel %vm7069, %v7068, %v6954
    %vm7072 = vcmask 392192
    %v7073 = vsel %vm7072, %v7070, %v7004
    %v7074 = vsel %vm7072, %v7071, %v7006
    %vm7075 = vcmask 457728
    %v7076 = vsel %vm7075, %v7073, %v7056
    %v7077 = vsel %vm7075, %v7074, %v7058
    %v7080 = vrot.slane %v7077, 7
    %v7081 = vsel %vm6674, %v7080, %v7076
    %v7083 = vrot.slane %v7076, 1
    %v7084 = vsel %vm6674, %v7077, %v7083
    %7085 = vrot.lane.b32.xlu0 %v7084, 64
    %v7086 = vpop.permute.xlu0 %7085
    %v7088 = vrot.slane %v7076, 2
    %v7089 = vrot.slane %v7077, 1
    %v7090 = vsel %vm6674, %v7089, %v7088
    %v7092 = vrot.slane %v7076, 3
    %v7093 = vrot.slane %v7077, 2
    %v7094 = vsel %vm6674, %v7093, %v7092
    %7095 = vrot.lane.b32.xlu0 %v7094, 64
    %v7096 = vpop.permute.xlu0 %7095
    %v7098 = vrot.slane %v7076, 4
    %v7099 = vrot.slane %v7077, 3
    %v7100 = vsel %vm6674, %v7099, %v7098
    %v7102 = vrot.slane %v7076, 5
    %v7103 = vrot.slane %v7077, 4
    %v7104 = vsel %vm6674, %v7103, %v7102
    %7105 = vrot.lane.b32.xlu0 %v7104, 64
    %v7106 = vpop.permute.xlu0 %7105
    %v7108 = vrot.slane %v7076, 6
    %v7109 = vrot.slane %v7077, 5
    %v7110 = vsel %vm6674, %v7109, %v7108
    %v7112 = vrot.slane %v7076, 7
    %v7113 = vrot.slane %v7077, 6
    %v7114 = vsel %vm6674, %v7113, %v7112
    %7115 = vrot.lane.b32.xlu0 %v7114, 64
    %v7116 = vpop.permute.xlu0 %7115
    %vm7118 = vcmask 523264
    %v7119 = vsel %vm7118, %v7081, %v7086
    %v7120 = vsel %vm7118, %v7090, %v7096
    %v7121 = vsel %vm7118, %v7100, %v7106
    %v7122 = vsel %vm7118, %v7110, %v7116
    %v7127 = vrot.slane %v7120, 6
    %v7128 = vrot.slane %v7121, 4
    %v7129 = vrot.slane %v7122, 2
    %v7130 = vsel %vm5189, %v7119, %v7127
    %vm7131 = vcmask 1045508
    %v7132 = vsel %vm7131, %v7128, %v7129
    %vm7133 = vcmask 1043456
    %v7134 = vsel %vm7133, %v7130, %v7132
    %7136 = vst [vmem:[#allocation3] sm:$0xff] %v7134
    // Predicated region
    $region14: #{tpu_custom_call.1} parent=1 // pred_check
      _
    $region15: #{tpu_custom_call.1} parent=1 // pred_check_branch
      %7138 = sbr.rel (0) target = $region17
    $region16: #{tpu_custom_call.1} parent=1 // pred_region
      %7140 = vsyncadd [#allocation4], 0
      %s7142 = sshll.u32 [#allocation3], 4
      %s7143 = int_to_ptr.vmem [resolvable:$true] %s7142
      %s7144 = sshll.u32 %s3, 4
      %s7145 = int_to_ptr.hbm [resolvable:$true] %s7144
      %7147 = dma.vmem_to_hbm [thread:$0]  %s7143, 128, %s7145, [#allocation4]
    $region17: #{tpu_custom_call.1} parent=1 // pred_fallthru
      _
    // Predicated region
    $region18: #{tpu_custom_call.1} parent=1 // pred_check
      _
    $region19: #{tpu_custom_call.1} parent=1 // pred_check_branch
      %7149 = sbr.rel (0) target = $region21
    $region20: #{tpu_custom_call.1} parent=1 // pred_region
      %7151 = dma.done [#allocation4], 128
    $region21: #{tpu_custom_call.1} parent=1 // pred_fallthru
      _
    %7152 = vsyncpa [#allocation4], 1

</llo_original>
